<compile_context>
chip_gen: v7x
topology: tpu7x:2x2x1
jax: 0.10.0
libtpu: 0.0.40
codegen_flags: <defaults>
</compile_context>

<pallas_src>
import functools

import jax
import jax.numpy as jnp
from jax import lax
from jax.experimental import pallas as pl
from jax.experimental.pallas import tpu as pltpu


def _leaky(x, slope=0.2):
    return jnp.where(x >= 0, x, slope * x)


def _down_block_kernel(Bt, Ho, Wo, Cin, Cout,
                       xs_ref, w1_ref, w2_ref, w3_ref, b_ref,
                       out_ref, ypad_ref):
    """Processes Bt batch images per grid step.

    xs_ref  : (Bt, Ho+2, Wo+2, 4*Cin) bf16  zero-padded space-to-depth input
    w1_ref  : (9, 4*Cin, Cout)        bf16  conv1 (4x4,s2,p1) as 3x3 taps over
                                            xs, BN1 scale folded in
    w2_ref  : (9, Cout, Cout)         bf16  conv2 taps, (0.5*BN2 scale) folded
    w3_ref  : (4*Cin, Cout)           bf16  pool+1x1 direct, (0.5*BN3 scale)
                                            and the 1/4 pool weight folded
    b_ref   : (3, Cout)               f32   biases (b1, 0.5*b2, 0.5*b3)
    out_ref : (Bt, Cout, Ho*Wo)       f32   NCHW-flat output
    ypad_ref: VMEM (Bt, Ho+2, Wo+2, Cout) bf16 zero-bordered conv1 activation
    """
    M = Bt * Ho * Wo
    C4 = 4 * Cin
    taps = [(dh, dw) for dh in range(3) for dw in range(3)]

    # ---- conv1: 4x4/s2/p1 == 3x3/s1 conv over the space-to-depth input.
    # Per-tap accumulation (no im2col temp); the centre slab is reused for the
    # pool-folded 1x1 direct path.
    acc1 = None
    d = None
    for t, (dh, dw) in enumerate(taps):
        slab = xs_ref[:, dh:dh + Ho, dw:dw + Wo, :].reshape(M, C4)
        acc_t = jnp.dot(slab, w1_ref[t], preferred_element_type=jnp.float32)
        acc1 = acc_t if acc1 is None else acc1 + acc_t
        if dh == 1 and dw == 1:
            d = jnp.dot(slab, w3_ref[...], preferred_element_type=jnp.float32)

    y1 = _leaky(acc1 + b_ref[0:1, :])          # BN1 (scale in weights) + lrelu
    d = _leaky(d + b_ref[2:3, :])              # direct path (0.5 folded in)

    # ---- conv2: 3x3/s1/p1 over a bf16 zero-bordered scratch. Only the
    # 1-wide border is (re)zeroed; the interior is fully overwritten every
    # step, so this stays correct under "parallel" megacore splitting.
    ypad_ref[:, 0:1, :, :] = jnp.zeros((Bt, 1, Wo + 2, Cout), jnp.bfloat16)
    ypad_ref[:, Ho + 1:Ho + 2, :, :] = jnp.zeros((Bt, 1, Wo + 2, Cout), jnp.bfloat16)
    ypad_ref[:, 1:Ho + 1, 0:1, :] = jnp.zeros((Bt, Ho, 1, Cout), jnp.bfloat16)
    ypad_ref[:, 1:Ho + 1, Wo + 1:Wo + 2, :] = jnp.zeros((Bt, Ho, 1, Cout), jnp.bfloat16)
    ypad_ref[:, 1:Ho + 1, 1:Wo + 1, :] = (
        y1.reshape(Bt, Ho, Wo, Cout).astype(jnp.bfloat16))

    acc2 = None
    for t, (dh, dw) in enumerate(taps):
        slab2 = ypad_ref[:, dh:dh + Ho, dw:dw + Wo, :].reshape(M, Cout)
        acc_t = jnp.dot(slab2, w2_ref[t], preferred_element_type=jnp.float32)
        acc2 = acc_t if acc2 is None else acc2 + acc_t

    y2 = _leaky(acc2 + b_ref[1:2, :])          # BN2 (0.5 folded) + lrelu

    # ---- main + direct (the /2 is already folded in); store NCHW-flat,
    # channels-on-sublanes / pixels-on-lanes.
    out = (y2 + d).reshape(Bt, Ho * Wo, Cout)
    for b in range(Bt):
        out_ref[b] = out[b].T.astype(out_ref.dtype)


def down_block_comp(x_nchw, w1, w2, w3, bn_params):
    """x_nchw: (N, Cin, H, W); weights in PyTorch OIHW layout (already
    spectrally normalized); bn_params = (s1,b1,s2,b2,s3,b3), each (Cout,).
    Returns the block output in NCHW."""
    N, Cin, H, W = x_nchw.shape
    Cout = w1.shape[0]
    assert H % 2 == 0 and W % 2 == 0, "DownBlockComp needs even spatial dims"
    Ho, Wo = H // 2, W // 2
    HoWo = Ho * Wo
    C4 = 4 * Cin
    s1, b1, s2, b2, s3, b3 = bn_params

    # Batch tile: fold several images into the matmul M dim when the spatial
    # plane is small (MXU fill + per-step overhead amortization).
    Bt = max(1, min(N, 1024 // max(HoWo, 1)))
    while N % Bt:
        Bt -= 1

    # glue: space-to-depth (no data blow-up) + 1-pixel zero halo, cast to bf16.
    # xs[n, q, p, (r, s, c)] = x[n, 2q+r, 2p+s, c]
    x = jnp.transpose(x_nchw, (0, 2, 3, 1)).astype(jnp.float32)   # NHWC
    xs = x.reshape(N, Ho, 2, Wo, 2, Cin)
    xs = jnp.transpose(xs, (0, 1, 3, 2, 4, 5)).reshape(N, Ho, Wo, C4)
    xs = jnp.pad(xs, ((0, 0), (1, 1), (1, 1), (0, 0))).astype(jnp.bfloat16)

    # glue: conv1 (OIHW 4x4/s2/p1) -> equivalent 3x3 taps over the
    # space-to-depth channels, rows ordered (r, s, cin); BN1 scale folded into
    # the output columns.
    w1_eff = jnp.zeros((3, 3, 2, 2, Cin, Cout), jnp.float32)
    for kh in range(4):
        a, r = (kh - 1) // 2, (kh - 1) % 2
        for kw in range(4):
            bshift, s = (kw - 1) // 2, (kw - 1) % 2
            w1_eff = w1_eff.at[a + 1, bshift + 1, r, s].set(w1[:, :, kh, kw].T)
    w1m = (w1_eff * s1).reshape(9, C4, Cout).astype(jnp.bfloat16)

    # glue: conv2 taps with (0.5 * BN2 scale) folded; direct 1x1 with the 2x2
    # avg-pool (1/4) and (0.5 * BN3 scale) folded in.
    w2m = (jnp.transpose(w2, (2, 3, 1, 0)).reshape(9, Cout, Cout)
           * (0.5 * s2)).astype(jnp.bfloat16)
    w3m = (jnp.tile(w3[:, :, 0, 0].T, (4, 1))
           * (0.25 * 0.5 * s3)).astype(jnp.bfloat16)                # (4*Cin, Cout)

    biases = jnp.stack([b1, 0.5 * b2, 0.5 * b3], axis=0).astype(jnp.float32)

    kernel = functools.partial(_down_block_kernel, Bt, Ho, Wo, Cin, Cout)
    out = pl.pallas_call(
        kernel,
        out_shape=jax.ShapeDtypeStruct((N, Cout, HoWo), jnp.float32),
        grid=(N // Bt,),
        in_specs=[
            pl.BlockSpec((Bt, Ho + 2, Wo + 2, C4), lambda n: (n, 0, 0, 0)),
            pl.BlockSpec((9, C4, Cout), lambda n: (0, 0, 0)),
            pl.BlockSpec((9, Cout, Cout), lambda n: (0, 0, 0)),
            pl.BlockSpec((C4, Cout), lambda n: (0, 0)),
            pl.BlockSpec((3, Cout), lambda n: (0, 0)),
        ],
        out_specs=pl.BlockSpec((Bt, Cout, HoWo), lambda n: (n, 0, 0)),
        scratch_shapes=[pltpu.VMEM((Bt, Ho + 2, Wo + 2, Cout), jnp.bfloat16)],
        compiler_params=pltpu.CompilerParams(
            dimension_semantics=("parallel",),
            vmem_limit_bytes=64 * 1024 * 1024),
    )(xs, w1m, w2m, w3m, biases)

    return out.reshape(N, Cout, Ho, Wo)


# ---------------------------------------------------------------------------
# Parameter setup (deterministic, in-script)
# ---------------------------------------------------------------------------
def spectral_normalize(w, n_iter=30):
    """Deterministic spectral norm: W / sigma_max(W.reshape(Cout, -1))."""
    wm = w.reshape(w.shape[0], -1)
    v = jnp.ones((wm.shape[1],), jnp.float32)
    v = v / jnp.linalg.norm(v)
    u = wm @ v
    for _ in range(n_iter):
        u = wm @ v
        u = u / (jnp.linalg.norm(u) + 1e-12)
        v = wm.T @ u
        v = v / (jnp.linalg.norm(v) + 1e-12)
    sigma = u @ (wm @ v)
    return w / sigma


def bn_fold(gamma, beta, mean, var, eps=1e-5):
    scale = gamma / jnp.sqrt(var + eps)
    bias = beta - mean * scale
    return scale, bias


# ---------------------------------------------------------------------------
# Plain-JAX reference (f32, HIGHEST precision) for a sanity check
# ---------------------------------------------------------------------------
def reference_nhwc(x_nhwc, w1, w2, w3, bn):
    s1, b1, s2, b2, s3, b3 = bn
    hp = lax.Precision.HIGHEST

    def conv(x, w, stride, pad):
        return lax.conv_general_dilated(
            x, jnp.transpose(w, (2, 3, 1, 0)), (stride, stride),
            ((pad, pad), (pad, pad)),
            dimension_numbers=("NHWC", "HWIO", "NHWC"), precision=hp)

    def bn_lrelu(y, s, b):
        y = y * s + b
        return jnp.where(y >= 0, y, 0.2 * y)

    y = bn_lrelu(conv(x_nhwc, w1, 2, 1), s1, b1)
    y = bn_lrelu(conv(y, w2, 1, 1), s2, b2)
    d = lax.reduce_window(x_nhwc, 0.0, lax.add,
                          (1, 2, 2, 1), (1, 2, 2, 1), "VALID") / 4.0
    d = bn_lrelu(conv(d, w3, 1, 0), s3, b3)
    return (y + d) / 2.0


if __name__ == "__main__":
    key = jax.random.PRNGKey(0)
    N, Cin, Cout, H, W = 2, 4, 8, 16, 16
    keys = jax.random.split(key, 16)

    x = jax.random.normal(keys[0], (N, Cin, H, W), jnp.float32)

    # spectral_norm(conv2d(...)) -> deterministic weights, normalized in glue
    w1 = spectral_normalize(
        0.2 * jax.random.normal(keys[1], (Cout, Cin, 4, 4), jnp.float32))
    w2 = spectral_normalize(
        0.2 * jax.random.normal(keys[2], (Cout, Cout, 3, 3), jnp.float32))
    w3 = spectral_normalize(
        0.2 * jax.random.normal(keys[3], (Cout, Cin, 1, 1), jnp.float32))

    # TODO(synk): BatchNorm is implemented in inference mode (running statistics
    # folded into per-channel scale/bias); training-mode batch statistics are
    # not reproduced.
    def bn_init(kg, kb, km, kv):
        gamma = 1.0 + 0.1 * jax.random.normal(kg, (Cout,), jnp.float32)
        beta = 0.1 * jax.random.normal(kb, (Cout,), jnp.float32)
        mean = 0.1 * jax.random.normal(km, (Cout,), jnp.float32)
        var = jax.random.uniform(kv, (Cout,), jnp.float32, minval=0.5, maxval=1.5)
        return bn_fold(gamma, beta, mean, var)

    s1, b1 = bn_init(keys[4], keys[5], keys[6], keys[7])
    s2, b2 = bn_init(keys[8], keys[9], keys[10], keys[11])
    s3, b3 = bn_init(keys[12], keys[13], keys[14], keys[15])
    bn = (s1, b1, s2, b2, s3, b3)

    out_nchw = down_block_comp(x, w1, w2, w3, bn)
    out_nchw = jax.block_until_ready(out_nchw)

    # sanity check vs. plain-JAX f32 reference (kernel uses bf16 MXU matmuls
    # with f32 accumulation and BN scales folded into bf16 weights, so the
    # tolerance is relaxed accordingly).
    x_nhwc = jnp.transpose(x, (0, 2, 3, 1))
    ref = jnp.transpose(reference_nhwc(x_nhwc, w1, w2, w3, bn), (0, 3, 1, 2))
    err = float(jnp.max(jnp.abs(out_nchw - ref)))
    assert out_nchw.shape == (N, Cout, H // 2, W // 2), out_nchw.shape
    assert err < 5e-2, f"mismatch vs reference: {err}"

    print("KERNEL_OK")
</pallas_src>

<mosaic_0001>
module attributes {stable_mosaic.version = 11 : i64} {
  func.func @_down_block_kernel(%arg0: i32, %arg1: memref<2x10x10x16xbf16, #tpu.memory_space<vmem>>, %arg2: memref<9x16x8xbf16, #tpu.memory_space<vmem>>, %arg3: memref<9x8x8xbf16, #tpu.memory_space<vmem>>, %arg4: memref<16x8xbf16, #tpu.memory_space<vmem>>, %arg5: memref<3x8xf32, #tpu.memory_space<vmem>>, %arg6: memref<2x8x64xf32, #tpu.memory_space<vmem>>, %arg7: memref<2x10x10x8xbf16, #tpu.memory_space<vmem>>) attributes {dimension_semantics = [#tpu.dimension_semantics<parallel>], iteration_bounds = array<i64: 1>, scalar_prefetch = 0 : i64, scratch_operands = 1 : i64, tpu.core_type = #tpu.core_type<tc>, window_params = [{transform_indices = @transform_0, window_bounds = array<i64: 2, 10, 10, 16>}, {pipeline_mode = #tpu.pipeline_mode<synchronous>, transform_indices = @transform_1, window_bounds = array<i64: 9, 16, 8>}, {pipeline_mode = #tpu.pipeline_mode<synchronous>, transform_indices = @transform_2, window_bounds = array<i64: 9, 8, 8>}, {pipeline_mode = #tpu.pipeline_mode<synchronous>, transform_indices = @transform_3, window_bounds = array<i64: 16, 8>}, {pipeline_mode = #tpu.pipeline_mode<synchronous>, transform_indices = @transform_4, window_bounds = array<i64: 3, 8>}, {transform_indices = @transform_5, window_bounds = array<i64: 2, 8, 64>}]} {
    %c0 = arith.constant 0 : index
    %c0_0 = arith.constant 0 : index
    %c0_1 = arith.constant 0 : index
    %c0_2 = arith.constant 0 : index
    %0 = vector.load %arg1[%c0, %c0_0, %c0_1, %c0_2] : memref<2x10x10x16xbf16, #tpu.memory_space<vmem>>, vector<2x8x8x16xbf16>
    %1 = vector.shape_cast %0 : vector<2x8x8x16xbf16> to vector<128x16xbf16>
    %c0_3 = arith.constant 0 : index
    %c0_4 = arith.constant 0 : index
    %c0_5 = arith.constant 0 : index
    %2 = vector.load %arg2[%c0_3, %c0_4, %c0_5] : memref<9x16x8xbf16, #tpu.memory_space<vmem>>, vector<1x16x8xbf16>
    %3 = vector.shape_cast %2 : vector<1x16x8xbf16> to vector<16x8xbf16>
    %cst = arith.constant dense<0.000000e+00> : vector<128x8xf32>
    %4 = tpu.matmul %1, %3, %cst {dimension_numbers = #tpu.dot_dimension_numbers<[1], [0], [0], [1], [0, 0, 1, 1], [], []>} : vector<128x16xbf16>, vector<16x8xbf16>, vector<128x8xf32> -> vector<128x8xf32>
    %c0_6 = arith.constant 0 : index
    %c0_7 = arith.constant 0 : index
    %c1 = arith.constant 1 : index
    %c0_8 = arith.constant 0 : index
    %5 = vector.load %arg1[%c0_6, %c0_7, %c1, %c0_8] : memref<2x10x10x16xbf16, #tpu.memory_space<vmem>>, vector<2x8x8x16xbf16>
    %6 = vector.shape_cast %5 : vector<2x8x8x16xbf16> to vector<128x16xbf16>
    %c1_9 = arith.constant 1 : index
    %c0_10 = arith.constant 0 : index
    %c0_11 = arith.constant 0 : index
    %7 = vector.load %arg2[%c1_9, %c0_10, %c0_11] : memref<9x16x8xbf16, #tpu.memory_space<vmem>>, vector<1x16x8xbf16>
    %8 = vector.shape_cast %7 : vector<1x16x8xbf16> to vector<16x8xbf16>
    %cst_12 = arith.constant dense<0.000000e+00> : vector<128x8xf32>
    %9 = tpu.matmul %6, %8, %cst_12 {dimension_numbers = #tpu.dot_dimension_numbers<[1], [0], [0], [1], [0, 0, 1, 1], [], []>} : vector<128x16xbf16>, vector<16x8xbf16>, vector<128x8xf32> -> vector<128x8xf32>
    %10 = arith.addf %4, %9 : vector<128x8xf32>
    %c0_13 = arith.constant 0 : index
    %c0_14 = arith.constant 0 : index
    %c2 = arith.constant 2 : index
    %c0_15 = arith.constant 0 : index
    %11 = vector.load %arg1[%c0_13, %c0_14, %c2, %c0_15] : memref<2x10x10x16xbf16, #tpu.memory_space<vmem>>, vector<2x8x8x16xbf16>
    %12 = vector.shape_cast %11 : vector<2x8x8x16xbf16> to vector<128x16xbf16>
    %c2_16 = arith.constant 2 : index
    %c0_17 = arith.constant 0 : index
    %c0_18 = arith.constant 0 : index
    %13 = vector.load %arg2[%c2_16, %c0_17, %c0_18] : memref<9x16x8xbf16, #tpu.memory_space<vmem>>, vector<1x16x8xbf16>
    %14 = vector.shape_cast %13 : vector<1x16x8xbf16> to vector<16x8xbf16>
    %cst_19 = arith.constant dense<0.000000e+00> : vector<128x8xf32>
    %15 = tpu.matmul %12, %14, %cst_19 {dimension_numbers = #tpu.dot_dimension_numbers<[1], [0], [0], [1], [0, 0, 1, 1], [], []>} : vector<128x16xbf16>, vector<16x8xbf16>, vector<128x8xf32> -> vector<128x8xf32>
    %16 = arith.addf %10, %15 : vector<128x8xf32>
    %c0_20 = arith.constant 0 : index
    %c1_21 = arith.constant 1 : index
    %c0_22 = arith.constant 0 : index
    %c0_23 = arith.constant 0 : index
    %17 = vector.load %arg1[%c0_20, %c1_21, %c0_22, %c0_23] : memref<2x10x10x16xbf16, #tpu.memory_space<vmem>>, vector<2x8x8x16xbf16>
    %18 = vector.shape_cast %17 : vector<2x8x8x16xbf16> to vector<128x16xbf16>
    %c3 = arith.constant 3 : index
    %c0_24 = arith.constant 0 : index
    %c0_25 = arith.constant 0 : index
    %19 = vector.load %arg2[%c3, %c0_24, %c0_25] : memref<9x16x8xbf16, #tpu.memory_space<vmem>>, vector<1x16x8xbf16>
    %20 = vector.shape_cast %19 : vector<1x16x8xbf16> to vector<16x8xbf16>
    %cst_26 = arith.constant dense<0.000000e+00> : vector<128x8xf32>
    %21 = tpu.matmul %18, %20, %cst_26 {dimension_numbers = #tpu.dot_dimension_numbers<[1], [0], [0], [1], [0, 0, 1, 1], [], []>} : vector<128x16xbf16>, vector<16x8xbf16>, vector<128x8xf32> -> vector<128x8xf32>
    %22 = arith.addf %16, %21 : vector<128x8xf32>
    %c0_27 = arith.constant 0 : index
    %c1_28 = arith.constant 1 : index
    %c1_29 = arith.constant 1 : index
    %c0_30 = arith.constant 0 : index
    %23 = vector.load %arg1[%c0_27, %c1_28, %c1_29, %c0_30] : memref<2x10x10x16xbf16, #tpu.memory_space<vmem>>, vector<2x8x8x16xbf16>
    %24 = vector.shape_cast %23 : vector<2x8x8x16xbf16> to vector<128x16xbf16>
    %c4 = arith.constant 4 : index
    %c0_31 = arith.constant 0 : index
    %c0_32 = arith.constant 0 : index
    %25 = vector.load %arg2[%c4, %c0_31, %c0_32] : memref<9x16x8xbf16, #tpu.memory_space<vmem>>, vector<1x16x8xbf16>
    %26 = vector.shape_cast %25 : vector<1x16x8xbf16> to vector<16x8xbf16>
    %cst_33 = arith.constant dense<0.000000e+00> : vector<128x8xf32>
    %27 = tpu.matmul %24, %26, %cst_33 {dimension_numbers = #tpu.dot_dimension_numbers<[1], [0], [0], [1], [0, 0, 1, 1], [], []>} : vector<128x16xbf16>, vector<16x8xbf16>, vector<128x8xf32> -> vector<128x8xf32>
    %28 = arith.addf %22, %27 : vector<128x8xf32>
    %c0_34 = arith.constant 0 : index
    %c0_35 = arith.constant 0 : index
    %29 = vector.load %arg4[%c0_34, %c0_35] : memref<16x8xbf16, #tpu.memory_space<vmem>>, vector<16x8xbf16>
    %cst_36 = arith.constant dense<0.000000e+00> : vector<128x8xf32>
    %30 = tpu.matmul %24, %29, %cst_36 {dimension_numbers = #tpu.dot_dimension_numbers<[1], [0], [0], [1], [0, 0, 1, 1], [], []>} : vector<128x16xbf16>, vector<16x8xbf16>, vector<128x8xf32> -> vector<128x8xf32>
    %c0_37 = arith.constant 0 : index
    %c1_38 = arith.constant 1 : index
    %c2_39 = arith.constant 2 : index
    %c0_40 = arith.constant 0 : index
    %31 = vector.load %arg1[%c0_37, %c1_38, %c2_39, %c0_40] : memref<2x10x10x16xbf16, #tpu.memory_space<vmem>>, vector<2x8x8x16xbf16>
    %32 = vector.shape_cast %31 : vector<2x8x8x16xbf16> to vector<128x16xbf16>
    %c5 = arith.constant 5 : index
    %c0_41 = arith.constant 0 : index
    %c0_42 = arith.constant 0 : index
    %33 = vector.load %arg2[%c5, %c0_41, %c0_42] : memref<9x16x8xbf16, #tpu.memory_space<vmem>>, vector<1x16x8xbf16>
    %34 = vector.shape_cast %33 : vector<1x16x8xbf16> to vector<16x8xbf16>
    %cst_43 = arith.constant dense<0.000000e+00> : vector<128x8xf32>
    %35 = tpu.matmul %32, %34, %cst_43 {dimension_numbers = #tpu.dot_dimension_numbers<[1], [0], [0], [1], [0, 0, 1, 1], [], []>} : vector<128x16xbf16>, vector<16x8xbf16>, vector<128x8xf32> -> vector<128x8xf32>
    %36 = arith.addf %28, %35 : vector<128x8xf32>
    %c0_44 = arith.constant 0 : index
    %c2_45 = arith.constant 2 : index
    %c0_46 = arith.constant 0 : index
    %c0_47 = arith.constant 0 : index
    %37 = vector.load %arg1[%c0_44, %c2_45, %c0_46, %c0_47] : memref<2x10x10x16xbf16, #tpu.memory_space<vmem>>, vector<2x8x8x16xbf16>
    %38 = vector.shape_cast %37 : vector<2x8x8x16xbf16> to vector<128x16xbf16>
    %c6 = arith.constant 6 : index
    %c0_48 = arith.constant 0 : index
    %c0_49 = arith.constant 0 : index
    %39 = vector.load %arg2[%c6, %c0_48, %c0_49] : memref<9x16x8xbf16, #tpu.memory_space<vmem>>, vector<1x16x8xbf16>
    %40 = vector.shape_cast %39 : vector<1x16x8xbf16> to vector<16x8xbf16>
    %cst_50 = arith.constant dense<0.000000e+00> : vector<128x8xf32>
    %41 = tpu.matmul %38, %40, %cst_50 {dimension_numbers = #tpu.dot_dimension_numbers<[1], [0], [0], [1], [0, 0, 1, 1], [], []>} : vector<128x16xbf16>, vector<16x8xbf16>, vector<128x8xf32> -> vector<128x8xf32>
    %42 = arith.addf %36, %41 : vector<128x8xf32>
    %c0_51 = arith.constant 0 : index
    %c2_52 = arith.constant 2 : index
    %c1_53 = arith.constant 1 : index
    %c0_54 = arith.constant 0 : index
    %43 = vector.load %arg1[%c0_51, %c2_52, %c1_53, %c0_54] : memref<2x10x10x16xbf16, #tpu.memory_space<vmem>>, vector<2x8x8x16xbf16>
    %44 = vector.shape_cast %43 : vector<2x8x8x16xbf16> to vector<128x16xbf16>
    %c7 = arith.constant 7 : index
    %c0_55 = arith.constant 0 : index
    %c0_56 = arith.constant 0 : index
    %45 = vector.load %arg2[%c7, %c0_55, %c0_56] : memref<9x16x8xbf16, #tpu.memory_space<vmem>>, vector<1x16x8xbf16>
    %46 = vector.shape_cast %45 : vector<1x16x8xbf16> to vector<16x8xbf16>
    %cst_57 = arith.constant dense<0.000000e+00> : vector<128x8xf32>
    %47 = tpu.matmul %44, %46, %cst_57 {dimension_numbers = #tpu.dot_dimension_numbers<[1], [0], [0], [1], [0, 0, 1, 1], [], []>} : vector<128x16xbf16>, vector<16x8xbf16>, vector<128x8xf32> -> vector<128x8xf32>
    %48 = arith.addf %42, %47 : vector<128x8xf32>
    %c0_58 = arith.constant 0 : index
    %c2_59 = arith.constant 2 : index
    %c2_60 = arith.constant 2 : index
    %c0_61 = arith.constant 0 : index
    %49 = vector.load %arg1[%c0_58, %c2_59, %c2_60, %c0_61] : memref<2x10x10x16xbf16, #tpu.memory_space<vmem>>, vector<2x8x8x16xbf16>
    %50 = vector.shape_cast %49 : vector<2x8x8x16xbf16> to vector<128x16xbf16>
    %c8 = arith.constant 8 : index
    %c0_62 = arith.constant 0 : index
    %c0_63 = arith.constant 0 : index
    %51 = vector.load %arg2[%c8, %c0_62, %c0_63] : memref<9x16x8xbf16, #tpu.memory_space<vmem>>, vector<1x16x8xbf16>
    %52 = vector.shape_cast %51 : vector<1x16x8xbf16> to vector<16x8xbf16>
    %cst_64 = arith.constant dense<0.000000e+00> : vector<128x8xf32>
    %53 = tpu.matmul %50, %52, %cst_64 {dimension_numbers = #tpu.dot_dimension_numbers<[1], [0], [0], [1], [0, 0, 1, 1], [], []>} : vector<128x16xbf16>, vector<16x8xbf16>, vector<128x8xf32> -> vector<128x8xf32>
    %54 = arith.addf %48, %53 : vector<128x8xf32>
    %c0_65 = arith.constant 0 : index
    %c0_66 = arith.constant 0 : index
    %55 = vector.load %arg5[%c0_65, %c0_66] : memref<3x8xf32, #tpu.memory_space<vmem>>, vector<1x8xf32>
    %56 = vector.broadcast %55 : vector<1x8xf32> to vector<128x8xf32>
    %57 = arith.addf %54, %56 : vector<128x8xf32>
    %cst_67 = arith.constant 0.000000e+00 : f32
    %58 = vector.broadcast %cst_67 : f32 to vector<128x8xf32>
    %59 = arith.cmpf oge, %57, %58 : vector<128x8xf32>
    %cst_68 = arith.constant 2.000000e-01 : f32
    %60 = vector.broadcast %cst_68 : f32 to vector<128x8xf32>
    %61 = arith.mulf %60, %57 : vector<128x8xf32>
    %62 = arith.select %59, %57, %61 : vector<128x8xi1>, vector<128x8xf32>
    %c2_69 = arith.constant 2 : index
    %c0_70 = arith.constant 0 : index
    %63 = vector.load %arg5[%c2_69, %c0_70] : memref<3x8xf32, #tpu.memory_space<vmem>>, vector<1x8xf32>
    %64 = vector.broadcast %63 : vector<1x8xf32> to vector<128x8xf32>
    %65 = arith.addf %30, %64 : vector<128x8xf32>
    %cst_71 = arith.constant 0.000000e+00 : f32
    %66 = vector.broadcast %cst_71 : f32 to vector<128x8xf32>
    %67 = arith.cmpf oge, %65, %66 : vector<128x8xf32>
    %cst_72 = arith.constant 2.000000e-01 : f32
    %68 = vector.broadcast %cst_72 : f32 to vector<128x8xf32>
    %69 = arith.mulf %68, %65 : vector<128x8xf32>
    %70 = arith.select %67, %65, %69 : vector<128x8xi1>, vector<128x8xf32>
    %cst_73 = arith.constant 0.000000e+00 : bf16
    %71 = vector.broadcast %cst_73 : bf16 to vector<2x1x10x8xbf16>
    %c0_74 = arith.constant 0 : index
    %c0_75 = arith.constant 0 : index
    %c0_76 = arith.constant 0 : index
    %c0_77 = arith.constant 0 : index
    %72 = vector.load %arg7[%c0_74, %c0_75, %c0_76, %c0_77] : memref<2x10x10x8xbf16, #tpu.memory_space<vmem>>, vector<2x1x10x8xbf16>
    tpu.vector_store %arg7[%c0_74, %c0_75, %c0_76, %c0_77], %71 {strides = array<i32>} : memref<2x10x10x8xbf16, #tpu.memory_space<vmem>>, vector<2x1x10x8xbf16>,
    %cst_78 = arith.constant 0.000000e+00 : bf16
    %73 = vector.broadcast %cst_78 : bf16 to vector<2x1x10x8xbf16>
    %c0_79 = arith.constant 0 : index
    %c9 = arith.constant 9 : index
    %c0_80 = arith.constant 0 : index
    %c0_81 = arith.constant 0 : index
    %74 = vector.load %arg7[%c0_79, %c9, %c0_80, %c0_81] : memref<2x10x10x8xbf16, #tpu.memory_space<vmem>>, vector<2x1x10x8xbf16>
    tpu.vector_store %arg7[%c0_79, %c9, %c0_80, %c0_81], %73 {strides = array<i32>} : memref<2x10x10x8xbf16, #tpu.memory_space<vmem>>, vector<2x1x10x8xbf16>,
    %cst_82 = arith.constant 0.000000e+00 : bf16
    %75 = vector.broadcast %cst_82 : bf16 to vector<2x8x1x8xbf16>
    %c0_83 = arith.constant 0 : index
    %c1_84 = arith.constant 1 : index
    %c0_85 = arith.constant 0 : index
    %c0_86 = arith.constant 0 : index
    %76 = vector.load %arg7[%c0_83, %c1_84, %c0_85, %c0_86] : memref<2x10x10x8xbf16, #tpu.memory_space<vmem>>, vector<2x8x1x8xbf16>
    tpu.vector_store %arg7[%c0_83, %c1_84, %c0_85, %c0_86], %75 {strides = array<i32>} : memref<2x10x10x8xbf16, #tpu.memory_space<vmem>>, vector<2x8x1x8xbf16>,
    %cst_87 = arith.constant 0.000000e+00 : bf16
    %77 = vector.broadcast %cst_87 : bf16 to vector<2x8x1x8xbf16>
    %c0_88 = arith.constant 0 : index
    %c1_89 = arith.constant 1 : index
    %c9_90 = arith.constant 9 : index
    %c0_91 = arith.constant 0 : index
    %78 = vector.load %arg7[%c0_88, %c1_89, %c9_90, %c0_91] : memref<2x10x10x8xbf16, #tpu.memory_space<vmem>>, vector<2x8x1x8xbf16>
    tpu.vector_store %arg7[%c0_88, %c1_89, %c9_90, %c0_91], %77 {strides = array<i32>} : memref<2x10x10x8xbf16, #tpu.memory_space<vmem>>, vector<2x8x1x8xbf16>,
    %79 = vector.shape_cast %62 : vector<128x8xf32> to vector<2x8x8x8xf32>
    %80 = arith.truncf %79 : vector<2x8x8x8xf32> to vector<2x8x8x8xbf16>
    %c0_92 = arith.constant 0 : index
    %c1_93 = arith.constant 1 : index
    %c1_94 = arith.constant 1 : index
    %c0_95 = arith.constant 0 : index
    %81 = vector.load %arg7[%c0_92, %c1_93, %c1_94, %c0_95] : memref<2x10x10x8xbf16, #tpu.memory_space<vmem>>, vector<2x8x8x8xbf16>
    tpu.vector_store %arg7[%c0_92, %c1_93, %c1_94, %c0_95], %80 {strides = array<i32>} : memref<2x10x10x8xbf16, #tpu.memory_space<vmem>>, vector<2x8x8x8xbf16>,
    %c0_96 = arith.constant 0 : index
    %c0_97 = arith.constant 0 : index
    %c0_98 = arith.constant 0 : index
    %c0_99 = arith.constant 0 : index
    %82 = vector.load %arg7[%c0_96, %c0_97, %c0_98, %c0_99] : memref<2x10x10x8xbf16, #tpu.memory_space<vmem>>, vector<2x8x8x8xbf16>
    %83 = vector.shape_cast %82 : vector<2x8x8x8xbf16> to vector<128x8xbf16>
    %c0_100 = arith.constant 0 : index
    %c0_101 = arith.constant 0 : index
    %c0_102 = arith.constant 0 : index
    %84 = vector.load %arg3[%c0_100, %c0_101, %c0_102] : memref<9x8x8xbf16, #tpu.memory_space<vmem>>, vector<1x8x8xbf16>
    %85 = vector.shape_cast %84 : vector<1x8x8xbf16> to vector<8x8xbf16>
    %cst_103 = arith.constant dense<0.000000e+00> : vector<128x8xf32>
    %86 = tpu.matmul %83, %85, %cst_103 {dimension_numbers = #tpu.dot_dimension_numbers<[1], [0], [0], [1], [0, 0, 1, 1], [], []>} : vector<128x8xbf16>, vector<8x8xbf16>, vector<128x8xf32> -> vector<128x8xf32>
    %c0_104 = arith.constant 0 : index
    %c0_105 = arith.constant 0 : index
    %c1_106 = arith.constant 1 : index
    %c0_107 = arith.constant 0 : index
    %87 = vector.load %arg7[%c0_104, %c0_105, %c1_106, %c0_107] : memref<2x10x10x8xbf16, #tpu.memory_space<vmem>>, vector<2x8x8x8xbf16>
    %88 = vector.shape_cast %87 : vector<2x8x8x8xbf16> to vector<128x8xbf16>
    %c1_108 = arith.constant 1 : index
    %c0_109 = arith.constant 0 : index
    %c0_110 = arith.constant 0 : index
    %89 = vector.load %arg3[%c1_108, %c0_109, %c0_110] : memref<9x8x8xbf16, #tpu.memory_space<vmem>>, vector<1x8x8xbf16>
    %90 = vector.shape_cast %89 : vector<1x8x8xbf16> to vector<8x8xbf16>
    %cst_111 = arith.constant dense<0.000000e+00> : vector<128x8xf32>
    %91 = tpu.matmul %88, %90, %cst_111 {dimension_numbers = #tpu.dot_dimension_numbers<[1], [0], [0], [1], [0, 0, 1, 1], [], []>} : vector<128x8xbf16>, vector<8x8xbf16>, vector<128x8xf32> -> vector<128x8xf32>
    %92 = arith.addf %86, %91 : vector<128x8xf32>
    %c0_112 = arith.constant 0 : index
    %c0_113 = arith.constant 0 : index
    %c2_114 = arith.constant 2 : index
    %c0_115 = arith.constant 0 : index
    %93 = vector.load %arg7[%c0_112, %c0_113, %c2_114, %c0_115] : memref<2x10x10x8xbf16, #tpu.memory_space<vmem>>, vector<2x8x8x8xbf16>
    %94 = vector.shape_cast %93 : vector<2x8x8x8xbf16> to vector<128x8xbf16>
    %c2_116 = arith.constant 2 : index
    %c0_117 = arith.constant 0 : index
    %c0_118 = arith.constant 0 : index
    %95 = vector.load %arg3[%c2_116, %c0_117, %c0_118] : memref<9x8x8xbf16, #tpu.memory_space<vmem>>, vector<1x8x8xbf16>
    %96 = vector.shape_cast %95 : vector<1x8x8xbf16> to vector<8x8xbf16>
    %cst_119 = arith.constant dense<0.000000e+00> : vector<128x8xf32>
    %97 = tpu.matmul %94, %96, %cst_119 {dimension_numbers = #tpu.dot_dimension_numbers<[1], [0], [0], [1], [0, 0, 1, 1], [], []>} : vector<128x8xbf16>, vector<8x8xbf16>, vector<128x8xf32> -> vector<128x8xf32>
    %98 = arith.addf %92, %97 : vector<128x8xf32>
    %c0_120 = arith.constant 0 : index
    %c1_121 = arith.constant 1 : index
    %c0_122 = arith.constant 0 : index
    %c0_123 = arith.constant 0 : index
    %99 = vector.load %arg7[%c0_120, %c1_121, %c0_122, %c0_123] : memref<2x10x10x8xbf16, #tpu.memory_space<vmem>>, vector<2x8x8x8xbf16>
    %100 = vector.shape_cast %99 : vector<2x8x8x8xbf16> to vector<128x8xbf16>
    %c3_124 = arith.constant 3 : index
    %c0_125 = arith.constant 0 : index
    %c0_126 = arith.constant 0 : index
    %101 = vector.load %arg3[%c3_124, %c0_125, %c0_126] : memref<9x8x8xbf16, #tpu.memory_space<vmem>>, vector<1x8x8xbf16>
    %102 = vector.shape_cast %101 : vector<1x8x8xbf16> to vector<8x8xbf16>
    %cst_127 = arith.constant dense<0.000000e+00> : vector<128x8xf32>
    %103 = tpu.matmul %100, %102, %cst_127 {dimension_numbers = #tpu.dot_dimension_numbers<[1], [0], [0], [1], [0, 0, 1, 1], [], []>} : vector<128x8xbf16>, vector<8x8xbf16>, vector<128x8xf32> -> vector<128x8xf32>
    %104 = arith.addf %98, %103 : vector<128x8xf32>
    %c0_128 = arith.constant 0 : index
    %c1_129 = arith.constant 1 : index
    %c1_130 = arith.constant 1 : index
    %c0_131 = arith.constant 0 : index
    %105 = vector.load %arg7[%c0_128, %c1_129, %c1_130, %c0_131] : memref<2x10x10x8xbf16, #tpu.memory_space<vmem>>, vector<2x8x8x8xbf16>
    %106 = vector.shape_cast %105 : vector<2x8x8x8xbf16> to vector<128x8xbf16>
    %c4_132 = arith.constant 4 : index
    %c0_133 = arith.constant 0 : index
    %c0_134 = arith.constant 0 : index
    %107 = vector.load %arg3[%c4_132, %c0_133, %c0_134] : memref<9x8x8xbf16, #tpu.memory_space<vmem>>, vector<1x8x8xbf16>
    %108 = vector.shape_cast %107 : vector<1x8x8xbf16> to vector<8x8xbf16>
    %cst_135 = arith.constant dense<0.000000e+00> : vector<128x8xf32>
    %109 = tpu.matmul %106, %108, %cst_135 {dimension_numbers = #tpu.dot_dimension_numbers<[1], [0], [0], [1], [0, 0, 1, 1], [], []>} : vector<128x8xbf16>, vector<8x8xbf16>, vector<128x8xf32> -> vector<128x8xf32>
    %110 = arith.addf %104, %109 : vector<128x8xf32>
    %c0_136 = arith.constant 0 : index
    %c1_137 = arith.constant 1 : index
    %c2_138 = arith.constant 2 : index
    %c0_139 = arith.constant 0 : index
    %111 = vector.load %arg7[%c0_136, %c1_137, %c2_138, %c0_139] : memref<2x10x10x8xbf16, #tpu.memory_space<vmem>>, vector<2x8x8x8xbf16>
    %112 = vector.shape_cast %111 : vector<2x8x8x8xbf16> to vector<128x8xbf16>
    %c5_140 = arith.constant 5 : index
    %c0_141 = arith.constant 0 : index
    %c0_142 = arith.constant 0 : index
    %113 = vector.load %arg3[%c5_140, %c0_141, %c0_142] : memref<9x8x8xbf16, #tpu.memory_space<vmem>>, vector<1x8x8xbf16>
    %114 = vector.shape_cast %113 : vector<1x8x8xbf16> to vector<8x8xbf16>
    %cst_143 = arith.constant dense<0.000000e+00> : vector<128x8xf32>
    %115 = tpu.matmul %112, %114, %cst_143 {dimension_numbers = #tpu.dot_dimension_numbers<[1], [0], [0], [1], [0, 0, 1, 1], [], []>} : vector<128x8xbf16>, vector<8x8xbf16>, vector<128x8xf32> -> vector<128x8xf32>
    %116 = arith.addf %110, %115 : vector<128x8xf32>
    %c0_144 = arith.constant 0 : index
    %c2_145 = arith.constant 2 : index
    %c0_146 = arith.constant 0 : index
    %c0_147 = arith.constant 0 : index
    %117 = vector.load %arg7[%c0_144, %c2_145, %c0_146, %c0_147] : memref<2x10x10x8xbf16, #tpu.memory_space<vmem>>, vector<2x8x8x8xbf16>
    %118 = vector.shape_cast %117 : vector<2x8x8x8xbf16> to vector<128x8xbf16>
    %c6_148 = arith.constant 6 : index
    %c0_149 = arith.constant 0 : index
    %c0_150 = arith.constant 0 : index
    %119 = vector.load %arg3[%c6_148, %c0_149, %c0_150] : memref<9x8x8xbf16, #tpu.memory_space<vmem>>, vector<1x8x8xbf16>
    %120 = vector.shape_cast %119 : vector<1x8x8xbf16> to vector<8x8xbf16>
    %cst_151 = arith.constant dense<0.000000e+00> : vector<128x8xf32>
    %121 = tpu.matmul %118, %120, %cst_151 {dimension_numbers = #tpu.dot_dimension_numbers<[1], [0], [0], [1], [0, 0, 1, 1], [], []>} : vector<128x8xbf16>, vector<8x8xbf16>, vector<128x8xf32> -> vector<128x8xf32>
    %122 = arith.addf %116, %121 : vector<128x8xf32>
    %c0_152 = arith.constant 0 : index
    %c2_153 = arith.constant 2 : index
    %c1_154 = arith.constant 1 : index
    %c0_155 = arith.constant 0 : index
    %123 = vector.load %arg7[%c0_152, %c2_153, %c1_154, %c0_155] : memref<2x10x10x8xbf16, #tpu.memory_space<vmem>>, vector<2x8x8x8xbf16>
    %124 = vector.shape_cast %123 : vector<2x8x8x8xbf16> to vector<128x8xbf16>
    %c7_156 = arith.constant 7 : index
    %c0_157 = arith.constant 0 : index
    %c0_158 = arith.constant 0 : index
    %125 = vector.load %arg3[%c7_156, %c0_157, %c0_158] : memref<9x8x8xbf16, #tpu.memory_space<vmem>>, vector<1x8x8xbf16>
    %126 = vector.shape_cast %125 : vector<1x8x8xbf16> to vector<8x8xbf16>
    %cst_159 = arith.constant dense<0.000000e+00> : vector<128x8xf32>
    %127 = tpu.matmul %124, %126, %cst_159 {dimension_numbers = #tpu.dot_dimension_numbers<[1], [0], [0], [1], [0, 0, 1, 1], [], []>} : vector<128x8xbf16>, vector<8x8xbf16>, vector<128x8xf32> -> vector<128x8xf32>
    %128 = arith.addf %122, %127 : vector<128x8xf32>
    %c0_160 = arith.constant 0 : index
    %c2_161 = arith.constant 2 : index
    %c2_162 = arith.constant 2 : index
    %c0_163 = arith.constant 0 : index
    %129 = vector.load %arg7[%c0_160, %c2_161, %c2_162, %c0_163] : memref<2x10x10x8xbf16, #tpu.memory_space<vmem>>, vector<2x8x8x8xbf16>
    %130 = vector.shape_cast %129 : vector<2x8x8x8xbf16> to vector<128x8xbf16>
    %c8_164 = arith.constant 8 : index
    %c0_165 = arith.constant 0 : index
    %c0_166 = arith.constant 0 : index
    %131 = vector.load %arg3[%c8_164, %c0_165, %c0_166] : memref<9x8x8xbf16, #tpu.memory_space<vmem>>, vector<1x8x8xbf16>
    %132 = vector.shape_cast %131 : vector<1x8x8xbf16> to vector<8x8xbf16>
    %cst_167 = arith.constant dense<0.000000e+00> : vector<128x8xf32>
    %133 = tpu.matmul %130, %132, %cst_167 {dimension_numbers = #tpu.dot_dimension_numbers<[1], [0], [0], [1], [0, 0, 1, 1], [], []>} : vector<128x8xbf16>, vector<8x8xbf16>, vector<128x8xf32> -> vector<128x8xf32>
    %134 = arith.addf %128, %133 : vector<128x8xf32>
    %c1_168 = arith.constant 1 : index
    %c0_169 = arith.constant 0 : index
    %135 = vector.load %arg5[%c1_168, %c0_169] : memref<3x8xf32, #tpu.memory_space<vmem>>, vector<1x8xf32>
    %136 = vector.broadcast %135 : vector<1x8xf32> to vector<128x8xf32>
    %137 = arith.addf %134, %136 : vector<128x8xf32>
    %cst_170 = arith.constant 0.000000e+00 : f32
    %138 = vector.broadcast %cst_170 : f32 to vector<128x8xf32>
    %139 = arith.cmpf oge, %137, %138 : vector<128x8xf32>
    %cst_171 = arith.constant 2.000000e-01 : f32
    %140 = vector.broadcast %cst_171 : f32 to vector<128x8xf32>
    %141 = arith.mulf %140, %137 : vector<128x8xf32>
    %142 = arith.select %139, %137, %141 : vector<128x8xi1>, vector<128x8xf32>
    %143 = arith.addf %142, %70 : vector<128x8xf32>
    %144 = vector.shape_cast %143 : vector<128x8xf32> to vector<2x64x8xf32>
    %145 = vector.extract_strided_slice %144 {offsets = [0, 0, 0], sizes = [1, 64, 8], strides = [1, 1, 1]} : vector<2x64x8xf32> to vector<1x64x8xf32>
    %146 = vector.shape_cast %145 : vector<1x64x8xf32> to vector<64x8xf32>
    %147 = tpu.transpose %146, [1, 0] : vector<64x8xf32> -> vector<8x64xf32>
    %c0_172 = arith.constant 0 : index
    %c0_173 = arith.constant 0 : index
    %c0_174 = arith.constant 0 : index
    %148 = vector.load %arg6[%c0_172, %c0_173, %c0_174] : memref<2x8x64xf32, #tpu.memory_space<vmem>>, vector<1x8x64xf32>
    %149 = vector.shape_cast %148 : vector<1x8x64xf32> to vector<8x64xf32>
    %150 = vector.shape_cast %147 : vector<8x64xf32> to vector<1x8x64xf32>
    tpu.vector_store %arg6[%c0_172, %c0_173, %c0_174], %150 {strides = array<i32>} : memref<2x8x64xf32, #tpu.memory_space<vmem>>, vector<1x8x64xf32>,
    %151 = vector.extract_strided_slice %144 {offsets = [1, 0, 0], sizes = [1, 64, 8], strides = [1, 1, 1]} : vector<2x64x8xf32> to vector<1x64x8xf32>
    %152 = vector.shape_cast %151 : vector<1x64x8xf32> to vector<64x8xf32>
    %153 = tpu.transpose %152, [1, 0] : vector<64x8xf32> -> vector<8x64xf32>
    %c1_175 = arith.constant 1 : index
    %c0_176 = arith.constant 0 : index
    %c0_177 = arith.constant 0 : index
    %154 = vector.load %arg6[%c1_175, %c0_176, %c0_177] : memref<2x8x64xf32, #tpu.memory_space<vmem>>, vector<1x8x64xf32>
    %155 = vector.shape_cast %154 : vector<1x8x64xf32> to vector<8x64xf32>
    %156 = vector.shape_cast %153 : vector<8x64xf32> to vector<1x8x64xf32>
    tpu.vector_store %arg6[%c1_175, %c0_176, %c0_177], %156 {strides = array<i32>} : memref<2x8x64xf32, #tpu.memory_space<vmem>>, vector<1x8x64xf32>,
    return
  }
  func.func @transform_0(%arg0: i32) -> (i32, i32, i32, i32) {
    %c0_i32 = arith.constant 0 : i32
    %c0_i32_0 = arith.constant 0 : i32
    %c0_i32_1 = arith.constant 0 : i32
    %c0_i32_2 = arith.constant 0 : i32
    return %arg0, %c0_i32, %c0_i32_0, %c0_i32_1 : i32, i32, i32, i32
  }
  func.func @transform_1(%arg0: i32) -> (i32, i32, i32) {
    %c0_i32 = arith.constant 0 : i32
    %c0_i32_0 = arith.constant 0 : i32
    %c0_i32_1 = arith.constant 0 : i32
    %c0_i32_2 = arith.constant 0 : i32
    return %c0_i32, %c0_i32_0, %c0_i32_1 : i32, i32, i32
  }
  func.func @transform_2(%arg0: i32) -> (i32, i32, i32) {
    %c0_i32 = arith.constant 0 : i32
    %c0_i32_0 = arith.constant 0 : i32
    %c0_i32_1 = arith.constant 0 : i32
    %c0_i32_2 = arith.constant 0 : i32
    return %c0_i32, %c0_i32_0, %c0_i32_1 : i32, i32, i32
  }
  func.func @transform_3(%arg0: i32) -> (i32, i32) {
    %c0_i32 = arith.constant 0 : i32
    %c0_i32_0 = arith.constant 0 : i32
    %c0_i32_1 = arith.constant 0 : i32
    return %c0_i32, %c0_i32_0 : i32, i32
  }
  func.func @transform_4(%arg0: i32) -> (i32, i32) {
    %c0_i32 = arith.constant 0 : i32
    %c0_i32_0 = arith.constant 0 : i32
    %c0_i32_1 = arith.constant 0 : i32
    return %c0_i32, %c0_i32_0 : i32, i32
  }
  func.func @transform_5(%arg0: i32) -> (i32, i32, i32) {
    %c0_i32 = arith.constant 0 : i32
    %c0_i32_0 = arith.constant 0 : i32
    %c0_i32_1 = arith.constant 0 : i32
    return %arg0, %c0_i32, %c0_i32_0 : i32, i32, i32
  }
}

</mosaic_0001>

<llo_original>
// kernel: tpu_custom_call.1
$region0: #{tpu_custom_call.1}
  #allocation0 [shape = 'u32[]', space=smem, size = 0x4, offset = 0x4, fixed_abs, tag = 'smem constant byte address 0x4 - core index']
  #allocation1 [shape = 'u32[144,128]{1,0:T(1,128)}', space=vmem, size = 0x12000, scoped, tag = 'internal scratch']
  #allocation2 [shape = 'bf16[2,10,10,8]{3,2,1,0:T(8,128)(2,1)}', space=vmem, size = 0x14000, scoped, tag = 'scratch operand']
  %s0 = inlined_call_operand.hbm [shape: bf16[2,10,10,16], index: 0, kind: input, shape index: {}]
  %s1 = inlined_call_operand.hbm [shape: bf16[9,16,8], index: 1, kind: input, shape index: {}]
  %s2 = inlined_call_operand.hbm [shape: bf16[9,8,8], index: 2, kind: input, shape index: {}]
  %s3 = inlined_call_operand.hbm [shape: bf16[16,8], index: 3, kind: input, shape index: {}]
  %s4 = inlined_call_operand.hbm [shape: f32[3,8], index: 4, kind: input, shape index: {}]
  %s5 = inlined_call_operand.hbm [shape: f32[2,8,64], index: 5, kind: output, shape index: {}]
  %s6 = sld [smem:[#allocation0]]
  $region50: #{tpu_custom_call.1} parent=0
    _
  %s8 = ssub.s32 1, %s6
  %s9 = scalar_select 0, %s8, %s6
  $region1: #{tpu_custom_call.1} parent=0
    #allocation3 [shape = 'u8[81920]{0}', space=vmem, size = 0x14000, scoped, tag = 'input window, operand 0, single buffered']
    #allocation4 [shape = 's32[1]{0}', space=sflag, size = 0x4, scoped, tag = 'scoped memory for tpu_custom_call.1']
    #allocation5 [shape = 's32[1]{0}', space=sflag, size = 0x4, scoped, tag = 'scoped memory for tpu_custom_call.1']
    #allocation6 [shape = 'u8[36864]{0}', space=vmem, size = 0x9000, scoped, tag = 'input window, operand 1, single buffered']
    #allocation7 [shape = 's32[1]{0}', space=sflag, size = 0x4, scoped, tag = 'scoped memory for tpu_custom_call.1']
    #allocation8 [shape = 'u8[18432]{0}', space=vmem, size = 0x4800, scoped, tag = 'input window, operand 2, single buffered']
    #allocation9 [shape = 'u8[4096]{0}', space=vmem, size = 0x1000, scoped, tag = 'input window, operand 3, single buffered']
    #allocation10 [shape = 's32[1]{0}', space=sflag, size = 0x4, scoped, tag = 'scoped memory for tpu_custom_call.1']
    #allocation11 [shape = 'u8[2048]{0}', space=vmem, size = 0x800, scoped, tag = 'input window, operand 4, single buffered']
    #allocation12 [shape = 'u8[8192]{0}', space=vmem, size = 0x2000, scoped, tag = 'output window, operand 0, single buffered']
    %10 = vsyncpa [#allocation4], 0
    %11 = vsyncpa [#allocation7], 0
    %12 = vsyncpa [#allocation10], 0
    %13 = vsyncpa [#allocation5], 0
    // Predicated region
    $region2: #{tpu_custom_call.1} parent=1 // pred_check
      _
    $region3: #{tpu_custom_call.1} parent=1 // pred_check_branch
      %15 = sbr.rel (0) target = $region5
    $region4: #{tpu_custom_call.1} parent=1 // pred_region
      %s17 = ssub.s32 2560, 2560
      %18 = vsyncadd [#allocation4], %s17
      %s19 = sshll.u32 [#allocation3], 4
      %s20 = int_to_ptr.vmem [resolvable:$true] %s19
      %25 = dma.hbm_to_vmem [thread:$0]  %s0, 2560, %s20, [#allocation4], 64, 64, 4
    $region5: #{tpu_custom_call.1} parent=1 // pred_fallthru
      _
    // Predicated region
    $region6: #{tpu_custom_call.1} parent=1 // pred_check
      _
    $region7: #{tpu_custom_call.1} parent=1 // pred_check_branch
      %27 = sbr.rel (0) target = $region9
    $region8: #{tpu_custom_call.1} parent=1 // pred_region
      %s29 = ssub.s32 1152, 1152
      %30 = vsyncadd [#allocation7], %s29
      %s31 = sshll.u32 [#allocation6], 4
      %s32 = int_to_ptr.vmem [resolvable:$true] %s31
      %37 = dma.hbm_to_vmem [thread:$0]  %s1, 1152, %s32, [#allocation7], 64, 64, 4
    $region9: #{tpu_custom_call.1} parent=1 // pred_fallthru
      _
    // Predicated region
    $region10: #{tpu_custom_call.1} parent=1 // pred_check
      _
    $region11: #{tpu_custom_call.1} parent=1 // pred_check_branch
      %39 = sbr.rel (0) target = $region13
    $region12: #{tpu_custom_call.1} parent=1 // pred_region
      %s41 = ssub.s32 576, 576
      %42 = vsyncadd [#allocation7], %s41
      %s43 = sshll.u32 [#allocation8], 4
      %s44 = int_to_ptr.vmem [resolvable:$true] %s43
      %49 = dma.hbm_to_vmem [thread:$0]  %s2, 576, %s44, [#allocation7], 64, 64, 4
    $region13: #{tpu_custom_call.1} parent=1 // pred_fallthru
      _
    // Predicated region
    $region14: #{tpu_custom_call.1} parent=1 // pred_check
      _
    $region15: #{tpu_custom_call.1} parent=1 // pred_check_branch
      %51 = sbr.rel (0) target = $region17
    $region16: #{tpu_custom_call.1} parent=1 // pred_region
      %s53 = ssub.s32 128, 128
      %54 = vsyncadd [#allocation10], %s53
      %s55 = sshll.u32 [#allocation9], 4
      %s56 = int_to_ptr.vmem [resolvable:$true] %s55
      %61 = dma.hbm_to_vmem [thread:$0]  %s3, 128, %s56, [#allocation10], 64, 64, 4
    $region17: #{tpu_custom_call.1} parent=1 // pred_fallthru
      _
    // Predicated region
    $region18: #{tpu_custom_call.1} parent=1 // pred_check
      _
    $region19: #{tpu_custom_call.1} parent=1 // pred_check_branch
      %63 = sbr.rel (0) target = $region21
    $region20: #{tpu_custom_call.1} parent=1 // pred_region
      %s65 = ssub.s32 64, 64
      %66 = vsyncadd [#allocation10], %s65
      %s68 = sshll.u32 [#allocation11], 4
      %s69 = int_to_ptr.vmem [resolvable:$true] %s68
      %71 = dma.hbm_to_vmem [thread:$0]  %s4, 64, %s69, [#allocation10]
    $region21: #{tpu_custom_call.1} parent=1 // pred_fallthru
      _
    // Predicated region
    $region22: #{tpu_custom_call.1} parent=1 // pred_check
      _
    $region23: #{tpu_custom_call.1} parent=1 // pred_check_branch
      %73 = sbr.rel (0) target = $region25
    $region24: #{tpu_custom_call.1} parent=1 // pred_region
      %74 = dma.done [#allocation4], 2560
    $region25: #{tpu_custom_call.1} parent=1 // pred_fallthru
      _
    // Predicated region
    $region26: #{tpu_custom_call.1} parent=1 // pred_check
      _
    $region27: #{tpu_custom_call.1} parent=1 // pred_check_branch
      %76 = sbr.rel (0) target = $region29
    $region28: #{tpu_custom_call.1} parent=1 // pred_region
      %77 = dma.done [#allocation7], 1152
    $region29: #{tpu_custom_call.1} parent=1 // pred_fallthru
      _
    // Predicated region
    $region30: #{tpu_custom_call.1} parent=1 // pred_check
      _
    $region31: #{tpu_custom_call.1} parent=1 // pred_check_branch
      %79 = sbr.rel (0) target = $region33
    $region32: #{tpu_custom_call.1} parent=1 // pred_region
      %80 = dma.done [#allocation7], 576
    $region33: #{tpu_custom_call.1} parent=1 // pred_fallthru
      _
    // Predicated region
    $region34: #{tpu_custom_call.1} parent=1 // pred_check
      _
    $region35: #{tpu_custom_call.1} parent=1 // pred_check_branch
      %82 = sbr.rel (0) target = $region37
    $region36: #{tpu_custom_call.1} parent=1 // pred_region
      %83 = dma.done [#allocation10], 128
    $region37: #{tpu_custom_call.1} parent=1 // pred_fallthru
      _
    // Predicated region
    $region38: #{tpu_custom_call.1} parent=1 // pred_check
      _
    $region39: #{tpu_custom_call.1} parent=1 // pred_check_branch
      %85 = sbr.rel (0) target = $region41
    $region40: #{tpu_custom_call.1} parent=1 // pred_region
      %86 = dma.done [#allocation10], 64
    $region41: #{tpu_custom_call.1} parent=1 // pred_fallthru
      _
    %v88 = vld [vmem:[#allocation3] sm:$0xf]
    %v89 = vld [vmem:[#allocation3 + $0x8] sm:$0xf]
    %v90 = vld [vmem:[#allocation3 + $0x10] sm:$0xf]
    %v91 = vld [vmem:[#allocation3 + $0x18] sm:$0xf]
    %v92 = vld [vmem:[#allocation3 + $0x20] sm:$0xf]
    %v93 = vld [vmem:[#allocation3 + $0x28] sm:$0xf]
    %v94 = vld [vmem:[#allocation3 + $0x30] sm:$0xf]
    %v95 = vld [vmem:[#allocation3 + $0x38] sm:$0xf]
    %v96 = vld [vmem:[#allocation3 + $0x50] sm:$0xf]
    %v97 = vld [vmem:[#allocation3 + $0x58] sm:$0xf]
    %v98 = vld [vmem:[#allocation3 + $0x60] sm:$0xf]
    %v99 = vld [vmem:[#allocation3 + $0x68] sm:$0xf]
    %v100 = vld [vmem:[#allocation3 + $0x70] sm:$0xf]
    %v101 = vld [vmem:[#allocation3 + $0x78] sm:$0xf]
    %v102 = vld [vmem:[#allocation3 + $0x80] sm:$0xf]
    %v103 = vld [vmem:[#allocation3 + $0x88] sm:$0xf]
    %v104 = vld [vmem:[#allocation6] sm:$0xf]
    %v105 = vld [vmem:[#allocation6 + $0x4] sm:$0xf]
    %v106 = vld [vmem:[#allocation3 + $0x4] sm:$0x1]
    %v107 = vld [vmem:[#allocation3 + $0xc] sm:$0x1]
    %v108 = vld [vmem:[#allocation3 + $0x14] sm:$0x1]
    %v109 = vld [vmem:[#allocation3 + $0x1c] sm:$0x1]
    %v110 = vld [vmem:[#allocation3 + $0x24] sm:$0x1]
    %v111 = vld [vmem:[#allocation3 + $0x2c] sm:$0x1]
    %v112 = vld [vmem:[#allocation3 + $0x34] sm:$0x1]
    %v113 = vld [vmem:[#allocation3 + $0x3c] sm:$0x1]
    %v114 = vld [vmem:[#allocation3 + $0x54] sm:$0x1]
    %v115 = vld [vmem:[#allocation3 + $0x5c] sm:$0x1]
    %v116 = vld [vmem:[#allocation3 + $0x64] sm:$0x1]
    %v117 = vld [vmem:[#allocation3 + $0x6c] sm:$0x1]
    %v118 = vld [vmem:[#allocation3 + $0x74] sm:$0x1]
    %v119 = vld [vmem:[#allocation3 + $0x7c] sm:$0x1]
    %v120 = vld [vmem:[#allocation3 + $0x84] sm:$0x1]
    %v121 = vld [vmem:[#allocation3 + $0x8c] sm:$0x1]
    %vm122 = vsmask.f32 3328
    %vm123 = vsmask.f32 7440
    %vm124 = vmor %vm122, %vm123
    %v126 = vshrl.u32 %v88, 16
    %v128 = vrot.slane %v126, 4
    %v129 = vshll.u32 %v88, 16
    %v131 = vrot.slane %v129, 5
    %v132 = vor.u32 %v128, %v131
    %v133 = vrot.slane %v132, 4
    %v135 = vshll.u32 %v106, 16
    %v137 = vrot.slane %v135, 5
    %v138 = vsel %vm124, %v133, %v137
    %v140 = vshrl.u32 %v89, 16
    %v142 = vrot.slane %v140, 4
    %v143 = vshll.u32 %v89, 16
    %v145 = vrot.slane %v143, 5
    %v146 = vor.u32 %v142, %v145
    %v147 = vrot.slane %v146, 4
    %v149 = vshll.u32 %v107, 16
    %v151 = vrot.slane %v149, 5
    %v152 = vsel %vm124, %v147, %v151
    %v154 = vshrl.u32 %v90, 16
    %v156 = vrot.slane %v154, 4
    %v157 = vshll.u32 %v90, 16
    %v159 = vrot.slane %v157, 5
    %v160 = vor.u32 %v156, %v159
    %v161 = vrot.slane %v160, 4
    %v163 = vshll.u32 %v108, 16
    %v165 = vrot.slane %v163, 5
    %v166 = vsel %vm124, %v161, %v165
    %v168 = vshrl.u32 %v91, 16
    %v170 = vrot.slane %v168, 4
    %v171 = vshll.u32 %v91, 16
    %v173 = vrot.slane %v171, 5
    %v174 = vor.u32 %v170, %v173
    %v175 = vrot.slane %v174, 4
    %v177 = vshll.u32 %v109, 16
    %v179 = vrot.slane %v177, 5
    %v180 = vsel %vm124, %v175, %v179
    %v182 = vshrl.u32 %v92, 16
    %v184 = vrot.slane %v182, 4
    %v185 = vshll.u32 %v92, 16
    %v187 = vrot.slane %v185, 5
    %v188 = vor.u32 %v184, %v187
    %v189 = vrot.slane %v188, 4
    %v191 = vshll.u32 %v110, 16
    %v193 = vrot.slane %v191, 5
    %v194 = vsel %vm124, %v189, %v193
    %v196 = vshrl.u32 %v93, 16
    %v198 = vrot.slane %v196, 4
    %v199 = vshll.u32 %v93, 16
    %v201 = vrot.slane %v199, 5
    %v202 = vor.u32 %v198, %v201
    %v203 = vrot.slane %v202, 4
    %v205 = vshll.u32 %v111, 16
    %v207 = vrot.slane %v205, 5
    %v208 = vsel %vm124, %v203, %v207
    %v210 = vshrl.u32 %v94, 16
    %v212 = vrot.slane %v210, 4
    %v213 = vshll.u32 %v94, 16
    %v215 = vrot.slane %v213, 5
    %v216 = vor.u32 %v212, %v215
    %v217 = vrot.slane %v216, 4
    %v219 = vshll.u32 %v112, 16
    %v221 = vrot.slane %v219, 5
    %v222 = vsel %vm124, %v217, %v221
    %v224 = vshrl.u32 %v95, 16
    %v226 = vrot.slane %v224, 4
    %v227 = vshll.u32 %v95, 16
    %v229 = vrot.slane %v227, 5
    %v230 = vor.u32 %v226, %v229
    %v231 = vrot.slane %v230, 4
    %v233 = vshll.u32 %v113, 16
    %v235 = vrot.slane %v233, 5
    %v236 = vsel %vm124, %v231, %v235
    %v238 = vshrl.u32 %v96, 16
    %v240 = vrot.slane %v238, 4
    %v241 = vshll.u32 %v96, 16
    %v243 = vrot.slane %v241, 5
    %v244 = vor.u32 %v240, %v243
    %v245 = vrot.slane %v244, 4
    %v247 = vshll.u32 %v114, 16
    %v249 = vrot.slane %v247, 5
    %v250 = vsel %vm124, %v245, %v249
    %v252 = vshrl.u32 %v97, 16
    %v254 = vrot.slane %v252, 4
    %v255 = vshll.u32 %v97, 16
    %v257 = vrot.slane %v255, 5
    %v258 = vor.u32 %v254, %v257
    %v259 = vrot.slane %v258, 4
    %v261 = vshll.u32 %v115, 16
    %v263 = vrot.slane %v261, 5
    %v264 = vsel %vm124, %v259, %v263
    %v266 = vshrl.u32 %v98, 16
    %v268 = vrot.slane %v266, 4
    %v269 = vshll.u32 %v98, 16
    %v271 = vrot.slane %v269, 5
    %v272 = vor.u32 %v268, %v271
    %v273 = vrot.slane %v272, 4
    %v275 = vshll.u32 %v116, 16
    %v277 = vrot.slane %v275, 5
    %v278 = vsel %vm124, %v273, %v277
    %v280 = vshrl.u32 %v99, 16
    %v282 = vrot.slane %v280, 4
    %v283 = vshll.u32 %v99, 16
    %v285 = vrot.slane %v283, 5
    %v286 = vor.u32 %v282, %v285
    %v287 = vrot.slane %v286, 4
    %v289 = vshll.u32 %v117, 16
    %v291 = vrot.slane %v289, 5
    %v292 = vsel %vm124, %v287, %v291
    %v294 = vshrl.u32 %v100, 16
    %v296 = vrot.slane %v294, 4
    %v297 = vshll.u32 %v100, 16
    %v299 = vrot.slane %v297, 5
    %v300 = vor.u32 %v296, %v299
    %v301 = vrot.slane %v300, 4
    %v303 = vshll.u32 %v118, 16
    %v305 = vrot.slane %v303, 5
    %v306 = vsel %vm124, %v301, %v305
    %v308 = vshrl.u32 %v101, 16
    %v310 = vrot.slane %v308, 4
    %v311 = vshll.u32 %v101, 16
    %v313 = vrot.slane %v311, 5
    %v314 = vor.u32 %v310, %v313
    %v315 = vrot.slane %v314, 4
    %v317 = vshll.u32 %v119, 16
    %v319 = vrot.slane %v317, 5
    %v320 = vsel %vm124, %v315, %v319
    %v322 = vshrl.u32 %v102, 16
    %v324 = vrot.slane %v322, 4
    %v325 = vshll.u32 %v102, 16
    %v327 = vrot.slane %v325, 5
    %v328 = vor.u32 %v324, %v327
    %v329 = vrot.slane %v328, 4
    %v331 = vshll.u32 %v120, 16
    %v333 = vrot.slane %v331, 5
    %v334 = vsel %vm124, %v329, %v333
    %v336 = vshrl.u32 %v103, 16
    %v338 = vrot.slane %v336, 4
    %v339 = vshll.u32 %v103, 16
    %v341 = vrot.slane %v339, 5
    %v342 = vor.u32 %v338, %v341
    %v343 = vrot.slane %v342, 4
    %v345 = vshll.u32 %v121, 16
    %v347 = vrot.slane %v345, 5
    %v348 = vsel %vm124, %v343, %v347
    %s349 = scalar_lea.vmem [#allocation6], 8
    %v350 = vld [vmem:[%s349] sm:$0xf]
    %v351 = vld [vmem:[%s349 + $0x4] sm:$0xf]
    %v352 = vunpack.c.l.b16 %v138
    %v353 = vunpack.c.l.b16 %v152
    %v354 = vunpack.c.l.b16 %v166
    %v355 = vunpack.c.l.b16 %v180
    %v356 = vunpack.c.l.b16 %v194
    %v357 = vunpack.c.l.b16 %v208
    %v358 = vunpack.c.l.b16 %v222
    %v359 = vunpack.c.l.b16 %v236
    %v360 = vunpack.c.l.b16 %v250
    %v361 = vunpack.c.l.b16 %v264
    %v362 = vunpack.c.l.b16 %v278
    %v363 = vunpack.c.l.b16 %v292
    %v364 = vunpack.c.l.b16 %v306
    %v365 = vunpack.c.l.b16 %v320
    %v366 = vunpack.c.l.b16 %v334
    %v367 = vunpack.c.l.b16 %v348
    %v368 = vpack.c.b16 %v353, %v352
    %v369 = vpack.c.b16 %v355, %v354
    %v370 = vpack.c.b16 %v357, %v356
    %v371 = vpack.c.b16 %v359, %v358
    %v372 = vpack.c.b16 %v361, %v360
    %v373 = vpack.c.b16 %v363, %v362
    %v374 = vpack.c.b16 %v365, %v364
    %v375 = vpack.c.b16 %v367, %v366
    %v378 = vunpack.c.l.b16 %v350
    %v379 = vunpack.c.l.b16 %v351
    %v380 = vpack.c.b16 %v379, %v378
    %vm382 = vcmask 130048
    %v384 = vsel %vm382, %v368, 0
    %v387 = vsel %vm382, %v369, 0
    %v390 = vsel %vm382, %v370, 0
    %v393 = vsel %vm382, %v371, 0
    %v396 = vsel %vm382, %v372, 0
    %v399 = vsel %vm382, %v373, 0
    %v402 = vsel %vm382, %v374, 0
    %v405 = vsel %vm382, %v375, 0
    %407 = vmatprep.subr.bf16.mxu0 0
    %408 = vmatpush1.bf16.msra.mxu0 %v380
    %409 = vmatprep.subr.bf16.mxu0 0
    %410 = vmatpush1.bf16.msra.mxu0 0
    %411 = vmatprep.subr.bf16.mxu0 0
    %412 = vmatpush1.bf16.msra.mxu0 0
    %413 = vmatprep.subr.bf16.mxu0 0
    %414 = vmatpush1.bf16.msra.mxu0 0
    %415 = vmatprep.subr.bf16.mxu0 0
    %416 = vmatpush1.bf16.msra.mxu0 0
    %417 = vmatprep.subr.bf16.mxu0 0
    %418 = vmatpush1.bf16.msra.mxu0 0
    %419 = vmatprep.subr.bf16.mxu0 0
    %420 = vmatpush1.bf16.msra.mxu0 0
    %421 = vmatprep.subr.bf16.mxu0 0
    %422 = vmatpush1.bf16.msra.mxu0 0
    %423 = vmatprep.subr.bf16.mxu0 0
    %424 = vmatpush1.bf16.msra.mxu0 0
    %425 = vmatprep.subr.bf16.mxu0 0
    %426 = vmatpush1.bf16.msra.mxu0 0
    %427 = vmatprep.subr.bf16.mxu0 0
    %428 = vmatpush1.bf16.msra.mxu0 0
    %429 = vmatprep.subr.bf16.mxu0 0
    %430 = vmatpush1.bf16.msra.mxu0 0
    %431 = vmatprep.subr.bf16.mxu0 0
    %432 = vmatpush1.bf16.msra.mxu0 0
    %433 = vmatprep.subr.bf16.mxu0 0
    %434 = vmatpush1.bf16.msra.mxu0 0
    %435 = vmatprep.subr.bf16.mxu0 0
    %436 = vmatpush1.bf16.msra.mxu0 0
    %437 = vmatprep.subr.bf16.mxu0 0
    %438 = vmatpush1.bf16.msra.mxu0 0
    %439 = vmatprep.mubr.bf16.mxu0 0
    %440 = vmatmul.mubr.bf16.gmra.mrb[0].mxu0 %v384
    %v441 = vpop.f32.mrb[0].mxu0
    %v442 = vadd.f32 0.0, %v441
    %v443 = vpop.f32.mrb[0].mxu0
    %v444 = vpop.f32.mrb[0].mxu0
    %v445 = vadd.f32 0.0, %v444
    %v446 = vpop.f32.mrb[0].mxu0
    %447 = vmatprep.mubr.bf16.mxu0 0
    %448 = vmatmul.mubr.bf16.gmra.mrb[0].mxu0 %v387
    %v449 = vpop.f32.mrb[0].mxu0
    %v450 = vadd.f32 0.0, %v449
    %v451 = vpop.f32.mrb[0].mxu0
    %v452 = vpop.f32.mrb[0].mxu0
    %v453 = vadd.f32 0.0, %v452
    %v454 = vpop.f32.mrb[0].mxu0
    %455 = vmatprep.mubr.bf16.mxu0 0
    %456 = vmatmul.mubr.bf16.gmra.mrb[0].mxu0 %v390
    %v457 = vpop.f32.mrb[0].mxu0
    %v458 = vadd.f32 0.0, %v457
    %v459 = vpop.f32.mrb[0].mxu0
    %v460 = vpop.f32.mrb[0].mxu0
    %v461 = vadd.f32 0.0, %v460
    %v462 = vpop.f32.mrb[0].mxu0
    %463 = vmatprep.mubr.bf16.mxu0 0
    %464 = vmatmul.mubr.bf16.gmra.mrb[0].mxu0 %v393
    %v465 = vpop.f32.mrb[0].mxu0
    %v466 = vadd.f32 0.0, %v465
    %v467 = vpop.f32.mrb[0].mxu0
    %v468 = vpop.f32.mrb[0].mxu0
    %v469 = vadd.f32 0.0, %v468
    %v470 = vpop.f32.mrb[0].mxu0
    %471 = vmatprep.mubr.bf16.mxu0 0
    %472 = vmatmul.mubr.bf16.gmra.mrb[0].mxu0 %v396
    %v473 = vpop.f32.mrb[0].mxu0
    %v474 = vadd.f32 0.0, %v473
    %v475 = vpop.f32.mrb[0].mxu0
    %v476 = vpop.f32.mrb[0].mxu0
    %v477 = vadd.f32 0.0, %v476
    %v478 = vpop.f32.mrb[0].mxu0
    %479 = vmatprep.mubr.bf16.mxu0 0
    %480 = vmatmul.mubr.bf16.gmra.mrb[0].mxu0 %v399
    %v481 = vpop.f32.mrb[0].mxu0
    %v482 = vadd.f32 0.0, %v481
    %v483 = vpop.f32.mrb[0].mxu0
    %v484 = vpop.f32.mrb[0].mxu0
    %v485 = vadd.f32 0.0, %v484
    %v486 = vpop.f32.mrb[0].mxu0
    %487 = vmatprep.mubr.bf16.mxu0 0
    %488 = vmatmul.mubr.bf16.gmra.mrb[0].mxu0 %v402
    %v489 = vpop.f32.mrb[0].mxu0
    %v490 = vadd.f32 0.0, %v489
    %v491 = vpop.f32.mrb[0].mxu0
    %v492 = vpop.f32.mrb[0].mxu0
    %v493 = vadd.f32 0.0, %v492
    %v494 = vpop.f32.mrb[0].mxu0
    %495 = vmatprep.mubr.bf16.mxu0 0
    %496 = vmatmul.mubr.bf16.gmra.mrb[0].mxu0 %v405
    %v497 = vpop.f32.mrb[0].mxu0
    %v498 = vadd.f32 0.0, %v497
    %v499 = vpop.f32.mrb[0].mxu0
    %v500 = vpop.f32.mrb[0].mxu0
    %v501 = vadd.f32 0.0, %v500
    %v502 = vpop.f32.mrb[0].mxu0
    %503 = vdwg.mxu0
    %v520 = vunpack.c.l.b16 %v88
    %v521 = vunpack.c.l.b16 %v89
    %v522 = vunpack.c.l.b16 %v90
    %v523 = vunpack.c.l.b16 %v91
    %v524 = vunpack.c.l.b16 %v92
    %v525 = vunpack.c.l.b16 %v93
    %v526 = vunpack.c.l.b16 %v94
    %v527 = vunpack.c.l.b16 %v95
    %v528 = vunpack.c.l.b16 %v96
    %v529 = vunpack.c.l.b16 %v97
    %v530 = vunpack.c.l.b16 %v98
    %v531 = vunpack.c.l.b16 %v99
    %v532 = vunpack.c.l.b16 %v100
    %v533 = vunpack.c.l.b16 %v101
    %v534 = vunpack.c.l.b16 %v102
    %v535 = vunpack.c.l.b16 %v103
    %v536 = vpack.c.b16 %v521, %v520
    %v537 = vpack.c.b16 %v523, %v522
    %v538 = vpack.c.b16 %v525, %v524
    %v539 = vpack.c.b16 %v527, %v526
    %v540 = vpack.c.b16 %v529, %v528
    %v541 = vpack.c.b16 %v531, %v530
    %v542 = vpack.c.b16 %v533, %v532
    %v543 = vpack.c.b16 %v535, %v534
    %v546 = vunpack.c.l.b16 %v104
    %v547 = vunpack.c.l.b16 %v105
    %v548 = vpack.c.b16 %v547, %v546
    %v551 = vsel %vm382, %v536, 0
    %v554 = vsel %vm382, %v537, 0
    %v557 = vsel %vm382, %v538, 0
    %v560 = vsel %vm382, %v539, 0
    %v563 = vsel %vm382, %v540, 0
    %v566 = vsel %vm382, %v541, 0
    %v569 = vsel %vm382, %v542, 0
    %v572 = vsel %vm382, %v543, 0
    %574 = vmatprep.subr.bf16.mxu0 0
    %575 = vmatpush1.bf16.msra.mxu0 %v548
    %576 = vmatprep.subr.bf16.mxu0 0
    %577 = vmatpush1.bf16.msra.mxu0 0
    %578 = vmatprep.subr.bf16.mxu0 0
    %579 = vmatpush1.bf16.msra.mxu0 0
    %580 = vmatprep.subr.bf16.mxu0 0
    %581 = vmatpush1.bf16.msra.mxu0 0
    %582 = vmatprep.subr.bf16.mxu0 0
    %583 = vmatpush1.bf16.msra.mxu0 0
    %584 = vmatprep.subr.bf16.mxu0 0
    %585 = vmatpush1.bf16.msra.mxu0 0
    %586 = vmatprep.subr.bf16.mxu0 0
    %587 = vmatpush1.bf16.msra.mxu0 0
    %588 = vmatprep.subr.bf16.mxu0 0
    %589 = vmatpush1.bf16.msra.mxu0 0
    %590 = vmatprep.subr.bf16.mxu0 0
    %591 = vmatpush1.bf16.msra.mxu0 0
    %592 = vmatprep.subr.bf16.mxu0 0
    %593 = vmatpush1.bf16.msra.mxu0 0
    %594 = vmatprep.subr.bf16.mxu0 0
    %595 = vmatpush1.bf16.msra.mxu0 0
    %596 = vmatprep.subr.bf16.mxu0 0
    %597 = vmatpush1.bf16.msra.mxu0 0
    %598 = vmatprep.subr.bf16.mxu0 0
    %599 = vmatpush1.bf16.msra.mxu0 0
    %600 = vmatprep.subr.bf16.mxu0 0
    %601 = vmatpush1.bf16.msra.mxu0 0
    %602 = vmatprep.subr.bf16.mxu0 0
    %603 = vmatpush1.bf16.msra.mxu0 0
    %604 = vmatprep.subr.bf16.mxu0 0
    %605 = vmatpush1.bf16.msra.mxu0 0
    %606 = vmatprep.mubr.bf16.mxu0 0
    %607 = vmatmul.mubr.bf16.gmra.mrb[0].mxu0 %v551
    %v608 = vpop.f32.mrb[0].mxu0
    %v609 = vadd.f32 %v442, %v608
    %v610 = vpop.f32.mrb[0].mxu0
    %v611 = vpop.f32.mrb[0].mxu0
    %v612 = vadd.f32 %v445, %v611
    %v613 = vpop.f32.mrb[0].mxu0
    %614 = vmatprep.mubr.bf16.mxu0 0
    %615 = vmatmul.mubr.bf16.gmra.mrb[0].mxu0 %v554
    %v616 = vpop.f32.mrb[0].mxu0
    %v617 = vadd.f32 %v450, %v616
    %v618 = vpop.f32.mrb[0].mxu0
    %v619 = vpop.f32.mrb[0].mxu0
    %v620 = vadd.f32 %v453, %v619
    %v621 = vpop.f32.mrb[0].mxu0
    %622 = vmatprep.mubr.bf16.mxu0 0
    %623 = vmatmul.mubr.bf16.gmra.mrb[0].mxu0 %v557
    %v624 = vpop.f32.mrb[0].mxu0
    %v625 = vadd.f32 %v458, %v624
    %v626 = vpop.f32.mrb[0].mxu0
    %v627 = vpop.f32.mrb[0].mxu0
    %v628 = vadd.f32 %v461, %v627
    %v629 = vpop.f32.mrb[0].mxu0
    %630 = vmatprep.mubr.bf16.mxu0 0
    %631 = vmatmul.mubr.bf16.gmra.mrb[0].mxu0 %v560
    %v632 = vpop.f32.mrb[0].mxu0
    %v633 = vadd.f32 %v466, %v632
    %v634 = vpop.f32.mrb[0].mxu0
    %v635 = vpop.f32.mrb[0].mxu0
    %v636 = vadd.f32 %v469, %v635
    %v637 = vpop.f32.mrb[0].mxu0
    %638 = vmatprep.mubr.bf16.mxu0 0
    %639 = vmatmul.mubr.bf16.gmra.mrb[0].mxu0 %v563
    %v640 = vpop.f32.mrb[0].mxu0
    %v641 = vadd.f32 %v474, %v640
    %v642 = vpop.f32.mrb[0].mxu0
    %v643 = vpop.f32.mrb[0].mxu0
    %v644 = vadd.f32 %v477, %v643
    %v645 = vpop.f32.mrb[0].mxu0
    %646 = vmatprep.mubr.bf16.mxu0 0
    %647 = vmatmul.mubr.bf16.gmra.mrb[0].mxu0 %v566
    %v648 = vpop.f32.mrb[0].mxu0
    %v649 = vadd.f32 %v482, %v648
    %v650 = vpop.f32.mrb[0].mxu0
    %v651 = vpop.f32.mrb[0].mxu0
    %v652 = vadd.f32 %v485, %v651
    %v653 = vpop.f32.mrb[0].mxu0
    %654 = vmatprep.mubr.bf16.mxu0 0
    %655 = vmatmul.mubr.bf16.gmra.mrb[0].mxu0 %v569
    %v656 = vpop.f32.mrb[0].mxu0
    %v657 = vadd.f32 %v490, %v656
    %v658 = vpop.f32.mrb[0].mxu0
    %v659 = vpop.f32.mrb[0].mxu0
    %v660 = vadd.f32 %v493, %v659
    %v661 = vpop.f32.mrb[0].mxu0
    %662 = vmatprep.mubr.bf16.mxu0 0
    %663 = vmatmul.mubr.bf16.gmra.mrb[0].mxu0 %v572
    %v664 = vpop.f32.mrb[0].mxu0
    %v665 = vadd.f32 %v498, %v664
    %v666 = vpop.f32.mrb[0].mxu0
    %v667 = vpop.f32.mrb[0].mxu0
    %v668 = vadd.f32 %v501, %v667
    %v669 = vpop.f32.mrb[0].mxu0
    %670 = vdwg.mxu0
    %v671 = vld [vmem:[#allocation3] sm:$0xe]
    %v672 = vld [vmem:[#allocation3 + $0x8] sm:$0xe]
    %v673 = vld [vmem:[#allocation3 + $0x10] sm:$0xe]
    %v674 = vld [vmem:[#allocation3 + $0x18] sm:$0xe]
    %v675 = vld [vmem:[#allocation3 + $0x20] sm:$0xe]
    %v676 = vld [vmem:[#allocation3 + $0x28] sm:$0xe]
    %v677 = vld [vmem:[#allocation3 + $0x30] sm:$0xe]
    %v678 = vld [vmem:[#allocation3 + $0x38] sm:$0xe]
    %v679 = vld [vmem:[#allocation3 + $0x50] sm:$0xe]
    %v680 = vld [vmem:[#allocation3 + $0x58] sm:$0xe]
    %v681 = vld [vmem:[#allocation3 + $0x60] sm:$0xe]
    %v682 = vld [vmem:[#allocation3 + $0x68] sm:$0xe]
    %v683 = vld [vmem:[#allocation3 + $0x70] sm:$0xe]
    %v684 = vld [vmem:[#allocation3 + $0x78] sm:$0xe]
    %v685 = vld [vmem:[#allocation3 + $0x80] sm:$0xe]
    %v686 = vld [vmem:[#allocation3 + $0x88] sm:$0xe]
    %vm719 = vcmask 1042432
    %vm720 = vcmask 1046532
    %vm721 = vmor %vm719, %vm720
    %v722 = vrot.slane %v671, 5
    %v723 = vrot.slane %v722, 4
    %v724 = vrot.slane %v106, 5
    %v725 = vsel %vm721, %v723, %v724
    %v726 = vrot.slane %v672, 5
    %v727 = vrot.slane %v726, 4
    %v728 = vrot.slane %v107, 5
    %v729 = vsel %vm721, %v727, %v728
    %v730 = vrot.slane %v673, 5
    %v731 = vrot.slane %v730, 4
    %v732 = vrot.slane %v108, 5
    %v733 = vsel %vm721, %v731, %v732
    %v734 = vrot.slane %v674, 5
    %v735 = vrot.slane %v734, 4
    %v736 = vrot.slane %v109, 5
    %v737 = vsel %vm721, %v735, %v736
    %v738 = vrot.slane %v675, 5
    %v739 = vrot.slane %v738, 4
    %v740 = vrot.slane %v110, 5
    %v741 = vsel %vm721, %v739, %v740
    %v742 = vrot.slane %v676, 5
    %v743 = vrot.slane %v742, 4
    %v744 = vrot.slane %v111, 5
    %v745 = vsel %vm721, %v743, %v744
    %v746 = vrot.slane %v677, 5
    %v747 = vrot.slane %v746, 4
    %v748 = vrot.slane %v112, 5
    %v749 = vsel %vm721, %v747, %v748
    %v750 = vrot.slane %v678, 5
    %v751 = vrot.slane %v750, 4
    %v752 = vrot.slane %v113, 5
    %v753 = vsel %vm721, %v751, %v752
    %v754 = vrot.slane %v679, 5
    %v755 = vrot.slane %v754, 4
    %v756 = vrot.slane %v114, 5
    %v757 = vsel %vm721, %v755, %v756
    %v758 = vrot.slane %v680, 5
    %v759 = vrot.slane %v758, 4
    %v760 = vrot.slane %v115, 5
    %v761 = vsel %vm721, %v759, %v760
    %v762 = vrot.slane %v681, 5
    %v763 = vrot.slane %v762, 4
    %v764 = vrot.slane %v116, 5
    %v765 = vsel %vm721, %v763, %v764
    %v766 = vrot.slane %v682, 5
    %v767 = vrot.slane %v766, 4
    %v768 = vrot.slane %v117, 5
    %v769 = vsel %vm721, %v767, %v768
    %v770 = vrot.slane %v683, 5
    %v771 = vrot.slane %v770, 4
    %v772 = vrot.slane %v118, 5
    %v773 = vsel %vm721, %v771, %v772
    %v774 = vrot.slane %v684, 5
    %v775 = vrot.slane %v774, 4
    %v776 = vrot.slane %v119, 5
    %v777 = vsel %vm721, %v775, %v776
    %v778 = vrot.slane %v685, 5
    %v779 = vrot.slane %v778, 4
    %v780 = vrot.slane %v120, 5
    %v781 = vsel %vm721, %v779, %v780
    %v782 = vrot.slane %v686, 5
    %v783 = vrot.slane %v782, 4
    %v784 = vrot.slane %v121, 5
    %v785 = vsel %vm721, %v783, %v784
    %s786 = scalar_lea.vmem [#allocation6], 16
    %v787 = vld [vmem:[%s786] sm:$0xf]
    %v788 = vld [vmem:[%s786 + $0x4] sm:$0xf]
    %v789 = vunpack.c.l.b16 %v725
    %v790 = vunpack.c.l.b16 %v729
    %v791 = vunpack.c.l.b16 %v733
    %v792 = vunpack.c.l.b16 %v737
    %v793 = vunpack.c.l.b16 %v741
    %v794 = vunpack.c.l.b16 %v745
    %v795 = vunpack.c.l.b16 %v749
    %v796 = vunpack.c.l.b16 %v753
    %v797 = vunpack.c.l.b16 %v757
    %v798 = vunpack.c.l.b16 %v761
    %v799 = vunpack.c.l.b16 %v765
    %v800 = vunpack.c.l.b16 %v769
    %v801 = vunpack.c.l.b16 %v773
    %v802 = vunpack.c.l.b16 %v777
    %v803 = vunpack.c.l.b16 %v781
    %v804 = vunpack.c.l.b16 %v785
    %v805 = vpack.c.b16 %v790, %v789
    %v806 = vpack.c.b16 %v792, %v791
    %v807 = vpack.c.b16 %v794, %v793
    %v808 = vpack.c.b16 %v796, %v795
    %v809 = vpack.c.b16 %v798, %v797
    %v810 = vpack.c.b16 %v800, %v799
    %v811 = vpack.c.b16 %v802, %v801
    %v812 = vpack.c.b16 %v804, %v803
    %v815 = vunpack.c.l.b16 %v787
    %v816 = vunpack.c.l.b16 %v788
    %v817 = vpack.c.b16 %v816, %v815
    %v820 = vsel %vm382, %v805, 0
    %v823 = vsel %vm382, %v806, 0
    %v826 = vsel %vm382, %v807, 0
    %v829 = vsel %vm382, %v808, 0
    %v832 = vsel %vm382, %v809, 0
    %v835 = vsel %vm382, %v810, 0
    %v838 = vsel %vm382, %v811, 0
    %v841 = vsel %vm382, %v812, 0
    %843 = vmatprep.subr.bf16.mxu0 0
    %844 = vmatpush1.bf16.msra.mxu0 %v817
    %845 = vmatprep.subr.bf16.mxu0 0
    %846 = vmatpush1.bf16.msra.mxu0 0
    %847 = vmatprep.subr.bf16.mxu0 0
    %848 = vmatpush1.bf16.msra.mxu0 0
    %849 = vmatprep.subr.bf16.mxu0 0
    %850 = vmatpush1.bf16.msra.mxu0 0
    %851 = vmatprep.subr.bf16.mxu0 0
    %852 = vmatpush1.bf16.msra.mxu0 0
    %853 = vmatprep.subr.bf16.mxu0 0
    %854 = vmatpush1.bf16.msra.mxu0 0
    %855 = vmatprep.subr.bf16.mxu0 0
    %856 = vmatpush1.bf16.msra.mxu0 0
    %857 = vmatprep.subr.bf16.mxu0 0
    %858 = vmatpush1.bf16.msra.mxu0 0
    %859 = vmatprep.subr.bf16.mxu0 0
    %860 = vmatpush1.bf16.msra.mxu0 0
    %861 = vmatprep.subr.bf16.mxu0 0
    %862 = vmatpush1.bf16.msra.mxu0 0
    %863 = vmatprep.subr.bf16.mxu0 0
    %864 = vmatpush1.bf16.msra.mxu0 0
    %865 = vmatprep.subr.bf16.mxu0 0
    %866 = vmatpush1.bf16.msra.mxu0 0
    %867 = vmatprep.subr.bf16.mxu0 0
    %868 = vmatpush1.bf16.msra.mxu0 0
    %869 = vmatprep.subr.bf16.mxu0 0
    %870 = vmatpush1.bf16.msra.mxu0 0
    %871 = vmatprep.subr.bf16.mxu0 0
    %872 = vmatpush1.bf16.msra.mxu0 0
    %873 = vmatprep.subr.bf16.mxu0 0
    %874 = vmatpush1.bf16.msra.mxu0 0
    %875 = vmatprep.mubr.bf16.mxu0 0
    %876 = vmatmul.mubr.bf16.gmra.mrb[0].mxu0 %v820
    %v877 = vpop.f32.mrb[0].mxu0
    %v878 = vadd.f32 0.0, %v877
    %v879 = vpop.f32.mrb[0].mxu0
    %v880 = vpop.f32.mrb[0].mxu0
    %v881 = vadd.f32 0.0, %v880
    %v882 = vpop.f32.mrb[0].mxu0
    %883 = vmatprep.mubr.bf16.mxu0 0
    %884 = vmatmul.mubr.bf16.gmra.mrb[0].mxu0 %v823
    %v885 = vpop.f32.mrb[0].mxu0
    %v886 = vadd.f32 0.0, %v885
    %v887 = vpop.f32.mrb[0].mxu0
    %v888 = vpop.f32.mrb[0].mxu0
    %v889 = vadd.f32 0.0, %v888
    %v890 = vpop.f32.mrb[0].mxu0
    %891 = vmatprep.mubr.bf16.mxu0 0
    %892 = vmatmul.mubr.bf16.gmra.mrb[0].mxu0 %v826
    %v893 = vpop.f32.mrb[0].mxu0
    %v894 = vadd.f32 0.0, %v893
    %v895 = vpop.f32.mrb[0].mxu0
    %v896 = vpop.f32.mrb[0].mxu0
    %v897 = vadd.f32 0.0, %v896
    %v898 = vpop.f32.mrb[0].mxu0
    %899 = vmatprep.mubr.bf16.mxu0 0
    %900 = vmatmul.mubr.bf16.gmra.mrb[0].mxu0 %v829
    %v901 = vpop.f32.mrb[0].mxu0
    %v902 = vadd.f32 0.0, %v901
    %v903 = vpop.f32.mrb[0].mxu0
    %v904 = vpop.f32.mrb[0].mxu0
    %v905 = vadd.f32 0.0, %v904
    %v906 = vpop.f32.mrb[0].mxu0
    %907 = vmatprep.mubr.bf16.mxu0 0
    %908 = vmatmul.mubr.bf16.gmra.mrb[0].mxu0 %v832
    %v909 = vpop.f32.mrb[0].mxu0
    %v910 = vadd.f32 0.0, %v909
    %v911 = vpop.f32.mrb[0].mxu0
    %v912 = vpop.f32.mrb[0].mxu0
    %v913 = vadd.f32 0.0, %v912
    %v914 = vpop.f32.mrb[0].mxu0
    %915 = vmatprep.mubr.bf16.mxu0 0
    %916 = vmatmul.mubr.bf16.gmra.mrb[0].mxu0 %v835
    %v917 = vpop.f32.mrb[0].mxu0
    %v918 = vadd.f32 0.0, %v917
    %v919 = vpop.f32.mrb[0].mxu0
    %v920 = vpop.f32.mrb[0].mxu0
    %v921 = vadd.f32 0.0, %v920
    %v922 = vpop.f32.mrb[0].mxu0
    %923 = vmatprep.mubr.bf16.mxu0 0
    %924 = vmatmul.mubr.bf16.gmra.mrb[0].mxu0 %v838
    %v925 = vpop.f32.mrb[0].mxu0
    %v926 = vadd.f32 0.0, %v925
    %v927 = vpop.f32.mrb[0].mxu0
    %v928 = vpop.f32.mrb[0].mxu0
    %v929 = vadd.f32 0.0, %v928
    %v930 = vpop.f32.mrb[0].mxu0
    %931 = vmatprep.mubr.bf16.mxu0 0
    %932 = vmatmul.mubr.bf16.gmra.mrb[0].mxu0 %v841
    %v933 = vpop.f32.mrb[0].mxu0
    %v934 = vadd.f32 0.0, %v933
    %v935 = vpop.f32.mrb[0].mxu0
    %v936 = vpop.f32.mrb[0].mxu0
    %v937 = vadd.f32 0.0, %v936
    %v938 = vpop.f32.mrb[0].mxu0
    %939 = vdwg.mxu0
    %v940 = vadd.f32 %v609, %v878
    %v941 = vadd.f32 %v612, %v881
    %v942 = vadd.f32 %v617, %v886
    %v943 = vadd.f32 %v620, %v889
    %v944 = vadd.f32 %v625, %v894
    %v945 = vadd.f32 %v628, %v897
    %v946 = vadd.f32 %v633, %v902
    %v947 = vadd.f32 %v636, %v905
    %v948 = vadd.f32 %v641, %v910
    %v949 = vadd.f32 %v644, %v913
    %v950 = vadd.f32 %v649, %v918
    %v951 = vadd.f32 %v652, %v921
    %v952 = vadd.f32 %v657, %v926
    %v953 = vadd.f32 %v660, %v929
    %v954 = vadd.f32 %v665, %v934
    %v955 = vadd.f32 %v668, %v937
    %s956 = scalar_lea.vmem [#allocation3], 8
    %v957 = vld [vmem:[%s956] sm:$0xf]
    %v958 = vld [vmem:[%s956 + $0x8] sm:$0xf]
    %v959 = vld [vmem:[%s956 + $0x10] sm:$0xf]
    %v960 = vld [vmem:[%s956 + $0x18] sm:$0xf]
    %v961 = vld [vmem:[%s956 + $0x20] sm:$0xf]
    %v962 = vld [vmem:[%s956 + $0x28] sm:$0xf]
    %v963 = vld [vmem:[%s956 + $0x30] sm:$0xf]
    %v964 = vld [vmem:[%s956 + $0x38] sm:$0xf]
    %v965 = vld [vmem:[%s956 + $0x50] sm:$0xf]
    %v966 = vld [vmem:[%s956 + $0x58] sm:$0xf]
    %v967 = vld [vmem:[%s956 + $0x60] sm:$0xf]
    %v968 = vld [vmem:[%s956 + $0x68] sm:$0xf]
    %v969 = vld [vmem:[%s956 + $0x70] sm:$0xf]
    %v970 = vld [vmem:[%s956 + $0x78] sm:$0xf]
    %v971 = vld [vmem:[%s956 + $0x80] sm:$0xf]
    %v972 = vld [vmem:[%s956 + $0x88] sm:$0xf]
    %s973 = scalar_lea.vmem [#allocation6], 24
    %v974 = vld [vmem:[%s973] sm:$0xf]
    %v975 = vld [vmem:[%s973 + $0x4] sm:$0xf]
    %v992 = vunpack.c.l.b16 %v957
    %v993 = vunpack.c.l.b16 %v958
    %v994 = vunpack.c.l.b16 %v959
    %v995 = vunpack.c.l.b16 %v960
    %v996 = vunpack.c.l.b16 %v961
    %v997 = vunpack.c.l.b16 %v962
    %v998 = vunpack.c.l.b16 %v963
    %v999 = vunpack.c.l.b16 %v964
    %v1000 = vunpack.c.l.b16 %v965
    %v1001 = vunpack.c.l.b16 %v966
    %v1002 = vunpack.c.l.b16 %v967
    %v1003 = vunpack.c.l.b16 %v968
    %v1004 = vunpack.c.l.b16 %v969
    %v1005 = vunpack.c.l.b16 %v970
    %v1006 = vunpack.c.l.b16 %v971
    %v1007 = vunpack.c.l.b16 %v972
    %v1008 = vpack.c.b16 %v993, %v992
    %v1009 = vpack.c.b16 %v995, %v994
    %v1010 = vpack.c.b16 %v997, %v996
    %v1011 = vpack.c.b16 %v999, %v998
    %v1012 = vpack.c.b16 %v1001, %v1000
    %v1013 = vpack.c.b16 %v1003, %v1002
    %v1014 = vpack.c.b16 %v1005, %v1004
    %v1015 = vpack.c.b16 %v1007, %v1006
    %v1018 = vunpack.c.l.b16 %v974
    %v1019 = vunpack.c.l.b16 %v975
    %v1020 = vpack.c.b16 %v1019, %v1018
    %v1023 = vsel %vm382, %v1008, 0
    %v1026 = vsel %vm382, %v1009, 0
    %v1029 = vsel %vm382, %v1010, 0
    %v1032 = vsel %vm382, %v1011, 0
    %v1035 = vsel %vm382, %v1012, 0
    %v1038 = vsel %vm382, %v1013, 0
    %v1041 = vsel %vm382, %v1014, 0
    %v1044 = vsel %vm382, %v1015, 0
    %1046 = vmatprep.subr.bf16.mxu0 0
    %1047 = vmatpush1.bf16.msra.mxu0 %v1020
    %1048 = vmatprep.subr.bf16.mxu0 0
    %1049 = vmatpush1.bf16.msra.mxu0 0
    %1050 = vmatprep.subr.bf16.mxu0 0
    %1051 = vmatpush1.bf16.msra.mxu0 0
    %1052 = vmatprep.subr.bf16.mxu0 0
    %1053 = vmatpush1.bf16.msra.mxu0 0
    %1054 = vmatprep.subr.bf16.mxu0 0
    %1055 = vmatpush1.bf16.msra.mxu0 0
    %1056 = vmatprep.subr.bf16.mxu0 0
    %1057 = vmatpush1.bf16.msra.mxu0 0
    %1058 = vmatprep.subr.bf16.mxu0 0
    %1059 = vmatpush1.bf16.msra.mxu0 0
    %1060 = vmatprep.subr.bf16.mxu0 0
    %1061 = vmatpush1.bf16.msra.mxu0 0
    %1062 = vmatprep.subr.bf16.mxu0 0
    %1063 = vmatpush1.bf16.msra.mxu0 0
    %1064 = vmatprep.subr.bf16.mxu0 0
    %1065 = vmatpush1.bf16.msra.mxu0 0
    %1066 = vmatprep.subr.bf16.mxu0 0
    %1067 = vmatpush1.bf16.msra.mxu0 0
    %1068 = vmatprep.subr.bf16.mxu0 0
    %1069 = vmatpush1.bf16.msra.mxu0 0
    %1070 = vmatprep.subr.bf16.mxu0 0
    %1071 = vmatpush1.bf16.msra.mxu0 0
    %1072 = vmatprep.subr.bf16.mxu0 0
    %1073 = vmatpush1.bf16.msra.mxu0 0
    %1074 = vmatprep.subr.bf16.mxu0 0
    %1075 = vmatpush1.bf16.msra.mxu0 0
    %1076 = vmatprep.subr.bf16.mxu0 0
    %1077 = vmatpush1.bf16.msra.mxu0 0
    %1078 = vmatprep.mubr.bf16.mxu0 0
    %1079 = vmatmul.mubr.bf16.gmra.mrb[0].mxu0 %v1023
    %v1080 = vpop.f32.mrb[0].mxu0
    %v1081 = vadd.f32 0.0, %v1080
    %v1082 = vpop.f32.mrb[0].mxu0
    %v1083 = vpop.f32.mrb[0].mxu0
    %v1084 = vadd.f32 0.0, %v1083
    %v1085 = vpop.f32.mrb[0].mxu0
    %1086 = vmatprep.mubr.bf16.mxu0 0
    %1087 = vmatmul.mubr.bf16.gmra.mrb[0].mxu0 %v1026
    %v1088 = vpop.f32.mrb[0].mxu0
    %v1089 = vadd.f32 0.0, %v1088
    %v1090 = vpop.f32.mrb[0].mxu0
    %v1091 = vpop.f32.mrb[0].mxu0
    %v1092 = vadd.f32 0.0, %v1091
    %v1093 = vpop.f32.mrb[0].mxu0
    %1094 = vmatprep.mubr.bf16.mxu0 0
    %1095 = vmatmul.mubr.bf16.gmra.mrb[0].mxu0 %v1029
    %v1096 = vpop.f32.mrb[0].mxu0
    %v1097 = vadd.f32 0.0, %v1096
    %v1098 = vpop.f32.mrb[0].mxu0
    %v1099 = vpop.f32.mrb[0].mxu0
    %v1100 = vadd.f32 0.0, %v1099
    %v1101 = vpop.f32.mrb[0].mxu0
    %1102 = vmatprep.mubr.bf16.mxu0 0
    %1103 = vmatmul.mubr.bf16.gmra.mrb[0].mxu0 %v1032
    %v1104 = vpop.f32.mrb[0].mxu0
    %v1105 = vadd.f32 0.0, %v1104
    %v1106 = vpop.f32.mrb[0].mxu0
    %v1107 = vpop.f32.mrb[0].mxu0
    %v1108 = vadd.f32 0.0, %v1107
    %v1109 = vpop.f32.mrb[0].mxu0
    %1110 = vmatprep.mubr.bf16.mxu0 0
    %1111 = vmatmul.mubr.bf16.gmra.mrb[0].mxu0 %v1035
    %v1112 = vpop.f32.mrb[0].mxu0
    %v1113 = vadd.f32 0.0, %v1112
    %v1114 = vpop.f32.mrb[0].mxu0
    %v1115 = vpop.f32.mrb[0].mxu0
    %v1116 = vadd.f32 0.0, %v1115
    %v1117 = vpop.f32.mrb[0].mxu0
    %1118 = vmatprep.mubr.bf16.mxu0 0
    %1119 = vmatmul.mubr.bf16.gmra.mrb[0].mxu0 %v1038
    %v1120 = vpop.f32.mrb[0].mxu0
    %v1121 = vadd.f32 0.0, %v1120
    %v1122 = vpop.f32.mrb[0].mxu0
    %v1123 = vpop.f32.mrb[0].mxu0
    %v1124 = vadd.f32 0.0, %v1123
    %v1125 = vpop.f32.mrb[0].mxu0
    %1126 = vmatprep.mubr.bf16.mxu0 0
    %1127 = vmatmul.mubr.bf16.gmra.mrb[0].mxu0 %v1041
    %v1128 = vpop.f32.mrb[0].mxu0
    %v1129 = vadd.f32 0.0, %v1128
    %v1130 = vpop.f32.mrb[0].mxu0
    %v1131 = vpop.f32.mrb[0].mxu0
    %v1132 = vadd.f32 0.0, %v1131
    %v1133 = vpop.f32.mrb[0].mxu0
    %1134 = vmatprep.mubr.bf16.mxu0 0
    %1135 = vmatmul.mubr.bf16.gmra.mrb[0].mxu0 %v1044
    %v1136 = vpop.f32.mrb[0].mxu0
    %v1137 = vadd.f32 0.0, %v1136
    %v1138 = vpop.f32.mrb[0].mxu0
    %v1139 = vpop.f32.mrb[0].mxu0
    %v1140 = vadd.f32 0.0, %v1139
    %v1141 = vpop.f32.mrb[0].mxu0
    %1142 = vdwg.mxu0
    %v1143 = vadd.f32 %v940, %v1081
    %v1144 = vadd.f32 %v941, %v1084
    %v1145 = vadd.f32 %v942, %v1089
    %v1146 = vadd.f32 %v943, %v1092
    %v1147 = vadd.f32 %v944, %v1097
    %v1148 = vadd.f32 %v945, %v1100
    %v1149 = vadd.f32 %v946, %v1105
    %v1150 = vadd.f32 %v947, %v1108
    %v1151 = vadd.f32 %v948, %v1113
    %v1152 = vadd.f32 %v949, %v1116
    %v1153 = vadd.f32 %v950, %v1121
    %v1154 = vadd.f32 %v951, %v1124
    %v1155 = vadd.f32 %v952, %v1129
    %v1156 = vadd.f32 %v953, %v1132
    %v1157 = vadd.f32 %v954, %v1137
    %v1158 = vadd.f32 %v955, %v1140
    %v1159 = vld [vmem:[%s956] sm:$0xf]
    %v1160 = vld [vmem:[%s956 + $0x4] sm:$0x1]
    %v1161 = vld [vmem:[%s956 + $0x8] sm:$0xf]
    %v1162 = vld [vmem:[%s956 + $0xc] sm:$0x1]
    %v1163 = vld [vmem:[%s956 + $0x10] sm:$0xf]
    %v1164 = vld [vmem:[%s956 + $0x14] sm:$0x1]
    %v1165 = vld [vmem:[%s956 + $0x18] sm:$0xf]
    %v1166 = vld [vmem:[%s956 + $0x1c] sm:$0x1]
    %v1167 = vld [vmem:[%s956 + $0x20] sm:$0xf]
    %v1168 = vld [vmem:[%s956 + $0x24] sm:$0x1]
    %v1169 = vld [vmem:[%s956 + $0x28] sm:$0xf]
    %v1170 = vld [vmem:[%s956 + $0x2c] sm:$0x1]
    %v1171 = vld [vmem:[%s956 + $0x30] sm:$0xf]
    %v1172 = vld [vmem:[%s956 + $0x34] sm:$0x1]
    %v1173 = vld [vmem:[%s956 + $0x38] sm:$0xf]
    %v1174 = vld [vmem:[%s956 + $0x3c] sm:$0x1]
    %v1175 = vld [vmem:[%s956 + $0x50] sm:$0xf]
    %v1176 = vld [vmem:[%s956 + $0x54] sm:$0x1]
    %v1177 = vld [vmem:[%s956 + $0x58] sm:$0xf]
    %v1178 = vld [vmem:[%s956 + $0x5c] sm:$0x1]
    %v1179 = vld [vmem:[%s956 + $0x60] sm:$0xf]
    %v1180 = vld [vmem:[%s956 + $0x64] sm:$0x1]
    %v1181 = vld [vmem:[%s956 + $0x68] sm:$0xf]
    %v1182 = vld [vmem:[%s956 + $0x6c] sm:$0x1]
    %v1183 = vld [vmem:[%s956 + $0x70] sm:$0xf]
    %v1184 = vld [vmem:[%s956 + $0x74] sm:$0x1]
    %v1185 = vld [vmem:[%s956 + $0x78] sm:$0xf]
    %v1186 = vld [vmem:[%s956 + $0x7c] sm:$0x1]
    %v1187 = vld [vmem:[%s956 + $0x80] sm:$0xf]
    %v1188 = vld [vmem:[%s956 + $0x84] sm:$0x1]
    %v1189 = vld [vmem:[%s956 + $0x88] sm:$0xf]
    %v1190 = vld [vmem:[%s956 + $0x8c] sm:$0x1]
    %v1192 = vshrl.u32 %v1159, 16
    %v1194 = vrot.slane %v1192, 4
    %v1195 = vshll.u32 %v1159, 16
    %v1197 = vrot.slane %v1195, 5
    %v1198 = vor.u32 %v1194, %v1197
    %v1199 = vrot.slane %v1198, 4
    %v1201 = vshll.u32 %v1160, 16
    %v1203 = vrot.slane %v1201, 5
    %v1204 = vsel %vm124, %v1199, %v1203
    %v1206 = vshrl.u32 %v1161, 16
    %v1208 = vrot.slane %v1206, 4
    %v1209 = vshll.u32 %v1161, 16
    %v1211 = vrot.slane %v1209, 5
    %v1212 = vor.u32 %v1208, %v1211
    %v1213 = vrot.slane %v1212, 4
    %v1215 = vshll.u32 %v1162, 16
    %v1217 = vrot.slane %v1215, 5
    %v1218 = vsel %vm124, %v1213, %v1217
    %v1220 = vshrl.u32 %v1163, 16
    %v1222 = vrot.slane %v1220, 4
    %v1223 = vshll.u32 %v1163, 16
    %v1225 = vrot.slane %v1223, 5
    %v1226 = vor.u32 %v1222, %v1225
    %v1227 = vrot.slane %v1226, 4
    %v1229 = vshll.u32 %v1164, 16
    %v1231 = vrot.slane %v1229, 5
    %v1232 = vsel %vm124, %v1227, %v1231
    %v1234 = vshrl.u32 %v1165, 16
    %v1236 = vrot.slane %v1234, 4
    %v1237 = vshll.u32 %v1165, 16
    %v1239 = vrot.slane %v1237, 5
    %v1240 = vor.u32 %v1236, %v1239
    %v1241 = vrot.slane %v1240, 4
    %v1243 = vshll.u32 %v1166, 16
    %v1245 = vrot.slane %v1243, 5
    %v1246 = vsel %vm124, %v1241, %v1245
    %v1248 = vshrl.u32 %v1167, 16
    %v1250 = vrot.slane %v1248, 4
    %v1251 = vshll.u32 %v1167, 16
    %v1253 = vrot.slane %v1251, 5
    %v1254 = vor.u32 %v1250, %v1253
    %v1255 = vrot.slane %v1254, 4
    %v1257 = vshll.u32 %v1168, 16
    %v1259 = vrot.slane %v1257, 5
    %v1260 = vsel %vm124, %v1255, %v1259
    %v1262 = vshrl.u32 %v1169, 16
    %v1264 = vrot.slane %v1262, 4
    %v1265 = vshll.u32 %v1169, 16
    %v1267 = vrot.slane %v1265, 5
    %v1268 = vor.u32 %v1264, %v1267
    %v1269 = vrot.slane %v1268, 4
    %v1271 = vshll.u32 %v1170, 16
    %v1273 = vrot.slane %v1271, 5
    %v1274 = vsel %vm124, %v1269, %v1273
    %v1276 = vshrl.u32 %v1171, 16
    %v1278 = vrot.slane %v1276, 4
    %v1279 = vshll.u32 %v1171, 16
    %v1281 = vrot.slane %v1279, 5
    %v1282 = vor.u32 %v1278, %v1281
    %v1283 = vrot.slane %v1282, 4
    %v1285 = vshll.u32 %v1172, 16
    %v1287 = vrot.slane %v1285, 5
    %v1288 = vsel %vm124, %v1283, %v1287
    %v1290 = vshrl.u32 %v1173, 16
    %v1292 = vrot.slane %v1290, 4
    %v1293 = vshll.u32 %v1173, 16
    %v1295 = vrot.slane %v1293, 5
    %v1296 = vor.u32 %v1292, %v1295
    %v1297 = vrot.slane %v1296, 4
    %v1299 = vshll.u32 %v1174, 16
    %v1301 = vrot.slane %v1299, 5
    %v1302 = vsel %vm124, %v1297, %v1301
    %v1304 = vshrl.u32 %v1175, 16
    %v1306 = vrot.slane %v1304, 4
    %v1307 = vshll.u32 %v1175, 16
    %v1309 = vrot.slane %v1307, 5
    %v1310 = vor.u32 %v1306, %v1309
    %v1311 = vrot.slane %v1310, 4
    %v1313 = vshll.u32 %v1176, 16
    %v1315 = vrot.slane %v1313, 5
    %v1316 = vsel %vm124, %v1311, %v1315
    %v1318 = vshrl.u32 %v1177, 16
    %v1320 = vrot.slane %v1318, 4
    %v1321 = vshll.u32 %v1177, 16
    %v1323 = vrot.slane %v1321, 5
    %v1324 = vor.u32 %v1320, %v1323
    %v1325 = vrot.slane %v1324, 4
    %v1327 = vshll.u32 %v1178, 16
    %v1329 = vrot.slane %v1327, 5
    %v1330 = vsel %vm124, %v1325, %v1329
    %v1332 = vshrl.u32 %v1179, 16
    %v1334 = vrot.slane %v1332, 4
    %v1335 = vshll.u32 %v1179, 16
    %v1337 = vrot.slane %v1335, 5
    %v1338 = vor.u32 %v1334, %v1337
    %v1339 = vrot.slane %v1338, 4
    %v1341 = vshll.u32 %v1180, 16
    %v1343 = vrot.slane %v1341, 5
    %v1344 = vsel %vm124, %v1339, %v1343
    %v1346 = vshrl.u32 %v1181, 16
    %v1348 = vrot.slane %v1346, 4
    %v1349 = vshll.u32 %v1181, 16
    %v1351 = vrot.slane %v1349, 5
    %v1352 = vor.u32 %v1348, %v1351
    %v1353 = vrot.slane %v1352, 4
    %v1355 = vshll.u32 %v1182, 16
    %v1357 = vrot.slane %v1355, 5
    %v1358 = vsel %vm124, %v1353, %v1357
    %v1360 = vshrl.u32 %v1183, 16
    %v1362 = vrot.slane %v1360, 4
    %v1363 = vshll.u32 %v1183, 16
    %v1365 = vrot.slane %v1363, 5
    %v1366 = vor.u32 %v1362, %v1365
    %v1367 = vrot.slane %v1366, 4
    %v1369 = vshll.u32 %v1184, 16
    %v1371 = vrot.slane %v1369, 5
    %v1372 = vsel %vm124, %v1367, %v1371
    %v1374 = vshrl.u32 %v1185, 16
    %v1376 = vrot.slane %v1374, 4
    %v1377 = vshll.u32 %v1185, 16
    %v1379 = vrot.slane %v1377, 5
    %v1380 = vor.u32 %v1376, %v1379
    %v1381 = vrot.slane %v1380, 4
    %v1383 = vshll.u32 %v1186, 16
    %v1385 = vrot.slane %v1383, 5
    %v1386 = vsel %vm124, %v1381, %v1385
    %v1388 = vshrl.u32 %v1187, 16
    %v1390 = vrot.slane %v1388, 4
    %v1391 = vshll.u32 %v1187, 16
    %v1393 = vrot.slane %v1391, 5
    %v1394 = vor.u32 %v1390, %v1393
    %v1395 = vrot.slane %v1394, 4
    %v1397 = vshll.u32 %v1188, 16
    %v1399 = vrot.slane %v1397, 5
    %v1400 = vsel %vm124, %v1395, %v1399
    %v1402 = vshrl.u32 %v1189, 16
    %v1404 = vrot.slane %v1402, 4
    %v1405 = vshll.u32 %v1189, 16
    %v1407 = vrot.slane %v1405, 5
    %v1408 = vor.u32 %v1404, %v1407
    %v1409 = vrot.slane %v1408, 4
    %v1411 = vshll.u32 %v1190, 16
    %v1413 = vrot.slane %v1411, 5
    %v1414 = vsel %vm124, %v1409, %v1413
    %s1415 = scalar_lea.vmem [#allocation6], 32
    %v1416 = vld [vmem:[%s1415] sm:$0xf]
    %v1417 = vld [vmem:[%s1415 + $0x4] sm:$0xf]
    %v1418 = vunpack.c.l.b16 %v1204
    %v1419 = vunpack.c.l.b16 %v1218
    %v1420 = vunpack.c.l.b16 %v1232
    %v1421 = vunpack.c.l.b16 %v1246
    %v1422 = vunpack.c.l.b16 %v1260
    %v1423 = vunpack.c.l.b16 %v1274
    %v1424 = vunpack.c.l.b16 %v1288
    %v1425 = vunpack.c.l.b16 %v1302
    %v1426 = vunpack.c.l.b16 %v1316
    %v1427 = vunpack.c.l.b16 %v1330
    %v1428 = vunpack.c.l.b16 %v1344
    %v1429 = vunpack.c.l.b16 %v1358
    %v1430 = vunpack.c.l.b16 %v1372
    %v1431 = vunpack.c.l.b16 %v1386
    %v1432 = vunpack.c.l.b16 %v1400
    %v1433 = vunpack.c.l.b16 %v1414
    %v1434 = vpack.c.b16 %v1419, %v1418
    %v1435 = vpack.c.b16 %v1421, %v1420
    %v1436 = vpack.c.b16 %v1423, %v1422
    %v1437 = vpack.c.b16 %v1425, %v1424
    %v1438 = vpack.c.b16 %v1427, %v1426
    %v1439 = vpack.c.b16 %v1429, %v1428
    %v1440 = vpack.c.b16 %v1431, %v1430
    %v1441 = vpack.c.b16 %v1433, %v1432
    %v1444 = vunpack.c.l.b16 %v1416
    %v1445 = vunpack.c.l.b16 %v1417
    %v1446 = vpack.c.b16 %v1445, %v1444
    %v1449 = vsel %vm382, %v1434, 0
    %v1452 = vsel %vm382, %v1435, 0
    %v1455 = vsel %vm382, %v1436, 0
    %v1458 = vsel %vm382, %v1437, 0
    %v1461 = vsel %vm382, %v1438, 0
    %v1464 = vsel %vm382, %v1439, 0
    %v1467 = vsel %vm382, %v1440, 0
    %v1470 = vsel %vm382, %v1441, 0
    %1472 = vmatprep.subr.bf16.mxu0 0
    %1473 = vmatpush1.bf16.msra.mxu0 %v1446
    %1474 = vmatprep.subr.bf16.mxu0 0
    %1475 = vmatpush1.bf16.msra.mxu0 0
    %1476 = vmatprep.subr.bf16.mxu0 0
    %1477 = vmatpush1.bf16.msra.mxu0 0
    %1478 = vmatprep.subr.bf16.mxu0 0
    %1479 = vmatpush1.bf16.msra.mxu0 0
    %1480 = vmatprep.subr.bf16.mxu0 0
    %1481 = vmatpush1.bf16.msra.mxu0 0
    %1482 = vmatprep.subr.bf16.mxu0 0
    %1483 = vmatpush1.bf16.msra.mxu0 0
    %1484 = vmatprep.subr.bf16.mxu0 0
    %1485 = vmatpush1.bf16.msra.mxu0 0
    %1486 = vmatprep.subr.bf16.mxu0 0
    %1487 = vmatpush1.bf16.msra.mxu0 0
    %1488 = vmatprep.subr.bf16.mxu0 0
    %1489 = vmatpush1.bf16.msra.mxu0 0
    %1490 = vmatprep.subr.bf16.mxu0 0
    %1491 = vmatpush1.bf16.msra.mxu0 0
    %1492 = vmatprep.subr.bf16.mxu0 0
    %1493 = vmatpush1.bf16.msra.mxu0 0
    %1494 = vmatprep.subr.bf16.mxu0 0
    %1495 = vmatpush1.bf16.msra.mxu0 0
    %1496 = vmatprep.subr.bf16.mxu0 0
    %1497 = vmatpush1.bf16.msra.mxu0 0
    %1498 = vmatprep.subr.bf16.mxu0 0
    %1499 = vmatpush1.bf16.msra.mxu0 0
    %1500 = vmatprep.subr.bf16.mxu0 0
    %1501 = vmatpush1.bf16.msra.mxu0 0
    %1502 = vmatprep.subr.bf16.mxu0 0
    %1503 = vmatpush1.bf16.msra.mxu0 0
    %1504 = vmatprep.mubr.bf16.mxu0 0
    %1505 = vmatmul.mubr.bf16.gmra.mrb[0].mxu0 %v1449
    %v1506 = vpop.f32.mrb[0].mxu0
    %v1507 = vadd.f32 0.0, %v1506
    %v1508 = vpop.f32.mrb[0].mxu0
    %v1509 = vpop.f32.mrb[0].mxu0
    %v1510 = vadd.f32 0.0, %v1509
    %v1511 = vpop.f32.mrb[0].mxu0
    %1512 = vmatprep.mubr.bf16.mxu0 0
    %1513 = vmatmul.mubr.bf16.gmra.mrb[0].mxu0 %v1452
    %v1514 = vpop.f32.mrb[0].mxu0
    %v1515 = vadd.f32 0.0, %v1514
    %v1516 = vpop.f32.mrb[0].mxu0
    %v1517 = vpop.f32.mrb[0].mxu0
    %v1518 = vadd.f32 0.0, %v1517
    %v1519 = vpop.f32.mrb[0].mxu0
    %1520 = vmatprep.mubr.bf16.mxu0 0
    %1521 = vmatmul.mubr.bf16.gmra.mrb[0].mxu0 %v1455
    %v1522 = vpop.f32.mrb[0].mxu0
    %v1523 = vadd.f32 0.0, %v1522
    %v1524 = vpop.f32.mrb[0].mxu0
    %v1525 = vpop.f32.mrb[0].mxu0
    %v1526 = vadd.f32 0.0, %v1525
    %v1527 = vpop.f32.mrb[0].mxu0
    %1528 = vmatprep.mubr.bf16.mxu0 0
    %1529 = vmatmul.mubr.bf16.gmra.mrb[0].mxu0 %v1458
    %v1530 = vpop.f32.mrb[0].mxu0
    %v1531 = vadd.f32 0.0, %v1530
    %v1532 = vpop.f32.mrb[0].mxu0
    %v1533 = vpop.f32.mrb[0].mxu0
    %v1534 = vadd.f32 0.0, %v1533
    %v1535 = vpop.f32.mrb[0].mxu0
    %1536 = vmatprep.mubr.bf16.mxu0 0
    %1537 = vmatmul.mubr.bf16.gmra.mrb[0].mxu0 %v1461
    %v1538 = vpop.f32.mrb[0].mxu0
    %v1539 = vadd.f32 0.0, %v1538
    %v1540 = vpop.f32.mrb[0].mxu0
    %v1541 = vpop.f32.mrb[0].mxu0
    %v1542 = vadd.f32 0.0, %v1541
    %v1543 = vpop.f32.mrb[0].mxu0
    %1544 = vmatprep.mubr.bf16.mxu0 0
    %1545 = vmatmul.mubr.bf16.gmra.mrb[0].mxu0 %v1464
    %v1546 = vpop.f32.mrb[0].mxu0
    %v1547 = vadd.f32 0.0, %v1546
    %v1548 = vpop.f32.mrb[0].mxu0
    %v1549 = vpop.f32.mrb[0].mxu0
    %v1550 = vadd.f32 0.0, %v1549
    %v1551 = vpop.f32.mrb[0].mxu0
    %1552 = vmatprep.mubr.bf16.mxu0 0
    %1553 = vmatmul.mubr.bf16.gmra.mrb[0].mxu0 %v1467
    %v1554 = vpop.f32.mrb[0].mxu0
    %v1555 = vadd.f32 0.0, %v1554
    %v1556 = vpop.f32.mrb[0].mxu0
    %v1557 = vpop.f32.mrb[0].mxu0
    %v1558 = vadd.f32 0.0, %v1557
    %v1559 = vpop.f32.mrb[0].mxu0
    %1560 = vmatprep.mubr.bf16.mxu0 0
    %1561 = vmatmul.mubr.bf16.gmra.mrb[0].mxu0 %v1470
    %v1562 = vpop.f32.mrb[0].mxu0
    %v1563 = vadd.f32 0.0, %v1562
    %v1564 = vpop.f32.mrb[0].mxu0
    %v1565 = vpop.f32.mrb[0].mxu0
    %v1566 = vadd.f32 0.0, %v1565
    %v1567 = vpop.f32.mrb[0].mxu0
    %1568 = vdwg.mxu0
    %v1569 = vadd.f32 %v1143, %v1507
    %v1570 = vadd.f32 %v1144, %v1510
    %v1571 = vadd.f32 %v1145, %v1515
    %v1572 = vadd.f32 %v1146, %v1518
    %v1573 = vadd.f32 %v1147, %v1523
    %v1574 = vadd.f32 %v1148, %v1526
    %v1575 = vadd.f32 %v1149, %v1531
    %v1576 = vadd.f32 %v1150, %v1534
    %v1577 = vadd.f32 %v1151, %v1539
    %v1578 = vadd.f32 %v1152, %v1542
    %v1579 = vadd.f32 %v1153, %v1547
    %v1580 = vadd.f32 %v1154, %v1550
    %v1581 = vadd.f32 %v1155, %v1555
    %v1582 = vadd.f32 %v1156, %v1558
    %v1583 = vadd.f32 %v1157, %v1563
    %v1584 = vadd.f32 %v1158, %v1566
    %v1585 = vld [vmem:[#allocation9] sm:$0xf]
    %v1586 = vld [vmem:[#allocation9 + $0x4] sm:$0xf]
    %v1587 = vld [vmem:[%s956] sm:$0xe]
    %v1588 = vld [vmem:[%s956 + $0x8] sm:$0xe]
    %v1589 = vld [vmem:[%s956 + $0x10] sm:$0xe]
    %v1590 = vld [vmem:[%s956 + $0x18] sm:$0xe]
    %v1591 = vld [vmem:[%s956 + $0x20] sm:$0xe]
    %v1592 = vld [vmem:[%s956 + $0x28] sm:$0xe]
    %v1593 = vld [vmem:[%s956 + $0x30] sm:$0xe]
    %v1594 = vld [vmem:[%s956 + $0x38] sm:$0xe]
    %v1595 = vld [vmem:[%s956 + $0x50] sm:$0xe]
    %v1596 = vld [vmem:[%s956 + $0x58] sm:$0xe]
    %v1597 = vld [vmem:[%s956 + $0x60] sm:$0xe]
    %v1598 = vld [vmem:[%s956 + $0x68] sm:$0xe]
    %v1599 = vld [vmem:[%s956 + $0x70] sm:$0xe]
    %v1600 = vld [vmem:[%s956 + $0x78] sm:$0xe]
    %v1601 = vld [vmem:[%s956 + $0x80] sm:$0xe]
    %v1602 = vld [vmem:[%s956 + $0x88] sm:$0xe]
    %v1635 = vrot.slane %v1587, 5
    %v1636 = vrot.slane %v1635, 4
    %v1637 = vrot.slane %v1160, 5
    %v1638 = vsel %vm721, %v1636, %v1637
    %v1639 = vrot.slane %v1588, 5
    %v1640 = vrot.slane %v1639, 4
    %v1641 = vrot.slane %v1162, 5
    %v1642 = vsel %vm721, %v1640, %v1641
    %v1643 = vrot.slane %v1589, 5
    %v1644 = vrot.slane %v1643, 4
    %v1645 = vrot.slane %v1164, 5
    %v1646 = vsel %vm721, %v1644, %v1645
    %v1647 = vrot.slane %v1590, 5
    %v1648 = vrot.slane %v1647, 4
    %v1649 = vrot.slane %v1166, 5
    %v1650 = vsel %vm721, %v1648, %v1649
    %v1651 = vrot.slane %v1591, 5
    %v1652 = vrot.slane %v1651, 4
    %v1653 = vrot.slane %v1168, 5
    %v1654 = vsel %vm721, %v1652, %v1653
    %v1655 = vrot.slane %v1592, 5
    %v1656 = vrot.slane %v1655, 4
    %v1657 = vrot.slane %v1170, 5
    %v1658 = vsel %vm721, %v1656, %v1657
    %v1659 = vrot.slane %v1593, 5
    %v1660 = vrot.slane %v1659, 4
    %v1661 = vrot.slane %v1172, 5
    %v1662 = vsel %vm721, %v1660, %v1661
    %v1663 = vrot.slane %v1594, 5
    %v1664 = vrot.slane %v1663, 4
    %v1665 = vrot.slane %v1174, 5
    %v1666 = vsel %vm721, %v1664, %v1665
    %v1667 = vrot.slane %v1595, 5
    %v1668 = vrot.slane %v1667, 4
    %v1669 = vrot.slane %v1176, 5
    %v1670 = vsel %vm721, %v1668, %v1669
    %v1671 = vrot.slane %v1596, 5
    %v1672 = vrot.slane %v1671, 4
    %v1673 = vrot.slane %v1178, 5
    %v1674 = vsel %vm721, %v1672, %v1673
    %v1675 = vrot.slane %v1597, 5
    %v1676 = vrot.slane %v1675, 4
    %v1677 = vrot.slane %v1180, 5
    %v1678 = vsel %vm721, %v1676, %v1677
    %v1679 = vrot.slane %v1598, 5
    %v1680 = vrot.slane %v1679, 4
    %v1681 = vrot.slane %v1182, 5
    %v1682 = vsel %vm721, %v1680, %v1681
    %v1683 = vrot.slane %v1599, 5
    %v1684 = vrot.slane %v1683, 4
    %v1685 = vrot.slane %v1184, 5
    %v1686 = vsel %vm721, %v1684, %v1685
    %v1687 = vrot.slane %v1600, 5
    %v1688 = vrot.slane %v1687, 4
    %v1689 = vrot.slane %v1186, 5
    %v1690 = vsel %vm721, %v1688, %v1689
    %v1691 = vrot.slane %v1601, 5
    %v1692 = vrot.slane %v1691, 4
    %v1693 = vrot.slane %v1188, 5
    %v1694 = vsel %vm721, %v1692, %v1693
    %v1695 = vrot.slane %v1602, 5
    %v1696 = vrot.slane %v1695, 4
    %v1697 = vrot.slane %v1190, 5
    %v1698 = vsel %vm721, %v1696, %v1697
    %s1699 = scalar_lea.vmem [#allocation6], 40
    %v1700 = vld [vmem:[%s1699] sm:$0xf]
    %v1701 = vld [vmem:[%s1699 + $0x4] sm:$0xf]
    %v1702 = vunpack.c.l.b16 %v1638
    %v1703 = vunpack.c.l.b16 %v1642
    %v1704 = vunpack.c.l.b16 %v1646
    %v1705 = vunpack.c.l.b16 %v1650
    %v1706 = vunpack.c.l.b16 %v1654
    %v1707 = vunpack.c.l.b16 %v1658
    %v1708 = vunpack.c.l.b16 %v1662
    %v1709 = vunpack.c.l.b16 %v1666
    %v1710 = vunpack.c.l.b16 %v1670
    %v1711 = vunpack.c.l.b16 %v1674
    %v1712 = vunpack.c.l.b16 %v1678
    %v1713 = vunpack.c.l.b16 %v1682
    %v1714 = vunpack.c.l.b16 %v1686
    %v1715 = vunpack.c.l.b16 %v1690
    %v1716 = vunpack.c.l.b16 %v1694
    %v1717 = vunpack.c.l.b16 %v1698
    %v1718 = vpack.c.b16 %v1703, %v1702
    %v1719 = vpack.c.b16 %v1705, %v1704
    %v1720 = vpack.c.b16 %v1707, %v1706
    %v1721 = vpack.c.b16 %v1709, %v1708
    %v1722 = vpack.c.b16 %v1711, %v1710
    %v1723 = vpack.c.b16 %v1713, %v1712
    %v1724 = vpack.c.b16 %v1715, %v1714
    %v1725 = vpack.c.b16 %v1717, %v1716
    %v1728 = vunpack.c.l.b16 %v1700
    %v1729 = vunpack.c.l.b16 %v1701
    %v1730 = vpack.c.b16 %v1729, %v1728
    %v1733 = vsel %vm382, %v1718, 0
    %v1736 = vsel %vm382, %v1719, 0
    %v1739 = vsel %vm382, %v1720, 0
    %v1742 = vsel %vm382, %v1721, 0
    %v1745 = vsel %vm382, %v1722, 0
    %v1748 = vsel %vm382, %v1723, 0
    %v1751 = vsel %vm382, %v1724, 0
    %v1754 = vsel %vm382, %v1725, 0
    %1756 = vmatprep.subr.bf16.mxu0 0
    %1757 = vmatpush1.bf16.msra.mxu0 %v1730
    %1758 = vmatprep.subr.bf16.mxu0 0
    %1759 = vmatpush1.bf16.msra.mxu0 0
    %1760 = vmatprep.subr.bf16.mxu0 0
    %1761 = vmatpush1.bf16.msra.mxu0 0
    %1762 = vmatprep.subr.bf16.mxu0 0
    %1763 = vmatpush1.bf16.msra.mxu0 0
    %1764 = vmatprep.subr.bf16.mxu0 0
    %1765 = vmatpush1.bf16.msra.mxu0 0
    %1766 = vmatprep.subr.bf16.mxu0 0
    %1767 = vmatpush1.bf16.msra.mxu0 0
    %1768 = vmatprep.subr.bf16.mxu0 0
    %1769 = vmatpush1.bf16.msra.mxu0 0
    %1770 = vmatprep.subr.bf16.mxu0 0
    %1771 = vmatpush1.bf16.msra.mxu0 0
    %1772 = vmatprep.subr.bf16.mxu0 0
    %1773 = vmatpush1.bf16.msra.mxu0 0
    %1774 = vmatprep.subr.bf16.mxu0 0
    %1775 = vmatpush1.bf16.msra.mxu0 0
    %1776 = vmatprep.subr.bf16.mxu0 0
    %1777 = vmatpush1.bf16.msra.mxu0 0
    %1778 = vmatprep.subr.bf16.mxu0 0
    %1779 = vmatpush1.bf16.msra.mxu0 0
    %1780 = vmatprep.subr.bf16.mxu0 0
    %1781 = vmatpush1.bf16.msra.mxu0 0
    %1782 = vmatprep.subr.bf16.mxu0 0
    %1783 = vmatpush1.bf16.msra.mxu0 0
    %1784 = vmatprep.subr.bf16.mxu0 0
    %1785 = vmatpush1.bf16.msra.mxu0 0
    %1786 = vmatprep.subr.bf16.mxu0 0
    %1787 = vmatpush1.bf16.msra.mxu0 0
    %1788 = vmatprep.mubr.bf16.mxu0 0
    %1789 = vmatmul.mubr.bf16.gmra.mrb[0].mxu0 %v1733
    %v1790 = vpop.f32.mrb[0].mxu0
    %v1791 = vadd.f32 0.0, %v1790
    %v1792 = vpop.f32.mrb[0].mxu0
    %v1793 = vpop.f32.mrb[0].mxu0
    %v1794 = vadd.f32 0.0, %v1793
    %v1795 = vpop.f32.mrb[0].mxu0
    %1796 = vmatprep.mubr.bf16.mxu0 0
    %1797 = vmatmul.mubr.bf16.gmra.mrb[0].mxu0 %v1736
    %v1798 = vpop.f32.mrb[0].mxu0
    %v1799 = vadd.f32 0.0, %v1798
    %v1800 = vpop.f32.mrb[0].mxu0
    %v1801 = vpop.f32.mrb[0].mxu0
    %v1802 = vadd.f32 0.0, %v1801
    %v1803 = vpop.f32.mrb[0].mxu0
    %1804 = vmatprep.mubr.bf16.mxu0 0
    %1805 = vmatmul.mubr.bf16.gmra.mrb[0].mxu0 %v1739
    %v1806 = vpop.f32.mrb[0].mxu0
    %v1807 = vadd.f32 0.0, %v1806
    %v1808 = vpop.f32.mrb[0].mxu0
    %v1809 = vpop.f32.mrb[0].mxu0
    %v1810 = vadd.f32 0.0, %v1809
    %v1811 = vpop.f32.mrb[0].mxu0
    %1812 = vmatprep.mubr.bf16.mxu0 0
    %1813 = vmatmul.mubr.bf16.gmra.mrb[0].mxu0 %v1742
    %v1814 = vpop.f32.mrb[0].mxu0
    %v1815 = vadd.f32 0.0, %v1814
    %v1816 = vpop.f32.mrb[0].mxu0
    %v1817 = vpop.f32.mrb[0].mxu0
    %v1818 = vadd.f32 0.0, %v1817
    %v1819 = vpop.f32.mrb[0].mxu0
    %1820 = vmatprep.mubr.bf16.mxu0 0
    %1821 = vmatmul.mubr.bf16.gmra.mrb[0].mxu0 %v1745
    %v1822 = vpop.f32.mrb[0].mxu0
    %v1823 = vadd.f32 0.0, %v1822
    %v1824 = vpop.f32.mrb[0].mxu0
    %v1825 = vpop.f32.mrb[0].mxu0
    %v1826 = vadd.f32 0.0, %v1825
    %v1827 = vpop.f32.mrb[0].mxu0
    %1828 = vmatprep.mubr.bf16.mxu0 0
    %1829 = vmatmul.mubr.bf16.gmra.mrb[0].mxu0 %v1748
    %v1830 = vpop.f32.mrb[0].mxu0
    %v1831 = vadd.f32 0.0, %v1830
    %v1832 = vpop.f32.mrb[0].mxu0
    %v1833 = vpop.f32.mrb[0].mxu0
    %v1834 = vadd.f32 0.0, %v1833
    %v1835 = vpop.f32.mrb[0].mxu0
    %1836 = vmatprep.mubr.bf16.mxu0 0
    %1837 = vmatmul.mubr.bf16.gmra.mrb[0].mxu0 %v1751
    %v1838 = vpop.f32.mrb[0].mxu0
    %v1839 = vadd.f32 0.0, %v1838
    %v1840 = vpop.f32.mrb[0].mxu0
    %v1841 = vpop.f32.mrb[0].mxu0
    %v1842 = vadd.f32 0.0, %v1841
    %v1843 = vpop.f32.mrb[0].mxu0
    %1844 = vmatprep.mubr.bf16.mxu0 0
    %1845 = vmatmul.mubr.bf16.gmra.mrb[0].mxu0 %v1754
    %v1846 = vpop.f32.mrb[0].mxu0
    %v1847 = vadd.f32 0.0, %v1846
    %v1848 = vpop.f32.mrb[0].mxu0
    %v1849 = vpop.f32.mrb[0].mxu0
    %v1850 = vadd.f32 0.0, %v1849
    %v1851 = vpop.f32.mrb[0].mxu0
    %1852 = vdwg.mxu0
    %v1853 = vadd.f32 %v1569, %v1791
    %v1854 = vadd.f32 %v1570, %v1794
    %v1855 = vadd.f32 %v1571, %v1799
    %v1856 = vadd.f32 %v1572, %v1802
    %v1857 = vadd.f32 %v1573, %v1807
    %v1858 = vadd.f32 %v1574, %v1810
    %v1859 = vadd.f32 %v1575, %v1815
    %v1860 = vadd.f32 %v1576, %v1818
    %v1861 = vadd.f32 %v1577, %v1823
    %v1862 = vadd.f32 %v1578, %v1826
    %v1863 = vadd.f32 %v1579, %v1831
    %v1864 = vadd.f32 %v1580, %v1834
    %v1865 = vadd.f32 %v1581, %v1839
    %v1866 = vadd.f32 %v1582, %v1842
    %v1867 = vadd.f32 %v1583, %v1847
    %v1868 = vadd.f32 %v1584, %v1850
    %s1869 = scalar_lea.vmem [#allocation3], 16
    %v1870 = vld [vmem:[%s1869] sm:$0xf]
    %v1871 = vld [vmem:[%s1869 + $0x8] sm:$0xf]
    %v1872 = vld [vmem:[%s1869 + $0x10] sm:$0xf]
    %v1873 = vld [vmem:[%s1869 + $0x18] sm:$0xf]
    %v1874 = vld [vmem:[%s1869 + $0x20] sm:$0xf]
    %v1875 = vld [vmem:[%s1869 + $0x28] sm:$0xf]
    %v1876 = vld [vmem:[%s1869 + $0x30] sm:$0xf]
    %v1877 = vld [vmem:[%s1869 + $0x38] sm:$0xf]
    %v1878 = vld [vmem:[%s1869 + $0x50] sm:$0xf]
    %v1879 = vld [vmem:[%s1869 + $0x58] sm:$0xf]
    %v1880 = vld [vmem:[%s1869 + $0x60] sm:$0xf]
    %v1881 = vld [vmem:[%s1869 + $0x68] sm:$0xf]
    %v1882 = vld [vmem:[%s1869 + $0x70] sm:$0xf]
    %v1883 = vld [vmem:[%s1869 + $0x78] sm:$0xf]
    %v1884 = vld [vmem:[%s1869 + $0x80] sm:$0xf]
    %v1885 = vld [vmem:[%s1869 + $0x88] sm:$0xf]
    %s1886 = scalar_lea.vmem [#allocation6], 48
    %v1887 = vld [vmem:[%s1886] sm:$0xf]
    %v1888 = vld [vmem:[%s1886 + $0x4] sm:$0xf]
    %v1905 = vunpack.c.l.b16 %v1870
    %v1906 = vunpack.c.l.b16 %v1871
    %v1907 = vunpack.c.l.b16 %v1872
    %v1908 = vunpack.c.l.b16 %v1873
    %v1909 = vunpack.c.l.b16 %v1874
    %v1910 = vunpack.c.l.b16 %v1875
    %v1911 = vunpack.c.l.b16 %v1876
    %v1912 = vunpack.c.l.b16 %v1877
    %v1913 = vunpack.c.l.b16 %v1878
    %v1914 = vunpack.c.l.b16 %v1879
    %v1915 = vunpack.c.l.b16 %v1880
    %v1916 = vunpack.c.l.b16 %v1881
    %v1917 = vunpack.c.l.b16 %v1882
    %v1918 = vunpack.c.l.b16 %v1883
    %v1919 = vunpack.c.l.b16 %v1884
    %v1920 = vunpack.c.l.b16 %v1885
    %v1921 = vpack.c.b16 %v1906, %v1905
    %v1922 = vpack.c.b16 %v1908, %v1907
    %v1923 = vpack.c.b16 %v1910, %v1909
    %v1924 = vpack.c.b16 %v1912, %v1911
    %v1925 = vpack.c.b16 %v1914, %v1913
    %v1926 = vpack.c.b16 %v1916, %v1915
    %v1927 = vpack.c.b16 %v1918, %v1917
    %v1928 = vpack.c.b16 %v1920, %v1919
    %v1931 = vunpack.c.l.b16 %v1887
    %v1932 = vunpack.c.l.b16 %v1888
    %v1933 = vpack.c.b16 %v1932, %v1931
    %v1936 = vsel %vm382, %v1921, 0
    %v1939 = vsel %vm382, %v1922, 0
    %v1942 = vsel %vm382, %v1923, 0
    %v1945 = vsel %vm382, %v1924, 0
    %v1948 = vsel %vm382, %v1925, 0
    %v1951 = vsel %vm382, %v1926, 0
    %v1954 = vsel %vm382, %v1927, 0
    %v1957 = vsel %vm382, %v1928, 0
    %1959 = vmatprep.subr.bf16.mxu0 0
    %1960 = vmatpush1.bf16.msra.mxu0 %v1933
    %1961 = vmatprep.subr.bf16.mxu0 0
    %1962 = vmatpush1.bf16.msra.mxu0 0
    %1963 = vmatprep.subr.bf16.mxu0 0
    %1964 = vmatpush1.bf16.msra.mxu0 0
    %1965 = vmatprep.subr.bf16.mxu0 0
    %1966 = vmatpush1.bf16.msra.mxu0 0
    %1967 = vmatprep.subr.bf16.mxu0 0
    %1968 = vmatpush1.bf16.msra.mxu0 0
    %1969 = vmatprep.subr.bf16.mxu0 0
    %1970 = vmatpush1.bf16.msra.mxu0 0
    %1971 = vmatprep.subr.bf16.mxu0 0
    %1972 = vmatpush1.bf16.msra.mxu0 0
    %1973 = vmatprep.subr.bf16.mxu0 0
    %1974 = vmatpush1.bf16.msra.mxu0 0
    %1975 = vmatprep.subr.bf16.mxu0 0
    %1976 = vmatpush1.bf16.msra.mxu0 0
    %1977 = vmatprep.subr.bf16.mxu0 0
    %1978 = vmatpush1.bf16.msra.mxu0 0
    %1979 = vmatprep.subr.bf16.mxu0 0
    %1980 = vmatpush1.bf16.msra.mxu0 0
    %1981 = vmatprep.subr.bf16.mxu0 0
    %1982 = vmatpush1.bf16.msra.mxu0 0
    %1983 = vmatprep.subr.bf16.mxu0 0
    %1984 = vmatpush1.bf16.msra.mxu0 0
    %1985 = vmatprep.subr.bf16.mxu0 0
    %1986 = vmatpush1.bf16.msra.mxu0 0
    %1987 = vmatprep.subr.bf16.mxu0 0
    %1988 = vmatpush1.bf16.msra.mxu0 0
    %1989 = vmatprep.subr.bf16.mxu0 0
    %1990 = vmatpush1.bf16.msra.mxu0 0
    %1991 = vmatprep.mubr.bf16.mxu0 0
    %1992 = vmatmul.mubr.bf16.gmra.mrb[0].mxu0 %v1936
    %v1993 = vpop.f32.mrb[0].mxu0
    %v1994 = vadd.f32 0.0, %v1993
    %v1995 = vpop.f32.mrb[0].mxu0
    %v1996 = vpop.f32.mrb[0].mxu0
    %v1997 = vadd.f32 0.0, %v1996
    %v1998 = vpop.f32.mrb[0].mxu0
    %1999 = vmatprep.mubr.bf16.mxu0 0
    %2000 = vmatmul.mubr.bf16.gmra.mrb[0].mxu0 %v1939
    %v2001 = vpop.f32.mrb[0].mxu0
    %v2002 = vadd.f32 0.0, %v2001
    %v2003 = vpop.f32.mrb[0].mxu0
    %v2004 = vpop.f32.mrb[0].mxu0
    %v2005 = vadd.f32 0.0, %v2004
    %v2006 = vpop.f32.mrb[0].mxu0
    %2007 = vmatprep.mubr.bf16.mxu0 0
    %2008 = vmatmul.mubr.bf16.gmra.mrb[0].mxu0 %v1942
    %v2009 = vpop.f32.mrb[0].mxu0
    %v2010 = vadd.f32 0.0, %v2009
    %v2011 = vpop.f32.mrb[0].mxu0
    %v2012 = vpop.f32.mrb[0].mxu0
    %v2013 = vadd.f32 0.0, %v2012
    %v2014 = vpop.f32.mrb[0].mxu0
    %2015 = vmatprep.mubr.bf16.mxu0 0
    %2016 = vmatmul.mubr.bf16.gmra.mrb[0].mxu0 %v1945
    %v2017 = vpop.f32.mrb[0].mxu0
    %v2018 = vadd.f32 0.0, %v2017
    %v2019 = vpop.f32.mrb[0].mxu0
    %v2020 = vpop.f32.mrb[0].mxu0
    %v2021 = vadd.f32 0.0, %v2020
    %v2022 = vpop.f32.mrb[0].mxu0
    %2023 = vmatprep.mubr.bf16.mxu0 0
    %2024 = vmatmul.mubr.bf16.gmra.mrb[0].mxu0 %v1948
    %v2025 = vpop.f32.mrb[0].mxu0
    %v2026 = vadd.f32 0.0, %v2025
    %v2027 = vpop.f32.mrb[0].mxu0
    %v2028 = vpop.f32.mrb[0].mxu0
    %v2029 = vadd.f32 0.0, %v2028
    %v2030 = vpop.f32.mrb[0].mxu0
    %2031 = vmatprep.mubr.bf16.mxu0 0
    %2032 = vmatmul.mubr.bf16.gmra.mrb[0].mxu0 %v1951
    %v2033 = vpop.f32.mrb[0].mxu0
    %v2034 = vadd.f32 0.0, %v2033
    %v2035 = vpop.f32.mrb[0].mxu0
    %v2036 = vpop.f32.mrb[0].mxu0
    %v2037 = vadd.f32 0.0, %v2036
    %v2038 = vpop.f32.mrb[0].mxu0
    %2039 = vmatprep.mubr.bf16.mxu0 0
    %2040 = vmatmul.mubr.bf16.gmra.mrb[0].mxu0 %v1954
    %v2041 = vpop.f32.mrb[0].mxu0
    %v2042 = vadd.f32 0.0, %v2041
    %v2043 = vpop.f32.mrb[0].mxu0
    %v2044 = vpop.f32.mrb[0].mxu0
    %v2045 = vadd.f32 0.0, %v2044
    %v2046 = vpop.f32.mrb[0].mxu0
    %2047 = vmatprep.mubr.bf16.mxu0 0
    %2048 = vmatmul.mubr.bf16.gmra.mrb[0].mxu0 %v1957
    %v2049 = vpop.f32.mrb[0].mxu0
    %v2050 = vadd.f32 0.0, %v2049
    %v2051 = vpop.f32.mrb[0].mxu0
    %v2052 = vpop.f32.mrb[0].mxu0
    %v2053 = vadd.f32 0.0, %v2052
    %v2054 = vpop.f32.mrb[0].mxu0
    %2055 = vdwg.mxu0
    %v2056 = vadd.f32 %v1853, %v1994
    %v2057 = vadd.f32 %v1854, %v1997
    %v2058 = vadd.f32 %v1855, %v2002
    %v2059 = vadd.f32 %v1856, %v2005
    %v2060 = vadd.f32 %v1857, %v2010
    %v2061 = vadd.f32 %v1858, %v2013
    %v2062 = vadd.f32 %v1859, %v2018
    %v2063 = vadd.f32 %v1860, %v2021
    %v2064 = vadd.f32 %v1861, %v2026
    %v2065 = vadd.f32 %v1862, %v2029
    %v2066 = vadd.f32 %v1863, %v2034
    %v2067 = vadd.f32 %v1864, %v2037
    %v2068 = vadd.f32 %v1865, %v2042
    %v2069 = vadd.f32 %v1866, %v2045
    %v2070 = vadd.f32 %v1867, %v2050
    %v2071 = vadd.f32 %v1868, %v2053
    %v2072 = vld [vmem:[%s1869] sm:$0xf]
    %v2073 = vld [vmem:[%s1869 + $0x4] sm:$0x1]
    %v2074 = vld [vmem:[%s1869 + $0x8] sm:$0xf]
    %v2075 = vld [vmem:[%s1869 + $0xc] sm:$0x1]
    %v2076 = vld [vmem:[%s1869 + $0x10] sm:$0xf]
    %v2077 = vld [vmem:[%s1869 + $0x14] sm:$0x1]
    %v2078 = vld [vmem:[%s1869 + $0x18] sm:$0xf]
    %v2079 = vld [vmem:[%s1869 + $0x1c] sm:$0x1]
    %v2080 = vld [vmem:[%s1869 + $0x20] sm:$0xf]
    %v2081 = vld [vmem:[%s1869 + $0x24] sm:$0x1]
    %v2082 = vld [vmem:[%s1869 + $0x28] sm:$0xf]
    %v2083 = vld [vmem:[%s1869 + $0x2c] sm:$0x1]
    %v2084 = vld [vmem:[%s1869 + $0x30] sm:$0xf]
    %v2085 = vld [vmem:[%s1869 + $0x34] sm:$0x1]
    %v2086 = vld [vmem:[%s1869 + $0x38] sm:$0xf]
    %v2087 = vld [vmem:[%s1869 + $0x3c] sm:$0x1]
    %v2088 = vld [vmem:[%s1869 + $0x50] sm:$0xf]
    %v2089 = vld [vmem:[%s1869 + $0x54] sm:$0x1]
    %v2090 = vld [vmem:[%s1869 + $0x58] sm:$0xf]
    %v2091 = vld [vmem:[%s1869 + $0x5c] sm:$0x1]
    %v2092 = vld [vmem:[%s1869 + $0x60] sm:$0xf]
    %v2093 = vld [vmem:[%s1869 + $0x64] sm:$0x1]
    %v2094 = vld [vmem:[%s1869 + $0x68] sm:$0xf]
    %v2095 = vld [vmem:[%s1869 + $0x6c] sm:$0x1]
    %v2096 = vld [vmem:[%s1869 + $0x70] sm:$0xf]
    %v2097 = vld [vmem:[%s1869 + $0x74] sm:$0x1]
    %v2098 = vld [vmem:[%s1869 + $0x78] sm:$0xf]
    %v2099 = vld [vmem:[%s1869 + $0x7c] sm:$0x1]
    %v2100 = vld [vmem:[%s1869 + $0x80] sm:$0xf]
    %v2101 = vld [vmem:[%s1869 + $0x84] sm:$0x1]
    %v2102 = vld [vmem:[%s1869 + $0x88] sm:$0xf]
    %v2103 = vld [vmem:[%s1869 + $0x8c] sm:$0x1]
    %v2105 = vshrl.u32 %v2072, 16
    %v2107 = vrot.slane %v2105, 4
    %v2108 = vshll.u32 %v2072, 16
    %v2110 = vrot.slane %v2108, 5
    %v2111 = vor.u32 %v2107, %v2110
    %v2112 = vrot.slane %v2111, 4
    %v2114 = vshll.u32 %v2073, 16
    %v2116 = vrot.slane %v2114, 5
    %v2117 = vsel %vm124, %v2112, %v2116
    %v2119 = vshrl.u32 %v2074, 16
    %v2121 = vrot.slane %v2119, 4
    %v2122 = vshll.u32 %v2074, 16
    %v2124 = vrot.slane %v2122, 5
    %v2125 = vor.u32 %v2121, %v2124
    %v2126 = vrot.slane %v2125, 4
    %v2128 = vshll.u32 %v2075, 16
    %v2130 = vrot.slane %v2128, 5
    %v2131 = vsel %vm124, %v2126, %v2130
    %v2133 = vshrl.u32 %v2076, 16
    %v2135 = vrot.slane %v2133, 4
    %v2136 = vshll.u32 %v2076, 16
    %v2138 = vrot.slane %v2136, 5
    %v2139 = vor.u32 %v2135, %v2138
    %v2140 = vrot.slane %v2139, 4
    %v2142 = vshll.u32 %v2077, 16
    %v2144 = vrot.slane %v2142, 5
    %v2145 = vsel %vm124, %v2140, %v2144
    %v2147 = vshrl.u32 %v2078, 16
    %v2149 = vrot.slane %v2147, 4
    %v2150 = vshll.u32 %v2078, 16
    %v2152 = vrot.slane %v2150, 5
    %v2153 = vor.u32 %v2149, %v2152
    %v2154 = vrot.slane %v2153, 4
    %v2156 = vshll.u32 %v2079, 16
    %v2158 = vrot.slane %v2156, 5
    %v2159 = vsel %vm124, %v2154, %v2158
    %v2161 = vshrl.u32 %v2080, 16
    %v2163 = vrot.slane %v2161, 4
    %v2164 = vshll.u32 %v2080, 16
    %v2166 = vrot.slane %v2164, 5
    %v2167 = vor.u32 %v2163, %v2166
    %v2168 = vrot.slane %v2167, 4
    %v2170 = vshll.u32 %v2081, 16
    %v2172 = vrot.slane %v2170, 5
    %v2173 = vsel %vm124, %v2168, %v2172
    %v2175 = vshrl.u32 %v2082, 16
    %v2177 = vrot.slane %v2175, 4
    %v2178 = vshll.u32 %v2082, 16
    %v2180 = vrot.slane %v2178, 5
    %v2181 = vor.u32 %v2177, %v2180
    %v2182 = vrot.slane %v2181, 4
    %v2184 = vshll.u32 %v2083, 16
    %v2186 = vrot.slane %v2184, 5
    %v2187 = vsel %vm124, %v2182, %v2186
    %v2189 = vshrl.u32 %v2084, 16
    %v2191 = vrot.slane %v2189, 4
    %v2192 = vshll.u32 %v2084, 16
    %v2194 = vrot.slane %v2192, 5
    %v2195 = vor.u32 %v2191, %v2194
    %v2196 = vrot.slane %v2195, 4
    %v2198 = vshll.u32 %v2085, 16
    %v2200 = vrot.slane %v2198, 5
    %v2201 = vsel %vm124, %v2196, %v2200
    %v2203 = vshrl.u32 %v2086, 16
    %v2205 = vrot.slane %v2203, 4
    %v2206 = vshll.u32 %v2086, 16
    %v2208 = vrot.slane %v2206, 5
    %v2209 = vor.u32 %v2205, %v2208
    %v2210 = vrot.slane %v2209, 4
    %v2212 = vshll.u32 %v2087, 16
    %v2214 = vrot.slane %v2212, 5
    %v2215 = vsel %vm124, %v2210, %v2214
    %v2217 = vshrl.u32 %v2088, 16
    %v2219 = vrot.slane %v2217, 4
    %v2220 = vshll.u32 %v2088, 16
    %v2222 = vrot.slane %v2220, 5
    %v2223 = vor.u32 %v2219, %v2222
    %v2224 = vrot.slane %v2223, 4
    %v2226 = vshll.u32 %v2089, 16
    %v2228 = vrot.slane %v2226, 5
    %v2229 = vsel %vm124, %v2224, %v2228
    %v2231 = vshrl.u32 %v2090, 16
    %v2233 = vrot.slane %v2231, 4
    %v2234 = vshll.u32 %v2090, 16
    %v2236 = vrot.slane %v2234, 5
    %v2237 = vor.u32 %v2233, %v2236
    %v2238 = vrot.slane %v2237, 4
    %v2240 = vshll.u32 %v2091, 16
    %v2242 = vrot.slane %v2240, 5
    %v2243 = vsel %vm124, %v2238, %v2242
    %v2245 = vshrl.u32 %v2092, 16
    %v2247 = vrot.slane %v2245, 4
    %v2248 = vshll.u32 %v2092, 16
    %v2250 = vrot.slane %v2248, 5
    %v2251 = vor.u32 %v2247, %v2250
    %v2252 = vrot.slane %v2251, 4
    %v2254 = vshll.u32 %v2093, 16
    %v2256 = vrot.slane %v2254, 5
    %v2257 = vsel %vm124, %v2252, %v2256
    %v2259 = vshrl.u32 %v2094, 16
    %v2261 = vrot.slane %v2259, 4
    %v2262 = vshll.u32 %v2094, 16
    %v2264 = vrot.slane %v2262, 5
    %v2265 = vor.u32 %v2261, %v2264
    %v2266 = vrot.slane %v2265, 4
    %v2268 = vshll.u32 %v2095, 16
    %v2270 = vrot.slane %v2268, 5
    %v2271 = vsel %vm124, %v2266, %v2270
    %v2273 = vshrl.u32 %v2096, 16
    %v2275 = vrot.slane %v2273, 4
    %v2276 = vshll.u32 %v2096, 16
    %v2278 = vrot.slane %v2276, 5
    %v2279 = vor.u32 %v2275, %v2278
    %v2280 = vrot.slane %v2279, 4
    %v2282 = vshll.u32 %v2097, 16
    %v2284 = vrot.slane %v2282, 5
    %v2285 = vsel %vm124, %v2280, %v2284
    %v2287 = vshrl.u32 %v2098, 16
    %v2289 = vrot.slane %v2287, 4
    %v2290 = vshll.u32 %v2098, 16
    %v2292 = vrot.slane %v2290, 5
    %v2293 = vor.u32 %v2289, %v2292
    %v2294 = vrot.slane %v2293, 4
    %v2296 = vshll.u32 %v2099, 16
    %v2298 = vrot.slane %v2296, 5
    %v2299 = vsel %vm124, %v2294, %v2298
    %v2301 = vshrl.u32 %v2100, 16
    %v2303 = vrot.slane %v2301, 4
    %v2304 = vshll.u32 %v2100, 16
    %v2306 = vrot.slane %v2304, 5
    %v2307 = vor.u32 %v2303, %v2306
    %v2308 = vrot.slane %v2307, 4
    %v2310 = vshll.u32 %v2101, 16
    %v2312 = vrot.slane %v2310, 5
    %v2313 = vsel %vm124, %v2308, %v2312
    %v2315 = vshrl.u32 %v2102, 16
    %v2317 = vrot.slane %v2315, 4
    %v2318 = vshll.u32 %v2102, 16
    %v2320 = vrot.slane %v2318, 5
    %v2321 = vor.u32 %v2317, %v2320
    %v2322 = vrot.slane %v2321, 4
    %v2324 = vshll.u32 %v2103, 16
    %v2326 = vrot.slane %v2324, 5
    %v2327 = vsel %vm124, %v2322, %v2326
    %s2328 = scalar_lea.vmem [#allocation6], 56
    %v2329 = vld [vmem:[%s2328] sm:$0xf]
    %v2330 = vld [vmem:[%s2328 + $0x4] sm:$0xf]
    %v2331 = vunpack.c.l.b16 %v2117
    %v2332 = vunpack.c.l.b16 %v2131
    %v2333 = vunpack.c.l.b16 %v2145
    %v2334 = vunpack.c.l.b16 %v2159
    %v2335 = vunpack.c.l.b16 %v2173
    %v2336 = vunpack.c.l.b16 %v2187
    %v2337 = vunpack.c.l.b16 %v2201
    %v2338 = vunpack.c.l.b16 %v2215
    %v2339 = vunpack.c.l.b16 %v2229
    %v2340 = vunpack.c.l.b16 %v2243
    %v2341 = vunpack.c.l.b16 %v2257
    %v2342 = vunpack.c.l.b16 %v2271
    %v2343 = vunpack.c.l.b16 %v2285
    %v2344 = vunpack.c.l.b16 %v2299
    %v2345 = vunpack.c.l.b16 %v2313
    %v2346 = vunpack.c.l.b16 %v2327
    %v2347 = vpack.c.b16 %v2332, %v2331
    %v2348 = vpack.c.b16 %v2334, %v2333
    %v2349 = vpack.c.b16 %v2336, %v2335
    %v2350 = vpack.c.b16 %v2338, %v2337
    %v2351 = vpack.c.b16 %v2340, %v2339
    %v2352 = vpack.c.b16 %v2342, %v2341
    %v2353 = vpack.c.b16 %v2344, %v2343
    %v2354 = vpack.c.b16 %v2346, %v2345
    %v2357 = vunpack.c.l.b16 %v2329
    %v2358 = vunpack.c.l.b16 %v2330
    %v2359 = vpack.c.b16 %v2358, %v2357
    %v2362 = vsel %vm382, %v2347, 0
    %v2365 = vsel %vm382, %v2348, 0
    %v2368 = vsel %vm382, %v2349, 0
    %v2371 = vsel %vm382, %v2350, 0
    %v2374 = vsel %vm382, %v2351, 0
    %v2377 = vsel %vm382, %v2352, 0
    %v2380 = vsel %vm382, %v2353, 0
    %v2383 = vsel %vm382, %v2354, 0
    %2385 = vmatprep.subr.bf16.mxu0 0
    %2386 = vmatpush1.bf16.msra.mxu0 %v2359
    %2387 = vmatprep.subr.bf16.mxu0 0
    %2388 = vmatpush1.bf16.msra.mxu0 0
    %2389 = vmatprep.subr.bf16.mxu0 0
    %2390 = vmatpush1.bf16.msra.mxu0 0
    %2391 = vmatprep.subr.bf16.mxu0 0
    %2392 = vmatpush1.bf16.msra.mxu0 0
    %2393 = vmatprep.subr.bf16.mxu0 0
    %2394 = vmatpush1.bf16.msra.mxu0 0
    %2395 = vmatprep.subr.bf16.mxu0 0
    %2396 = vmatpush1.bf16.msra.mxu0 0
    %2397 = vmatprep.subr.bf16.mxu0 0
    %2398 = vmatpush1.bf16.msra.mxu0 0
    %2399 = vmatprep.subr.bf16.mxu0 0
    %2400 = vmatpush1.bf16.msra.mxu0 0
    %2401 = vmatprep.subr.bf16.mxu0 0
    %2402 = vmatpush1.bf16.msra.mxu0 0
    %2403 = vmatprep.subr.bf16.mxu0 0
    %2404 = vmatpush1.bf16.msra.mxu0 0
    %2405 = vmatprep.subr.bf16.mxu0 0
    %2406 = vmatpush1.bf16.msra.mxu0 0
    %2407 = vmatprep.subr.bf16.mxu0 0
    %2408 = vmatpush1.bf16.msra.mxu0 0
    %2409 = vmatprep.subr.bf16.mxu0 0
    %2410 = vmatpush1.bf16.msra.mxu0 0
    %2411 = vmatprep.subr.bf16.mxu0 0
    %2412 = vmatpush1.bf16.msra.mxu0 0
    %2413 = vmatprep.subr.bf16.mxu0 0
    %2414 = vmatpush1.bf16.msra.mxu0 0
    %2415 = vmatprep.subr.bf16.mxu0 0
    %2416 = vmatpush1.bf16.msra.mxu0 0
    %2417 = vmatprep.mubr.bf16.mxu0 0
    %2418 = vmatmul.mubr.bf16.gmra.mrb[0].mxu0 %v2362
    %v2419 = vpop.f32.mrb[0].mxu0
    %v2420 = vadd.f32 0.0, %v2419
    %v2421 = vpop.f32.mrb[0].mxu0
    %v2422 = vpop.f32.mrb[0].mxu0
    %v2423 = vadd.f32 0.0, %v2422
    %v2424 = vpop.f32.mrb[0].mxu0
    %2425 = vmatprep.mubr.bf16.mxu0 0
    %2426 = vmatmul.mubr.bf16.gmra.mrb[0].mxu0 %v2365
    %v2427 = vpop.f32.mrb[0].mxu0
    %v2428 = vadd.f32 0.0, %v2427
    %v2429 = vpop.f32.mrb[0].mxu0
    %v2430 = vpop.f32.mrb[0].mxu0
    %v2431 = vadd.f32 0.0, %v2430
    %v2432 = vpop.f32.mrb[0].mxu0
    %2433 = vmatprep.mubr.bf16.mxu0 0
    %2434 = vmatmul.mubr.bf16.gmra.mrb[0].mxu0 %v2368
    %v2435 = vpop.f32.mrb[0].mxu0
    %v2436 = vadd.f32 0.0, %v2435
    %v2437 = vpop.f32.mrb[0].mxu0
    %v2438 = vpop.f32.mrb[0].mxu0
    %v2439 = vadd.f32 0.0, %v2438
    %v2440 = vpop.f32.mrb[0].mxu0
    %2441 = vmatprep.mubr.bf16.mxu0 0
    %2442 = vmatmul.mubr.bf16.gmra.mrb[0].mxu0 %v2371
    %v2443 = vpop.f32.mrb[0].mxu0
    %v2444 = vadd.f32 0.0, %v2443
    %v2445 = vpop.f32.mrb[0].mxu0
    %v2446 = vpop.f32.mrb[0].mxu0
    %v2447 = vadd.f32 0.0, %v2446
    %v2448 = vpop.f32.mrb[0].mxu0
    %2449 = vmatprep.mubr.bf16.mxu0 0
    %2450 = vmatmul.mubr.bf16.gmra.mrb[0].mxu0 %v2374
    %v2451 = vpop.f32.mrb[0].mxu0
    %v2452 = vadd.f32 0.0, %v2451
    %v2453 = vpop.f32.mrb[0].mxu0
    %v2454 = vpop.f32.mrb[0].mxu0
    %v2455 = vadd.f32 0.0, %v2454
    %v2456 = vpop.f32.mrb[0].mxu0
    %2457 = vmatprep.mubr.bf16.mxu0 0
    %2458 = vmatmul.mubr.bf16.gmra.mrb[0].mxu0 %v2377
    %v2459 = vpop.f32.mrb[0].mxu0
    %v2460 = vadd.f32 0.0, %v2459
    %v2461 = vpop.f32.mrb[0].mxu0
    %v2462 = vpop.f32.mrb[0].mxu0
    %v2463 = vadd.f32 0.0, %v2462
    %v2464 = vpop.f32.mrb[0].mxu0
    %2465 = vmatprep.mubr.bf16.mxu0 0
    %2466 = vmatmul.mubr.bf16.gmra.mrb[0].mxu0 %v2380
    %v2467 = vpop.f32.mrb[0].mxu0
    %v2468 = vadd.f32 0.0, %v2467
    %v2469 = vpop.f32.mrb[0].mxu0
    %v2470 = vpop.f32.mrb[0].mxu0
    %v2471 = vadd.f32 0.0, %v2470
    %v2472 = vpop.f32.mrb[0].mxu0
    %2473 = vmatprep.mubr.bf16.mxu0 0
    %2474 = vmatmul.mubr.bf16.gmra.mrb[0].mxu0 %v2383
    %v2475 = vpop.f32.mrb[0].mxu0
    %v2476 = vadd.f32 0.0, %v2475
    %v2477 = vpop.f32.mrb[0].mxu0
    %v2478 = vpop.f32.mrb[0].mxu0
    %v2479 = vadd.f32 0.0, %v2478
    %v2480 = vpop.f32.mrb[0].mxu0
    %2481 = vdwg.mxu0
    %v2482 = vadd.f32 %v2056, %v2420
    %v2483 = vadd.f32 %v2057, %v2423
    %v2484 = vadd.f32 %v2058, %v2428
    %v2485 = vadd.f32 %v2059, %v2431
    %v2486 = vadd.f32 %v2060, %v2436
    %v2487 = vadd.f32 %v2061, %v2439
    %v2488 = vadd.f32 %v2062, %v2444
    %v2489 = vadd.f32 %v2063, %v2447
    %v2490 = vadd.f32 %v2064, %v2452
    %v2491 = vadd.f32 %v2065, %v2455
    %v2492 = vadd.f32 %v2066, %v2460
    %v2493 = vadd.f32 %v2067, %v2463
    %v2494 = vadd.f32 %v2068, %v2468
    %v2495 = vadd.f32 %v2069, %v2471
    %v2496 = vadd.f32 %v2070, %v2476
    %v2497 = vadd.f32 %v2071, %v2479
    %v2498 = vld [vmem:[%s1869] sm:$0xe]
    %v2499 = vld [vmem:[%s1869 + $0x8] sm:$0xe]
    %v2500 = vld [vmem:[%s1869 + $0x10] sm:$0xe]
    %v2501 = vld [vmem:[%s1869 + $0x18] sm:$0xe]
    %v2502 = vld [vmem:[%s1869 + $0x20] sm:$0xe]
    %v2503 = vld [vmem:[%s1869 + $0x28] sm:$0xe]
    %v2504 = vld [vmem:[%s1869 + $0x30] sm:$0xe]
    %v2505 = vld [vmem:[%s1869 + $0x38] sm:$0xe]
    %v2506 = vld [vmem:[%s1869 + $0x50] sm:$0xe]
    %v2507 = vld [vmem:[%s1869 + $0x58] sm:$0xe]
    %v2508 = vld [vmem:[%s1869 + $0x60] sm:$0xe]
    %v2509 = vld [vmem:[%s1869 + $0x68] sm:$0xe]
    %v2510 = vld [vmem:[%s1869 + $0x70] sm:$0xe]
    %v2511 = vld [vmem:[%s1869 + $0x78] sm:$0xe]
    %v2512 = vld [vmem:[%s1869 + $0x80] sm:$0xe]
    %v2513 = vld [vmem:[%s1869 + $0x88] sm:$0xe]
    %v2546 = vrot.slane %v2498, 5
    %v2547 = vrot.slane %v2546, 4
    %v2548 = vrot.slane %v2073, 5
    %v2549 = vsel %vm721, %v2547, %v2548
    %v2550 = vrot.slane %v2499, 5
    %v2551 = vrot.slane %v2550, 4
    %v2552 = vrot.slane %v2075, 5
    %v2553 = vsel %vm721, %v2551, %v2552
    %v2554 = vrot.slane %v2500, 5
    %v2555 = vrot.slane %v2554, 4
    %v2556 = vrot.slane %v2077, 5
    %v2557 = vsel %vm721, %v2555, %v2556
    %v2558 = vrot.slane %v2501, 5
    %v2559 = vrot.slane %v2558, 4
    %v2560 = vrot.slane %v2079, 5
    %v2561 = vsel %vm721, %v2559, %v2560
    %v2562 = vrot.slane %v2502, 5
    %v2563 = vrot.slane %v2562, 4
    %v2564 = vrot.slane %v2081, 5
    %v2565 = vsel %vm721, %v2563, %v2564
    %v2566 = vrot.slane %v2503, 5
    %v2567 = vrot.slane %v2566, 4
    %v2568 = vrot.slane %v2083, 5
    %v2569 = vsel %vm721, %v2567, %v2568
    %v2570 = vrot.slane %v2504, 5
    %v2571 = vrot.slane %v2570, 4
    %v2572 = vrot.slane %v2085, 5
    %v2573 = vsel %vm721, %v2571, %v2572
    %v2574 = vrot.slane %v2505, 5
    %v2575 = vrot.slane %v2574, 4
    %v2576 = vrot.slane %v2087, 5
    %v2577 = vsel %vm721, %v2575, %v2576
    %v2578 = vrot.slane %v2506, 5
    %v2579 = vrot.slane %v2578, 4
    %v2580 = vrot.slane %v2089, 5
    %v2581 = vsel %vm721, %v2579, %v2580
    %v2582 = vrot.slane %v2507, 5
    %v2583 = vrot.slane %v2582, 4
    %v2584 = vrot.slane %v2091, 5
    %v2585 = vsel %vm721, %v2583, %v2584
    %v2586 = vrot.slane %v2508, 5
    %v2587 = vrot.slane %v2586, 4
    %v2588 = vrot.slane %v2093, 5
    %v2589 = vsel %vm721, %v2587, %v2588
    %v2590 = vrot.slane %v2509, 5
    %v2591 = vrot.slane %v2590, 4
    %v2592 = vrot.slane %v2095, 5
    %v2593 = vsel %vm721, %v2591, %v2592
    %v2594 = vrot.slane %v2510, 5
    %v2595 = vrot.slane %v2594, 4
    %v2596 = vrot.slane %v2097, 5
    %v2597 = vsel %vm721, %v2595, %v2596
    %v2598 = vrot.slane %v2511, 5
    %v2599 = vrot.slane %v2598, 4
    %v2600 = vrot.slane %v2099, 5
    %v2601 = vsel %vm721, %v2599, %v2600
    %v2602 = vrot.slane %v2512, 5
    %v2603 = vrot.slane %v2602, 4
    %v2604 = vrot.slane %v2101, 5
    %v2605 = vsel %vm721, %v2603, %v2604
    %v2606 = vrot.slane %v2513, 5
    %v2607 = vrot.slane %v2606, 4
    %v2608 = vrot.slane %v2103, 5
    %v2609 = vsel %vm721, %v2607, %v2608
    %s2610 = scalar_lea.vmem [#allocation6], 64
    %v2611 = vld [vmem:[%s2610] sm:$0xf]
    %v2612 = vld [vmem:[%s2610 + $0x4] sm:$0xf]
    %v2613 = vunpack.c.l.b16 %v2549
    %v2614 = vunpack.c.l.b16 %v2553
    %v2615 = vunpack.c.l.b16 %v2557
    %v2616 = vunpack.c.l.b16 %v2561
    %v2617 = vunpack.c.l.b16 %v2565
    %v2618 = vunpack.c.l.b16 %v2569
    %v2619 = vunpack.c.l.b16 %v2573
    %v2620 = vunpack.c.l.b16 %v2577
    %v2621 = vunpack.c.l.b16 %v2581
    %v2622 = vunpack.c.l.b16 %v2585
    %v2623 = vunpack.c.l.b16 %v2589
    %v2624 = vunpack.c.l.b16 %v2593
    %v2625 = vunpack.c.l.b16 %v2597
    %v2626 = vunpack.c.l.b16 %v2601
    %v2627 = vunpack.c.l.b16 %v2605
    %v2628 = vunpack.c.l.b16 %v2609
    %v2629 = vpack.c.b16 %v2614, %v2613
    %v2630 = vpack.c.b16 %v2616, %v2615
    %v2631 = vpack.c.b16 %v2618, %v2617
    %v2632 = vpack.c.b16 %v2620, %v2619
    %v2633 = vpack.c.b16 %v2622, %v2621
    %v2634 = vpack.c.b16 %v2624, %v2623
    %v2635 = vpack.c.b16 %v2626, %v2625
    %v2636 = vpack.c.b16 %v2628, %v2627
    %v2639 = vunpack.c.l.b16 %v2611
    %v2640 = vunpack.c.l.b16 %v2612
    %v2641 = vpack.c.b16 %v2640, %v2639
    %v2644 = vsel %vm382, %v2629, 0
    %v2647 = vsel %vm382, %v2630, 0
    %v2650 = vsel %vm382, %v2631, 0
    %v2653 = vsel %vm382, %v2632, 0
    %v2656 = vsel %vm382, %v2633, 0
    %v2659 = vsel %vm382, %v2634, 0
    %v2662 = vsel %vm382, %v2635, 0
    %v2665 = vsel %vm382, %v2636, 0
    %2667 = vmatprep.subr.bf16.mxu0 0
    %2668 = vmatpush1.bf16.msra.mxu0 %v2641
    %2669 = vmatprep.subr.bf16.mxu0 0
    %2670 = vmatpush1.bf16.msra.mxu0 0
    %2671 = vmatprep.subr.bf16.mxu0 0
    %2672 = vmatpush1.bf16.msra.mxu0 0
    %2673 = vmatprep.subr.bf16.mxu0 0
    %2674 = vmatpush1.bf16.msra.mxu0 0
    %2675 = vmatprep.subr.bf16.mxu0 0
    %2676 = vmatpush1.bf16.msra.mxu0 0
    %2677 = vmatprep.subr.bf16.mxu0 0
    %2678 = vmatpush1.bf16.msra.mxu0 0
    %2679 = vmatprep.subr.bf16.mxu0 0
    %2680 = vmatpush1.bf16.msra.mxu0 0
    %2681 = vmatprep.subr.bf16.mxu0 0
    %2682 = vmatpush1.bf16.msra.mxu0 0
    %2683 = vmatprep.subr.bf16.mxu0 0
    %2684 = vmatpush1.bf16.msra.mxu0 0
    %2685 = vmatprep.subr.bf16.mxu0 0
    %2686 = vmatpush1.bf16.msra.mxu0 0
    %2687 = vmatprep.subr.bf16.mxu0 0
    %2688 = vmatpush1.bf16.msra.mxu0 0
    %2689 = vmatprep.subr.bf16.mxu0 0
    %2690 = vmatpush1.bf16.msra.mxu0 0
    %2691 = vmatprep.subr.bf16.mxu0 0
    %2692 = vmatpush1.bf16.msra.mxu0 0
    %2693 = vmatprep.subr.bf16.mxu0 0
    %2694 = vmatpush1.bf16.msra.mxu0 0
    %2695 = vmatprep.subr.bf16.mxu0 0
    %2696 = vmatpush1.bf16.msra.mxu0 0
    %2697 = vmatprep.subr.bf16.mxu0 0
    %2698 = vmatpush1.bf16.msra.mxu0 0
    %2699 = vmatprep.mubr.bf16.mxu0 0
    %2700 = vmatmul.mubr.bf16.gmra.mrb[0].mxu0 %v2644
    %v2701 = vpop.f32.mrb[0].mxu0
    %v2702 = vadd.f32 0.0, %v2701
    %v2703 = vpop.f32.mrb[0].mxu0
    %v2704 = vpop.f32.mrb[0].mxu0
    %v2705 = vadd.f32 0.0, %v2704
    %v2706 = vpop.f32.mrb[0].mxu0
    %2707 = vmatprep.mubr.bf16.mxu0 0
    %2708 = vmatmul.mubr.bf16.gmra.mrb[0].mxu0 %v2647
    %v2709 = vpop.f32.mrb[0].mxu0
    %v2710 = vadd.f32 0.0, %v2709
    %v2711 = vpop.f32.mrb[0].mxu0
    %v2712 = vpop.f32.mrb[0].mxu0
    %v2713 = vadd.f32 0.0, %v2712
    %v2714 = vpop.f32.mrb[0].mxu0
    %2715 = vmatprep.mubr.bf16.mxu0 0
    %2716 = vmatmul.mubr.bf16.gmra.mrb[0].mxu0 %v2650
    %v2717 = vpop.f32.mrb[0].mxu0
    %v2718 = vadd.f32 0.0, %v2717
    %v2719 = vpop.f32.mrb[0].mxu0
    %v2720 = vpop.f32.mrb[0].mxu0
    %v2721 = vadd.f32 0.0, %v2720
    %v2722 = vpop.f32.mrb[0].mxu0
    %2723 = vmatprep.mubr.bf16.mxu0 0
    %2724 = vmatmul.mubr.bf16.gmra.mrb[0].mxu0 %v2653
    %v2725 = vpop.f32.mrb[0].mxu0
    %v2726 = vadd.f32 0.0, %v2725
    %v2727 = vpop.f32.mrb[0].mxu0
    %v2728 = vpop.f32.mrb[0].mxu0
    %v2729 = vadd.f32 0.0, %v2728
    %v2730 = vpop.f32.mrb[0].mxu0
    %2731 = vmatprep.mubr.bf16.mxu0 0
    %2732 = vmatmul.mubr.bf16.gmra.mrb[0].mxu0 %v2656
    %v2733 = vpop.f32.mrb[0].mxu0
    %v2734 = vadd.f32 0.0, %v2733
    %v2735 = vpop.f32.mrb[0].mxu0
    %v2736 = vpop.f32.mrb[0].mxu0
    %v2737 = vadd.f32 0.0, %v2736
    %v2738 = vpop.f32.mrb[0].mxu0
    %2739 = vmatprep.mubr.bf16.mxu0 0
    %2740 = vmatmul.mubr.bf16.gmra.mrb[0].mxu0 %v2659
    %v2741 = vpop.f32.mrb[0].mxu0
    %v2742 = vadd.f32 0.0, %v2741
    %v2743 = vpop.f32.mrb[0].mxu0
    %v2744 = vpop.f32.mrb[0].mxu0
    %v2745 = vadd.f32 0.0, %v2744
    %v2746 = vpop.f32.mrb[0].mxu0
    %2747 = vmatprep.mubr.bf16.mxu0 0
    %2748 = vmatmul.mubr.bf16.gmra.mrb[0].mxu0 %v2662
    %v2749 = vpop.f32.mrb[0].mxu0
    %v2750 = vadd.f32 0.0, %v2749
    %v2751 = vpop.f32.mrb[0].mxu0
    %v2752 = vpop.f32.mrb[0].mxu0
    %v2753 = vadd.f32 0.0, %v2752
    %v2754 = vpop.f32.mrb[0].mxu0
    %2755 = vmatprep.mubr.bf16.mxu0 0
    %2756 = vmatmul.mubr.bf16.gmra.mrb[0].mxu0 %v2665
    %v2757 = vpop.f32.mrb[0].mxu0
    %v2758 = vadd.f32 0.0, %v2757
    %v2759 = vpop.f32.mrb[0].mxu0
    %v2760 = vpop.f32.mrb[0].mxu0
    %v2761 = vadd.f32 0.0, %v2760
    %v2762 = vpop.f32.mrb[0].mxu0
    %2763 = vdwg.mxu0
    %v2764 = vadd.f32 %v2482, %v2702
    %v2765 = vadd.f32 %v2483, %v2705
    %v2766 = vadd.f32 %v2484, %v2710
    %v2767 = vadd.f32 %v2485, %v2713
    %v2768 = vadd.f32 %v2486, %v2718
    %v2769 = vadd.f32 %v2487, %v2721
    %v2770 = vadd.f32 %v2488, %v2726
    %v2771 = vadd.f32 %v2489, %v2729
    %v2772 = vadd.f32 %v2490, %v2734
    %v2773 = vadd.f32 %v2491, %v2737
    %v2774 = vadd.f32 %v2492, %v2742
    %v2775 = vadd.f32 %v2493, %v2745
    %v2776 = vadd.f32 %v2494, %v2750
    %v2777 = vadd.f32 %v2495, %v2753
    %v2778 = vadd.f32 %v2496, %v2758
    %v2779 = vadd.f32 %v2497, %v2761
    %v2780 = vld [vmem:[#allocation11] sm:$0x1]
    %v2781 = vlaneseq
    %v2782 = vshrl.u32 %v2781, 7
    %v2783 = vsub.s32 0, %v2782
    %v2784 = vrot.slane %v2780, %v2783
    %v2785 = vadd.f32 %v2764, %v2784
    %v2786 = vadd.f32 %v2765, %v2784
    %v2787 = vadd.f32 %v2766, %v2784
    %v2788 = vadd.f32 %v2767, %v2784
    %v2789 = vadd.f32 %v2768, %v2784
    %v2790 = vadd.f32 %v2769, %v2784
    %v2791 = vadd.f32 %v2770, %v2784
    %v2792 = vadd.f32 %v2771, %v2784
    %v2793 = vadd.f32 %v2772, %v2784
    %v2794 = vadd.f32 %v2773, %v2784
    %v2795 = vadd.f32 %v2774, %v2784
    %v2796 = vadd.f32 %v2775, %v2784
    %v2797 = vadd.f32 %v2776, %v2784
    %v2798 = vadd.f32 %v2777, %v2784
    %v2799 = vadd.f32 %v2778, %v2784
    %v2800 = vadd.f32 %v2779, %v2784
    %vm2801 = vcmp.ge.f32.partialorder %v2785, 0.0
    %vm2802 = vcmp.ge.f32.partialorder %v2786, 0.0
    %vm2803 = vcmp.ge.f32.partialorder %v2787, 0.0
    %vm2804 = vcmp.ge.f32.partialorder %v2788, 0.0
    %vm2805 = vcmp.ge.f32.partialorder %v2789, 0.0
    %vm2806 = vcmp.ge.f32.partialorder %v2790, 0.0
    %vm2807 = vcmp.ge.f32.partialorder %v2791, 0.0
    %vm2808 = vcmp.ge.f32.partialorder %v2792, 0.0
    %vm2809 = vcmp.ge.f32.partialorder %v2793, 0.0
    %vm2810 = vcmp.ge.f32.partialorder %v2794, 0.0
    %vm2811 = vcmp.ge.f32.partialorder %v2795, 0.0
    %vm2812 = vcmp.ge.f32.partialorder %v2796, 0.0
    %vm2813 = vcmp.ge.f32.partialorder %v2797, 0.0
    %vm2814 = vcmp.ge.f32.partialorder %v2798, 0.0
    %vm2815 = vcmp.ge.f32.partialorder %v2799, 0.0
    %vm2816 = vcmp.ge.f32.partialorder %v2800, 0.0
    %v2817 = vmul.f32 %v2785, 0.2
    %v2818 = vmul.f32 %v2786, 0.2
    %v2819 = vmul.f32 %v2787, 0.2
    %v2820 = vmul.f32 %v2788, 0.2
    %v2821 = vmul.f32 %v2789, 0.2
    %v2822 = vmul.f32 %v2790, 0.2
    %v2823 = vmul.f32 %v2791, 0.2
    %v2824 = vmul.f32 %v2792, 0.2
    %v2825 = vmul.f32 %v2793, 0.2
    %v2826 = vmul.f32 %v2794, 0.2
    %v2827 = vmul.f32 %v2795, 0.2
    %v2828 = vmul.f32 %v2796, 0.2
    %v2829 = vmul.f32 %v2797, 0.2
    %v2830 = vmul.f32 %v2798, 0.2
    %v2831 = vmul.f32 %v2799, 0.2
    %v2832 = vmul.f32 %v2800, 0.2
    %v2833 = vsel %vm2801, %v2785, %v2817
    %v2834 = vsel %vm2802, %v2786, %v2818
    %v2835 = vsel %vm2803, %v2787, %v2819
    %v2836 = vsel %vm2804, %v2788, %v2820
    %v2837 = vsel %vm2805, %v2789, %v2821
    %v2838 = vsel %vm2806, %v2790, %v2822
    %v2839 = vsel %vm2807, %v2791, %v2823
    %v2840 = vsel %vm2808, %v2792, %v2824
    %v2841 = vsel %vm2809, %v2793, %v2825
    %v2842 = vsel %vm2810, %v2794, %v2826
    %v2843 = vsel %vm2811, %v2795, %v2827
    %v2844 = vsel %vm2812, %v2796, %v2828
    %v2845 = vsel %vm2813, %v2797, %v2829
    %v2846 = vsel %vm2814, %v2798, %v2830
    %v2847 = vsel %vm2815, %v2799, %v2831
    %v2848 = vsel %vm2816, %v2800, %v2832
    %v2849 = vld [vmem:[#allocation11 + $0x2] sm:$0x1]
    %v2850 = vlaneseq
    %v2851 = vshrl.u32 %v2850, 7
    %v2852 = vsub.s32 0, %v2851
    %v2853 = vrot.slane %v2849, %v2852
    %v2856 = vunpack.c.l.b16 %v1585
    %v2857 = vunpack.c.l.b16 %v1586
    %v2858 = vpack.c.b16 %v2857, %v2856
    %2860 = vmatprep.subr.bf16.mxu0 0
    %2861 = vmatpush1.bf16.msra.mxu0 %v2858
    %2862 = vmatprep.subr.bf16.mxu0 0
    %2863 = vmatpush1.bf16.msra.mxu0 0
    %2864 = vmatprep.subr.bf16.mxu0 0
    %2865 = vmatpush1.bf16.msra.mxu0 0
    %2866 = vmatprep.subr.bf16.mxu0 0
    %2867 = vmatpush1.bf16.msra.mxu0 0
    %2868 = vmatprep.subr.bf16.mxu0 0
    %2869 = vmatpush1.bf16.msra.mxu0 0
    %2870 = vmatprep.subr.bf16.mxu0 0
    %2871 = vmatpush1.bf16.msra.mxu0 0
    %2872 = vmatprep.subr.bf16.mxu0 0
    %2873 = vmatpush1.bf16.msra.mxu0 0
    %2874 = vmatprep.subr.bf16.mxu0 0
    %2875 = vmatpush1.bf16.msra.mxu0 0
    %2876 = vmatprep.subr.bf16.mxu0 0
    %2877 = vmatpush1.bf16.msra.mxu0 0
    %2878 = vmatprep.subr.bf16.mxu0 0
    %2879 = vmatpush1.bf16.msra.mxu0 0
    %2880 = vmatprep.subr.bf16.mxu0 0
    %2881 = vmatpush1.bf16.msra.mxu0 0
    %2882 = vmatprep.subr.bf16.mxu0 0
    %2883 = vmatpush1.bf16.msra.mxu0 0
    %2884 = vmatprep.subr.bf16.mxu0 0
    %2885 = vmatpush1.bf16.msra.mxu0 0
    %2886 = vmatprep.subr.bf16.mxu0 0
    %2887 = vmatpush1.bf16.msra.mxu0 0
    %2888 = vmatprep.subr.bf16.mxu0 0
    %2889 = vmatpush1.bf16.msra.mxu0 0
    %2890 = vmatprep.subr.bf16.mxu0 0
    %2891 = vmatpush1.bf16.msra.mxu0 0
    %2892 = vmatprep.mubr.bf16.mxu0 0
    %2893 = vmatmul.mubr.bf16.gmra.mrb[0].mxu0 %v1449
    %v2894 = vpop.f32.mrb[0].mxu0
    %v2895 = vadd.f32 %v2853, %v2894
    %v2896 = vpop.f32.mrb[0].mxu0
    %v2897 = vpop.f32.mrb[0].mxu0
    %v2898 = vadd.f32 %v2853, %v2897
    %v2899 = vpop.f32.mrb[0].mxu0
    %2900 = vmatprep.mubr.bf16.mxu0 0
    %2901 = vmatmul.mubr.bf16.gmra.mrb[0].mxu0 %v1452
    %v2902 = vpop.f32.mrb[0].mxu0
    %v2903 = vadd.f32 %v2853, %v2902
    %v2904 = vpop.f32.mrb[0].mxu0
    %v2905 = vpop.f32.mrb[0].mxu0
    %v2906 = vadd.f32 %v2853, %v2905
    %v2907 = vpop.f32.mrb[0].mxu0
    %2908 = vmatprep.mubr.bf16.mxu0 0
    %2909 = vmatmul.mubr.bf16.gmra.mrb[0].mxu0 %v1455
    %v2910 = vpop.f32.mrb[0].mxu0
    %v2911 = vadd.f32 %v2853, %v2910
    %v2912 = vpop.f32.mrb[0].mxu0
    %v2913 = vpop.f32.mrb[0].mxu0
    %v2914 = vadd.f32 %v2853, %v2913
    %v2915 = vpop.f32.mrb[0].mxu0
    %2916 = vmatprep.mubr.bf16.mxu0 0
    %2917 = vmatmul.mubr.bf16.gmra.mrb[0].mxu0 %v1458
    %v2918 = vpop.f32.mrb[0].mxu0
    %v2919 = vadd.f32 %v2853, %v2918
    %v2920 = vpop.f32.mrb[0].mxu0
    %v2921 = vpop.f32.mrb[0].mxu0
    %v2922 = vadd.f32 %v2853, %v2921
    %v2923 = vpop.f32.mrb[0].mxu0
    %2924 = vmatprep.mubr.bf16.mxu0 0
    %2925 = vmatmul.mubr.bf16.gmra.mrb[0].mxu0 %v1461
    %v2926 = vpop.f32.mrb[0].mxu0
    %v2927 = vadd.f32 %v2853, %v2926
    %v2928 = vpop.f32.mrb[0].mxu0
    %v2929 = vpop.f32.mrb[0].mxu0
    %v2930 = vadd.f32 %v2853, %v2929
    %v2931 = vpop.f32.mrb[0].mxu0
    %2932 = vmatprep.mubr.bf16.mxu0 0
    %2933 = vmatmul.mubr.bf16.gmra.mrb[0].mxu0 %v1464
    %v2934 = vpop.f32.mrb[0].mxu0
    %v2935 = vadd.f32 %v2853, %v2934
    %v2936 = vpop.f32.mrb[0].mxu0
    %v2937 = vpop.f32.mrb[0].mxu0
    %v2938 = vadd.f32 %v2853, %v2937
    %v2939 = vpop.f32.mrb[0].mxu0
    %2940 = vmatprep.mubr.bf16.mxu0 0
    %2941 = vmatmul.mubr.bf16.gmra.mrb[0].mxu0 %v1467
    %v2942 = vpop.f32.mrb[0].mxu0
    %v2943 = vadd.f32 %v2853, %v2942
    %v2944 = vpop.f32.mrb[0].mxu0
    %v2945 = vpop.f32.mrb[0].mxu0
    %v2946 = vadd.f32 %v2853, %v2945
    %v2947 = vpop.f32.mrb[0].mxu0
    %2948 = vmatprep.mubr.bf16.mxu0 0
    %2949 = vmatmul.mubr.bf16.gmra.mrb[0].mxu0 %v1470
    %v2950 = vpop.f32.mrb[0].mxu0
    %v2951 = vadd.f32 %v2853, %v2950
    %v2952 = vpop.f32.mrb[0].mxu0
    %v2953 = vpop.f32.mrb[0].mxu0
    %v2954 = vadd.f32 %v2853, %v2953
    %v2955 = vpop.f32.mrb[0].mxu0
    %2956 = vdwg.mxu0
    %vm2957 = vcmp.ge.f32.partialorder %v2895, 0.0
    %vm2958 = vcmp.ge.f32.partialorder %v2898, 0.0
    %vm2959 = vcmp.ge.f32.partialorder %v2903, 0.0
    %vm2960 = vcmp.ge.f32.partialorder %v2906, 0.0
    %vm2961 = vcmp.ge.f32.partialorder %v2911, 0.0
    %vm2962 = vcmp.ge.f32.partialorder %v2914, 0.0
    %vm2963 = vcmp.ge.f32.partialorder %v2919, 0.0
    %vm2964 = vcmp.ge.f32.partialorder %v2922, 0.0
    %vm2965 = vcmp.ge.f32.partialorder %v2927, 0.0
    %vm2966 = vcmp.ge.f32.partialorder %v2930, 0.0
    %vm2967 = vcmp.ge.f32.partialorder %v2935, 0.0
    %vm2968 = vcmp.ge.f32.partialorder %v2938, 0.0
    %vm2969 = vcmp.ge.f32.partialorder %v2943, 0.0
    %vm2970 = vcmp.ge.f32.partialorder %v2946, 0.0
    %vm2971 = vcmp.ge.f32.partialorder %v2951, 0.0
    %vm2972 = vcmp.ge.f32.partialorder %v2954, 0.0
    %v2973 = vmul.f32 %v2895, 0.2
    %v2974 = vmul.f32 %v2898, 0.2
    %v2975 = vmul.f32 %v2903, 0.2
    %v2976 = vmul.f32 %v2906, 0.2
    %v2977 = vmul.f32 %v2911, 0.2
    %v2978 = vmul.f32 %v2914, 0.2
    %v2979 = vmul.f32 %v2919, 0.2
    %v2980 = vmul.f32 %v2922, 0.2
    %v2981 = vmul.f32 %v2927, 0.2
    %v2982 = vmul.f32 %v2930, 0.2
    %v2983 = vmul.f32 %v2935, 0.2
    %v2984 = vmul.f32 %v2938, 0.2
    %v2985 = vmul.f32 %v2943, 0.2
    %v2986 = vmul.f32 %v2946, 0.2
    %v2987 = vmul.f32 %v2951, 0.2
    %v2988 = vmul.f32 %v2954, 0.2
    %v2989 = vsel %vm2957, %v2895, %v2973
    %v2990 = vsel %vm2958, %v2898, %v2974
    %v2991 = vsel %vm2959, %v2903, %v2975
    %v2992 = vsel %vm2960, %v2906, %v2976
    %v2993 = vsel %vm2961, %v2911, %v2977
    %v2994 = vsel %vm2962, %v2914, %v2978
    %v2995 = vsel %vm2963, %v2919, %v2979
    %v2996 = vsel %vm2964, %v2922, %v2980
    %v2997 = vsel %vm2965, %v2927, %v2981
    %v2998 = vsel %vm2966, %v2930, %v2982
    %v2999 = vsel %vm2967, %v2935, %v2983
    %v3000 = vsel %vm2968, %v2938, %v2984
    %v3001 = vsel %vm2969, %v2943, %v2985
    %v3002 = vsel %vm2970, %v2946, %v2986
    %v3003 = vsel %vm2971, %v2951, %v2987
    %v3004 = vsel %vm2972, %v2954, %v2988
    %vm3005 = vcmask 60416
    %3006 = vst.msk [vmem:[#allocation2] sm:$0xf] %vm3005, 0
    %vm3007 = vcmask 57344
    %3008 = vst.msk [vmem:[#allocation2 + $0x4] sm:$0x1] %vm3007, 0
    %3009 = vst.msk [vmem:[#allocation2 + $0x50] sm:$0xf] %vm3005, 0
    %3010 = vst.msk [vmem:[#allocation2 + $0x54] sm:$0x1] %vm3007, 0
    %s3011 = scalar_lea.vmem [#allocation2], 72
    %3012 = vst.msk [vmem:[%s3011] sm:$0xf] %vm3005, 0
    %3013 = vst.msk [vmem:[%s3011 + $0x4] sm:$0x1] %vm3007, 0
    %3014 = vst.msk [vmem:[%s3011 + $0x50] sm:$0xf] %vm3005, 0
    %3015 = vst.msk [vmem:[%s3011 + $0x54] sm:$0x1] %vm3007, 0
    %s3016 = scalar_lea.vmem [#allocation2], 8
    %vm3017 = vcmask 57344
    %vm3018 = vsmask.f32 256
    %vm3019 = vmand %vm3017, %vm3018
    %v3020 = vld [vmem:[%s3016] sm:$0x1]
    %v3021 = vsel %vm3019, 0, %v3020
    %3022 = vst [vmem:[%s3016] sm:$0x1] %v3021
    %v3023 = vld [vmem:[%s3016 + $0x8] sm:$0x1]
    %v3024 = vsel %vm3019, 0, %v3023
    %3025 = vst [vmem:[%s3016 + $0x8] sm:$0x1] %v3024
    %v3026 = vld [vmem:[%s3016 + $0x10] sm:$0x1]
    %v3027 = vsel %vm3019, 0, %v3026
    %3028 = vst [vmem:[%s3016 + $0x10] sm:$0x1] %v3027
    %v3029 = vld [vmem:[%s3016 + $0x18] sm:$0x1]
    %v3030 = vsel %vm3019, 0, %v3029
    %3031 = vst [vmem:[%s3016 + $0x18] sm:$0x1] %v3030
    %v3032 = vld [vmem:[%s3016 + $0x20] sm:$0x1]
    %v3033 = vsel %vm3019, 0, %v3032
    %3034 = vst [vmem:[%s3016 + $0x20] sm:$0x1] %v3033
    %v3035 = vld [vmem:[%s3016 + $0x28] sm:$0x1]
    %v3036 = vsel %vm3019, 0, %v3035
    %3037 = vst [vmem:[%s3016 + $0x28] sm:$0x1] %v3036
    %v3038 = vld [vmem:[%s3016 + $0x30] sm:$0x1]
    %v3039 = vsel %vm3019, 0, %v3038
    %3040 = vst [vmem:[%s3016 + $0x30] sm:$0x1] %v3039
    %v3041 = vld [vmem:[%s3016 + $0x38] sm:$0x1]
    %v3042 = vsel %vm3019, 0, %v3041
    %3043 = vst [vmem:[%s3016 + $0x38] sm:$0x1] %v3042
    %v3044 = vld [vmem:[%s3016 + $0x50] sm:$0x1]
    %v3045 = vsel %vm3019, 0, %v3044
    %3046 = vst [vmem:[%s3016 + $0x50] sm:$0x1] %v3045
    %v3047 = vld [vmem:[%s3016 + $0x58] sm:$0x1]
    %v3048 = vsel %vm3019, 0, %v3047
    %3049 = vst [vmem:[%s3016 + $0x58] sm:$0x1] %v3048
    %v3050 = vld [vmem:[%s3016 + $0x60] sm:$0x1]
    %v3051 = vsel %vm3019, 0, %v3050
    %3052 = vst [vmem:[%s3016 + $0x60] sm:$0x1] %v3051
    %v3053 = vld [vmem:[%s3016 + $0x68] sm:$0x1]
    %v3054 = vsel %vm3019, 0, %v3053
    %3055 = vst [vmem:[%s3016 + $0x68] sm:$0x1] %v3054
    %v3056 = vld [vmem:[%s3016 + $0x70] sm:$0x1]
    %v3057 = vsel %vm3019, 0, %v3056
    %3058 = vst [vmem:[%s3016 + $0x70] sm:$0x1] %v3057
    %v3059 = vld [vmem:[%s3016 + $0x78] sm:$0x1]
    %v3060 = vsel %vm3019, 0, %v3059
    %3061 = vst [vmem:[%s3016 + $0x78] sm:$0x1] %v3060
    %v3062 = vld [vmem:[%s3016 + $0x80] sm:$0x1]
    %v3063 = vsel %vm3019, 0, %v3062
    %3064 = vst [vmem:[%s3016 + $0x80] sm:$0x1] %v3063
    %v3065 = vld [vmem:[%s3016 + $0x88] sm:$0x1]
    %v3066 = vsel %vm3019, 0, %v3065
    %3067 = vst [vmem:[%s3016 + $0x88] sm:$0x1] %v3066
    %vm3068 = vsmask.f32 7938
    %vm3069 = vmand %vm3017, %vm3068
    %v3070 = vld [vmem:[%s3016 + $0x4] sm:$0x1]
    %v3071 = vsel %vm3069, 0, %v3070
    %3072 = vst [vmem:[%s3016 + $0x4] sm:$0x1] %v3071
    %v3073 = vld [vmem:[%s3016 + $0xc] sm:$0x1]
    %v3074 = vsel %vm3069, 0, %v3073
    %3075 = vst [vmem:[%s3016 + $0xc] sm:$0x1] %v3074
    %v3076 = vld [vmem:[%s3016 + $0x14] sm:$0x1]
    %v3077 = vsel %vm3069, 0, %v3076
    %3078 = vst [vmem:[%s3016 + $0x14] sm:$0x1] %v3077
    %v3079 = vld [vmem:[%s3016 + $0x1c] sm:$0x1]
    %v3080 = vsel %vm3069, 0, %v3079
    %3081 = vst [vmem:[%s3016 + $0x1c] sm:$0x1] %v3080
    %v3082 = vld [vmem:[%s3016 + $0x24] sm:$0x1]
    %v3083 = vsel %vm3069, 0, %v3082
    %3084 = vst [vmem:[%s3016 + $0x24] sm:$0x1] %v3083
    %v3085 = vld [vmem:[%s3016 + $0x2c] sm:$0x1]
    %v3086 = vsel %vm3069, 0, %v3085
    %3087 = vst [vmem:[%s3016 + $0x2c] sm:$0x1] %v3086
    %v3088 = vld [vmem:[%s3016 + $0x34] sm:$0x1]
    %v3089 = vsel %vm3069, 0, %v3088
    %3090 = vst [vmem:[%s3016 + $0x34] sm:$0x1] %v3089
    %v3091 = vld [vmem:[%s3016 + $0x3c] sm:$0x1]
    %v3092 = vsel %vm3069, 0, %v3091
    %3093 = vst [vmem:[%s3016 + $0x3c] sm:$0x1] %v3092
    %v3094 = vld [vmem:[%s3016 + $0x54] sm:$0x1]
    %v3095 = vsel %vm3069, 0, %v3094
    %3096 = vst [vmem:[%s3016 + $0x54] sm:$0x1] %v3095
    %v3097 = vld [vmem:[%s3016 + $0x5c] sm:$0x1]
    %v3098 = vsel %vm3069, 0, %v3097
    %3099 = vst [vmem:[%s3016 + $0x5c] sm:$0x1] %v3098
    %v3100 = vld [vmem:[%s3016 + $0x64] sm:$0x1]
    %v3101 = vsel %vm3069, 0, %v3100
    %3102 = vst [vmem:[%s3016 + $0x64] sm:$0x1] %v3101
    %v3103 = vld [vmem:[%s3016 + $0x6c] sm:$0x1]
    %v3104 = vsel %vm3069, 0, %v3103
    %3105 = vst [vmem:[%s3016 + $0x6c] sm:$0x1] %v3104
    %v3106 = vld [vmem:[%s3016 + $0x74] sm:$0x1]
    %v3107 = vsel %vm3069, 0, %v3106
    %3108 = vst [vmem:[%s3016 + $0x74] sm:$0x1] %v3107
    %v3109 = vld [vmem:[%s3016 + $0x7c] sm:$0x1]
    %v3110 = vsel %vm3069, 0, %v3109
    %3111 = vst [vmem:[%s3016 + $0x7c] sm:$0x1] %v3110
    %v3112 = vld [vmem:[%s3016 + $0x84] sm:$0x1]
    %v3113 = vsel %vm3069, 0, %v3112
    %3114 = vst [vmem:[%s3016 + $0x84] sm:$0x1] %v3113
    %v3115 = vld [vmem:[%s3016 + $0x8c] sm:$0x1]
    %v3116 = vsel %vm3069, 0, %v3115
    %3117 = vst [vmem:[%s3016 + $0x8c] sm:$0x1] %v3116
    %v3118 = vpack.c.bf16 %v2833, %v2833
    %v3119 = vpack.c.bf16 %v2834, %v2834
    %v3120 = vpack.c.bf16 %v2835, %v2835
    %v3121 = vpack.c.bf16 %v2836, %v2836
    %v3122 = vpack.c.bf16 %v2837, %v2837
    %v3123 = vpack.c.bf16 %v2838, %v2838
    %v3124 = vpack.c.bf16 %v2839, %v2839
    %v3125 = vpack.c.bf16 %v2840, %v2840
    %v3126 = vpack.c.bf16 %v2841, %v2841
    %v3127 = vpack.c.bf16 %v2842, %v2842
    %v3128 = vpack.c.bf16 %v2843, %v2843
    %v3129 = vpack.c.bf16 %v2844, %v2844
    %v3130 = vpack.c.bf16 %v2845, %v2845
    %v3131 = vpack.c.bf16 %v2846, %v2846
    %v3132 = vpack.c.bf16 %v2847, %v2847
    %v3133 = vpack.c.bf16 %v2848, %v2848
    %v3150 = vunpack.c.l.b16 %v3118
    %v3151 = vunpack.c.l.b16 %v3119
    %v3152 = vunpack.c.l.b16 %v3120
    %v3153 = vunpack.c.l.b16 %v3121
    %v3154 = vunpack.c.l.b16 %v3122
    %v3155 = vunpack.c.l.b16 %v3123
    %v3156 = vunpack.c.l.b16 %v3124
    %v3157 = vunpack.c.l.b16 %v3125
    %v3158 = vunpack.c.l.b16 %v3126
    %v3159 = vunpack.c.l.b16 %v3127
    %v3160 = vunpack.c.l.b16 %v3128
    %v3161 = vunpack.c.l.b16 %v3129
    %v3162 = vunpack.c.l.b16 %v3130
    %v3163 = vunpack.c.l.b16 %v3131
    %v3164 = vunpack.c.l.b16 %v3132
    %v3165 = vunpack.c.l.b16 %v3133
    %v3166 = vpack.c.b16 %v3150, %v3150
    %v3167 = vpack.c.b16 %v3151, %v3151
    %v3168 = vpack.c.b16 %v3152, %v3152
    %v3169 = vpack.c.b16 %v3153, %v3153
    %v3170 = vpack.c.b16 %v3154, %v3154
    %v3171 = vpack.c.b16 %v3155, %v3155
    %v3172 = vpack.c.b16 %v3156, %v3156
    %v3173 = vpack.c.b16 %v3157, %v3157
    %v3174 = vpack.c.b16 %v3158, %v3158
    %v3175 = vpack.c.b16 %v3159, %v3159
    %v3176 = vpack.c.b16 %v3160, %v3160
    %v3177 = vpack.c.b16 %v3161, %v3161
    %v3178 = vpack.c.b16 %v3162, %v3162
    %v3179 = vpack.c.b16 %v3163, %v3163
    %v3180 = vpack.c.b16 %v3164, %v3164
    %v3181 = vpack.c.b16 %v3165, %v3165
    %v3183 = vshrl.u32 %v3166, 16
    %v3185 = vrot.slane %v3183, 7
    %v3186 = vshll.u32 %v3166, 16
    %v3188 = vor.u32 %v3185, %v3186
    %v3189 = vrot.slane %v3185, 4
    %v3191 = vshrl.u32 %v3167, 16
    %v3193 = vrot.slane %v3191, 7
    %v3194 = vshll.u32 %v3167, 16
    %v3196 = vor.u32 %v3193, %v3194
    %v3197 = vrot.slane %v3193, 4
    %v3199 = vshrl.u32 %v3168, 16
    %v3201 = vrot.slane %v3199, 7
    %v3202 = vshll.u32 %v3168, 16
    %v3204 = vor.u32 %v3201, %v3202
    %v3205 = vrot.slane %v3201, 4
    %v3207 = vshrl.u32 %v3169, 16
    %v3209 = vrot.slane %v3207, 7
    %v3210 = vshll.u32 %v3169, 16
    %v3212 = vor.u32 %v3209, %v3210
    %v3213 = vrot.slane %v3209, 4
    %v3215 = vshrl.u32 %v3170, 16
    %v3217 = vrot.slane %v3215, 7
    %v3218 = vshll.u32 %v3170, 16
    %v3220 = vor.u32 %v3217, %v3218
    %v3221 = vrot.slane %v3217, 4
    %v3223 = vshrl.u32 %v3171, 16
    %v3225 = vrot.slane %v3223, 7
    %v3226 = vshll.u32 %v3171, 16
    %v3228 = vor.u32 %v3225, %v3226
    %v3229 = vrot.slane %v3225, 4
    %v3231 = vshrl.u32 %v3172, 16
    %v3233 = vrot.slane %v3231, 7
    %v3234 = vshll.u32 %v3172, 16
    %v3236 = vor.u32 %v3233, %v3234
    %v3237 = vrot.slane %v3233, 4
    %v3239 = vshrl.u32 %v3173, 16
    %v3241 = vrot.slane %v3239, 7
    %v3242 = vshll.u32 %v3173, 16
    %v3244 = vor.u32 %v3241, %v3242
    %v3245 = vrot.slane %v3241, 4
    %v3247 = vshrl.u32 %v3174, 16
    %v3249 = vrot.slane %v3247, 7
    %v3250 = vshll.u32 %v3174, 16
    %v3252 = vor.u32 %v3249, %v3250
    %v3253 = vrot.slane %v3249, 4
    %v3255 = vshrl.u32 %v3175, 16
    %v3257 = vrot.slane %v3255, 7
    %v3258 = vshll.u32 %v3175, 16
    %v3260 = vor.u32 %v3257, %v3258
    %v3261 = vrot.slane %v3257, 4
    %v3263 = vshrl.u32 %v3176, 16
    %v3265 = vrot.slane %v3263, 7
    %v3266 = vshll.u32 %v3176, 16
    %v3268 = vor.u32 %v3265, %v3266
    %v3269 = vrot.slane %v3265, 4
    %v3271 = vshrl.u32 %v3177, 16
    %v3273 = vrot.slane %v3271, 7
    %v3274 = vshll.u32 %v3177, 16
    %v3276 = vor.u32 %v3273, %v3274
    %v3277 = vrot.slane %v3273, 4
    %v3279 = vshrl.u32 %v3178, 16
    %v3281 = vrot.slane %v3279, 7
    %v3282 = vshll.u32 %v3178, 16
    %v3284 = vor.u32 %v3281, %v3282
    %v3285 = vrot.slane %v3281, 4
    %v3287 = vshrl.u32 %v3179, 16
    %v3289 = vrot.slane %v3287, 7
    %v3290 = vshll.u32 %v3179, 16
    %v3292 = vor.u32 %v3289, %v3290
    %v3293 = vrot.slane %v3289, 4
    %v3295 = vshrl.u32 %v3180, 16
    %v3297 = vrot.slane %v3295, 7
    %v3298 = vshll.u32 %v3180, 16
    %v3300 = vor.u32 %v3297, %v3298
    %v3301 = vrot.slane %v3297, 4
    %v3303 = vshrl.u32 %v3181, 16
    %v3305 = vrot.slane %v3303, 7
    %v3306 = vshll.u32 %v3181, 16
    %v3308 = vor.u32 %v3305, %v3306
    %v3309 = vrot.slane %v3305, 4
    %vm3342 = vcmask 60416
    %vm3343 = vmand %vm3342, %vm3068
    %v3344 = vld [vmem:[%s3016] sm:$0xf]
    %v3345 = vsel %vm3343, %v3188, %v3344
    %3346 = vst [vmem:[%s3016] sm:$0xf] %v3345
    %v3347 = vld [vmem:[%s3016 + $0x4] sm:$0x1]
    %v3348 = vsel %vm3019, %v3189, %v3347
    %3349 = vst [vmem:[%s3016 + $0x4] sm:$0x1] %v3348
    %v3350 = vld [vmem:[%s3016 + $0x8] sm:$0xf]
    %v3351 = vsel %vm3343, %v3196, %v3350
    %3352 = vst [vmem:[%s3016 + $0x8] sm:$0xf] %v3351
    %v3353 = vld [vmem:[%s3016 + $0xc] sm:$0x1]
    %v3354 = vsel %vm3019, %v3197, %v3353
    %3355 = vst [vmem:[%s3016 + $0xc] sm:$0x1] %v3354
    %v3356 = vld [vmem:[%s3016 + $0x10] sm:$0xf]
    %v3357 = vsel %vm3343, %v3204, %v3356
    %3358 = vst [vmem:[%s3016 + $0x10] sm:$0xf] %v3357
    %v3359 = vld [vmem:[%s3016 + $0x14] sm:$0x1]
    %v3360 = vsel %vm3019, %v3205, %v3359
    %3361 = vst [vmem:[%s3016 + $0x14] sm:$0x1] %v3360
    %v3362 = vld [vmem:[%s3016 + $0x18] sm:$0xf]
    %v3363 = vsel %vm3343, %v3212, %v3362
    %3364 = vst [vmem:[%s3016 + $0x18] sm:$0xf] %v3363
    %v3365 = vld [vmem:[%s3016 + $0x1c] sm:$0x1]
    %v3366 = vsel %vm3019, %v3213, %v3365
    %3367 = vst [vmem:[%s3016 + $0x1c] sm:$0x1] %v3366
    %v3368 = vld [vmem:[%s3016 + $0x20] sm:$0xf]
    %v3369 = vsel %vm3343, %v3220, %v3368
    %3370 = vst [vmem:[%s3016 + $0x20] sm:$0xf] %v3369
    %v3371 = vld [vmem:[%s3016 + $0x24] sm:$0x1]
    %v3372 = vsel %vm3019, %v3221, %v3371
    %3373 = vst [vmem:[%s3016 + $0x24] sm:$0x1] %v3372
    %v3374 = vld [vmem:[%s3016 + $0x28] sm:$0xf]
    %v3375 = vsel %vm3343, %v3228, %v3374
    %3376 = vst [vmem:[%s3016 + $0x28] sm:$0xf] %v3375
    %v3377 = vld [vmem:[%s3016 + $0x2c] sm:$0x1]
    %v3378 = vsel %vm3019, %v3229, %v3377
    %3379 = vst [vmem:[%s3016 + $0x2c] sm:$0x1] %v3378
    %v3380 = vld [vmem:[%s3016 + $0x30] sm:$0xf]
    %v3381 = vsel %vm3343, %v3236, %v3380
    %3382 = vst [vmem:[%s3016 + $0x30] sm:$0xf] %v3381
    %v3383 = vld [vmem:[%s3016 + $0x34] sm:$0x1]
    %v3384 = vsel %vm3019, %v3237, %v3383
    %3385 = vst [vmem:[%s3016 + $0x34] sm:$0x1] %v3384
    %v3386 = vld [vmem:[%s3016 + $0x38] sm:$0xf]
    %v3387 = vsel %vm3343, %v3244, %v3386
    %3388 = vst [vmem:[%s3016 + $0x38] sm:$0xf] %v3387
    %v3389 = vld [vmem:[%s3016 + $0x3c] sm:$0x1]
    %v3390 = vsel %vm3019, %v3245, %v3389
    %3391 = vst [vmem:[%s3016 + $0x3c] sm:$0x1] %v3390
    %v3392 = vld [vmem:[%s3016 + $0x50] sm:$0xf]
    %v3393 = vsel %vm3343, %v3252, %v3392
    %3394 = vst [vmem:[%s3016 + $0x50] sm:$0xf] %v3393
    %v3395 = vld [vmem:[%s3016 + $0x54] sm:$0x1]
    %v3396 = vsel %vm3019, %v3253, %v3395
    %3397 = vst [vmem:[%s3016 + $0x54] sm:$0x1] %v3396
    %v3398 = vld [vmem:[%s3016 + $0x58] sm:$0xf]
    %v3399 = vsel %vm3343, %v3260, %v3398
    %3400 = vst [vmem:[%s3016 + $0x58] sm:$0xf] %v3399
    %v3401 = vld [vmem:[%s3016 + $0x5c] sm:$0x1]
    %v3402 = vsel %vm3019, %v3261, %v3401
    %3403 = vst [vmem:[%s3016 + $0x5c] sm:$0x1] %v3402
    %v3404 = vld [vmem:[%s3016 + $0x60] sm:$0xf]
    %v3405 = vsel %vm3343, %v3268, %v3404
    %3406 = vst [vmem:[%s3016 + $0x60] sm:$0xf] %v3405
    %v3407 = vld [vmem:[%s3016 + $0x64] sm:$0x1]
    %v3408 = vsel %vm3019, %v3269, %v3407
    %3409 = vst [vmem:[%s3016 + $0x64] sm:$0x1] %v3408
    %v3410 = vld [vmem:[%s3016 + $0x68] sm:$0xf]
    %v3411 = vsel %vm3343, %v3276, %v3410
    %3412 = vst [vmem:[%s3016 + $0x68] sm:$0xf] %v3411
    %v3413 = vld [vmem:[%s3016 + $0x6c] sm:$0x1]
    %v3414 = vsel %vm3019, %v3277, %v3413
    %3415 = vst [vmem:[%s3016 + $0x6c] sm:$0x1] %v3414
    %v3416 = vld [vmem:[%s3016 + $0x70] sm:$0xf]
    %v3417 = vsel %vm3343, %v3284, %v3416
    %3418 = vst [vmem:[%s3016 + $0x70] sm:$0xf] %v3417
    %v3419 = vld [vmem:[%s3016 + $0x74] sm:$0x1]
    %v3420 = vsel %vm3019, %v3285, %v3419
    %3421 = vst [vmem:[%s3016 + $0x74] sm:$0x1] %v3420
    %v3422 = vld [vmem:[%s3016 + $0x78] sm:$0xf]
    %v3423 = vsel %vm3343, %v3292, %v3422
    %3424 = vst [vmem:[%s3016 + $0x78] sm:$0xf] %v3423
    %v3425 = vld [vmem:[%s3016 + $0x7c] sm:$0x1]
    %v3426 = vsel %vm3019, %v3293, %v3425
    %3427 = vst [vmem:[%s3016 + $0x7c] sm:$0x1] %v3426
    %v3428 = vld [vmem:[%s3016 + $0x80] sm:$0xf]
    %v3429 = vsel %vm3343, %v3300, %v3428
    %3430 = vst [vmem:[%s3016 + $0x80] sm:$0xf] %v3429
    %v3431 = vld [vmem:[%s3016 + $0x84] sm:$0x1]
    %v3432 = vsel %vm3019, %v3301, %v3431
    %3433 = vst [vmem:[%s3016 + $0x84] sm:$0x1] %v3432
    %v3434 = vld [vmem:[%s3016 + $0x88] sm:$0xf]
    %v3435 = vsel %vm3343, %v3308, %v3434
    %3436 = vst [vmem:[%s3016 + $0x88] sm:$0xf] %v3435
    %v3437 = vld [vmem:[%s3016 + $0x8c] sm:$0x1]
    %v3438 = vsel %vm3019, %v3309, %v3437
    %3439 = vst [vmem:[%s3016 + $0x8c] sm:$0x1] %v3438
    %v3440 = vld [vmem:[#allocation2] sm:$0xf]
    %v3441 = vld [vmem:[#allocation2 + $0x8] sm:$0xf]
    %v3442 = vld [vmem:[#allocation2 + $0x10] sm:$0xf]
    %v3443 = vld [vmem:[#allocation2 + $0x18] sm:$0xf]
    %v3444 = vld [vmem:[#allocation2 + $0x20] sm:$0xf]
    %v3445 = vld [vmem:[#allocation2 + $0x28] sm:$0xf]
    %v3446 = vld [vmem:[#allocation2 + $0x30] sm:$0xf]
    %v3447 = vld [vmem:[#allocation2 + $0x38] sm:$0xf]
    %v3448 = vld [vmem:[#allocation2 + $0x50] sm:$0xf]
    %v3449 = vld [vmem:[#allocation2 + $0x58] sm:$0xf]
    %v3450 = vld [vmem:[#allocation2 + $0x60] sm:$0xf]
    %v3451 = vld [vmem:[#allocation2 + $0x68] sm:$0xf]
    %v3452 = vld [vmem:[#allocation2 + $0x70] sm:$0xf]
    %v3453 = vld [vmem:[#allocation2 + $0x78] sm:$0xf]
    %v3454 = vld [vmem:[#allocation2 + $0x80] sm:$0xf]
    %v3455 = vld [vmem:[#allocation2 + $0x88] sm:$0xf]
    %v3456 = vld [vmem:[#allocation8] sm:$0xf]
    %v3457 = vld [vmem:[#allocation2 + $0x4] sm:$0x1]
    %v3458 = vld [vmem:[#allocation2 + $0xc] sm:$0x1]
    %v3459 = vld [vmem:[#allocation2 + $0x14] sm:$0x1]
    %v3460 = vld [vmem:[#allocation2 + $0x1c] sm:$0x1]
    %v3461 = vld [vmem:[#allocation2 + $0x24] sm:$0x1]
    %v3462 = vld [vmem:[#allocation2 + $0x2c] sm:$0x1]
    %v3463 = vld [vmem:[#allocation2 + $0x34] sm:$0x1]
    %v3464 = vld [vmem:[#allocation2 + $0x3c] sm:$0x1]
    %v3465 = vld [vmem:[#allocation2 + $0x54] sm:$0x1]
    %v3466 = vld [vmem:[#allocation2 + $0x5c] sm:$0x1]
    %v3467 = vld [vmem:[#allocation2 + $0x64] sm:$0x1]
    %v3468 = vld [vmem:[#allocation2 + $0x6c] sm:$0x1]
    %v3469 = vld [vmem:[#allocation2 + $0x74] sm:$0x1]
    %v3470 = vld [vmem:[#allocation2 + $0x7c] sm:$0x1]
    %v3471 = vld [vmem:[#allocation2 + $0x84] sm:$0x1]
    %v3472 = vld [vmem:[#allocation2 + $0x8c] sm:$0x1]
    %v3474 = vshrl.u32 %v3440, 16
    %v3476 = vrot.slane %v3474, 4
    %v3477 = vshll.u32 %v3440, 16
    %v3479 = vrot.slane %v3477, 5
    %v3480 = vor.u32 %v3476, %v3479
    %v3481 = vrot.slane %v3480, 4
    %v3483 = vshll.u32 %v3457, 16
    %v3485 = vrot.slane %v3483, 5
    %v3486 = vsel %vm124, %v3481, %v3485
    %v3488 = vshrl.u32 %v3441, 16
    %v3490 = vrot.slane %v3488, 4
    %v3491 = vshll.u32 %v3441, 16
    %v3493 = vrot.slane %v3491, 5
    %v3494 = vor.u32 %v3490, %v3493
    %v3495 = vrot.slane %v3494, 4
    %v3497 = vshll.u32 %v3458, 16
    %v3499 = vrot.slane %v3497, 5
    %v3500 = vsel %vm124, %v3495, %v3499
    %v3502 = vshrl.u32 %v3442, 16
    %v3504 = vrot.slane %v3502, 4
    %v3505 = vshll.u32 %v3442, 16
    %v3507 = vrot.slane %v3505, 5
    %v3508 = vor.u32 %v3504, %v3507
    %v3509 = vrot.slane %v3508, 4
    %v3511 = vshll.u32 %v3459, 16
    %v3513 = vrot.slane %v3511, 5
    %v3514 = vsel %vm124, %v3509, %v3513
    %v3516 = vshrl.u32 %v3443, 16
    %v3518 = vrot.slane %v3516, 4
    %v3519 = vshll.u32 %v3443, 16
    %v3521 = vrot.slane %v3519, 5
    %v3522 = vor.u32 %v3518, %v3521
    %v3523 = vrot.slane %v3522, 4
    %v3525 = vshll.u32 %v3460, 16
    %v3527 = vrot.slane %v3525, 5
    %v3528 = vsel %vm124, %v3523, %v3527
    %v3530 = vshrl.u32 %v3444, 16
    %v3532 = vrot.slane %v3530, 4
    %v3533 = vshll.u32 %v3444, 16
    %v3535 = vrot.slane %v3533, 5
    %v3536 = vor.u32 %v3532, %v3535
    %v3537 = vrot.slane %v3536, 4
    %v3539 = vshll.u32 %v3461, 16
    %v3541 = vrot.slane %v3539, 5
    %v3542 = vsel %vm124, %v3537, %v3541
    %v3544 = vshrl.u32 %v3445, 16
    %v3546 = vrot.slane %v3544, 4
    %v3547 = vshll.u32 %v3445, 16
    %v3549 = vrot.slane %v3547, 5
    %v3550 = vor.u32 %v3546, %v3549
    %v3551 = vrot.slane %v3550, 4
    %v3553 = vshll.u32 %v3462, 16
    %v3555 = vrot.slane %v3553, 5
    %v3556 = vsel %vm124, %v3551, %v3555
    %v3558 = vshrl.u32 %v3446, 16
    %v3560 = vrot.slane %v3558, 4
    %v3561 = vshll.u32 %v3446, 16
    %v3563 = vrot.slane %v3561, 5
    %v3564 = vor.u32 %v3560, %v3563
    %v3565 = vrot.slane %v3564, 4
    %v3567 = vshll.u32 %v3463, 16
    %v3569 = vrot.slane %v3567, 5
    %v3570 = vsel %vm124, %v3565, %v3569
    %v3572 = vshrl.u32 %v3447, 16
    %v3574 = vrot.slane %v3572, 4
    %v3575 = vshll.u32 %v3447, 16
    %v3577 = vrot.slane %v3575, 5
    %v3578 = vor.u32 %v3574, %v3577
    %v3579 = vrot.slane %v3578, 4
    %v3581 = vshll.u32 %v3464, 16
    %v3583 = vrot.slane %v3581, 5
    %v3584 = vsel %vm124, %v3579, %v3583
    %v3586 = vshrl.u32 %v3448, 16
    %v3588 = vrot.slane %v3586, 4
    %v3589 = vshll.u32 %v3448, 16
    %v3591 = vrot.slane %v3589, 5
    %v3592 = vor.u32 %v3588, %v3591
    %v3593 = vrot.slane %v3592, 4
    %v3595 = vshll.u32 %v3465, 16
    %v3597 = vrot.slane %v3595, 5
    %v3598 = vsel %vm124, %v3593, %v3597
    %v3600 = vshrl.u32 %v3449, 16
    %v3602 = vrot.slane %v3600, 4
    %v3603 = vshll.u32 %v3449, 16
    %v3605 = vrot.slane %v3603, 5
    %v3606 = vor.u32 %v3602, %v3605
    %v3607 = vrot.slane %v3606, 4
    %v3609 = vshll.u32 %v3466, 16
    %v3611 = vrot.slane %v3609, 5
    %v3612 = vsel %vm124, %v3607, %v3611
    %v3614 = vshrl.u32 %v3450, 16
    %v3616 = vrot.slane %v3614, 4
    %v3617 = vshll.u32 %v3450, 16
    %v3619 = vrot.slane %v3617, 5
    %v3620 = vor.u32 %v3616, %v3619
    %v3621 = vrot.slane %v3620, 4
    %v3623 = vshll.u32 %v3467, 16
    %v3625 = vrot.slane %v3623, 5
    %v3626 = vsel %vm124, %v3621, %v3625
    %v3628 = vshrl.u32 %v3451, 16
    %v3630 = vrot.slane %v3628, 4
    %v3631 = vshll.u32 %v3451, 16
    %v3633 = vrot.slane %v3631, 5
    %v3634 = vor.u32 %v3630, %v3633
    %v3635 = vrot.slane %v3634, 4
    %v3637 = vshll.u32 %v3468, 16
    %v3639 = vrot.slane %v3637, 5
    %v3640 = vsel %vm124, %v3635, %v3639
    %v3642 = vshrl.u32 %v3452, 16
    %v3644 = vrot.slane %v3642, 4
    %v3645 = vshll.u32 %v3452, 16
    %v3647 = vrot.slane %v3645, 5
    %v3648 = vor.u32 %v3644, %v3647
    %v3649 = vrot.slane %v3648, 4
    %v3651 = vshll.u32 %v3469, 16
    %v3653 = vrot.slane %v3651, 5
    %v3654 = vsel %vm124, %v3649, %v3653
    %v3656 = vshrl.u32 %v3453, 16
    %v3658 = vrot.slane %v3656, 4
    %v3659 = vshll.u32 %v3453, 16
    %v3661 = vrot.slane %v3659, 5
    %v3662 = vor.u32 %v3658, %v3661
    %v3663 = vrot.slane %v3662, 4
    %v3665 = vshll.u32 %v3470, 16
    %v3667 = vrot.slane %v3665, 5
    %v3668 = vsel %vm124, %v3663, %v3667
    %v3670 = vshrl.u32 %v3454, 16
    %v3672 = vrot.slane %v3670, 4
    %v3673 = vshll.u32 %v3454, 16
    %v3675 = vrot.slane %v3673, 5
    %v3676 = vor.u32 %v3672, %v3675
    %v3677 = vrot.slane %v3676, 4
    %v3679 = vshll.u32 %v3471, 16
    %v3681 = vrot.slane %v3679, 5
    %v3682 = vsel %vm124, %v3677, %v3681
    %v3684 = vshrl.u32 %v3455, 16
    %v3686 = vrot.slane %v3684, 4
    %v3687 = vshll.u32 %v3455, 16
    %v3689 = vrot.slane %v3687, 5
    %v3690 = vor.u32 %v3686, %v3689
    %v3691 = vrot.slane %v3690, 4
    %v3693 = vshll.u32 %v3472, 16
    %v3695 = vrot.slane %v3693, 5
    %v3696 = vsel %vm124, %v3691, %v3695
    %s3697 = scalar_lea.vmem [#allocation8], 4
    %v3698 = vld [vmem:[%s3697] sm:$0xf]
    %v3699 = vunpack.c.l.b16 %v3486
    %v3700 = vunpack.c.l.b16 %v3500
    %v3701 = vunpack.c.l.b16 %v3514
    %v3702 = vunpack.c.l.b16 %v3528
    %v3703 = vunpack.c.l.b16 %v3542
    %v3704 = vunpack.c.l.b16 %v3556
    %v3705 = vunpack.c.l.b16 %v3570
    %v3706 = vunpack.c.l.b16 %v3584
    %v3707 = vunpack.c.l.b16 %v3598
    %v3708 = vunpack.c.l.b16 %v3612
    %v3709 = vunpack.c.l.b16 %v3626
    %v3710 = vunpack.c.l.b16 %v3640
    %v3711 = vunpack.c.l.b16 %v3654
    %v3712 = vunpack.c.l.b16 %v3668
    %v3713 = vunpack.c.l.b16 %v3682
    %v3714 = vunpack.c.l.b16 %v3696
    %v3715 = vpack.c.b16 %v3700, %v3699
    %v3716 = vpack.c.b16 %v3702, %v3701
    %v3717 = vpack.c.b16 %v3704, %v3703
    %v3718 = vpack.c.b16 %v3706, %v3705
    %v3719 = vpack.c.b16 %v3708, %v3707
    %v3720 = vpack.c.b16 %v3710, %v3709
    %v3721 = vpack.c.b16 %v3712, %v3711
    %v3722 = vpack.c.b16 %v3714, %v3713
    %vm3723 = vcmask 64512
    %v3725 = vsel %vm3723, %v3715, 0
    %v3728 = vsel %vm3723, %v3716, 0
    %v3731 = vsel %vm3723, %v3717, 0
    %v3734 = vsel %vm3723, %v3718, 0
    %v3737 = vsel %vm3723, %v3719, 0
    %v3740 = vsel %vm3723, %v3720, 0
    %v3743 = vsel %vm3723, %v3721, 0
    %v3746 = vsel %vm3723, %v3722, 0
    %vm3748 = vcmask 1043456
    %v3750 = vsel %vm3748, %v3698, 0
    %3752 = vmatprep.subr.bf16.mxu0 0
    %3753 = vmatpush1.bf16.msra.mxu0 %v3750
    %3754 = vmatprep.subr.bf16.mxu0 0
    %3755 = vmatpush1.bf16.msra.mxu0 0
    %3756 = vmatprep.subr.bf16.mxu0 0
    %3757 = vmatpush1.bf16.msra.mxu0 0
    %3758 = vmatprep.subr.bf16.mxu0 0
    %3759 = vmatpush1.bf16.msra.mxu0 0
    %3760 = vmatprep.subr.bf16.mxu0 0
    %3761 = vmatpush1.bf16.msra.mxu0 0
    %3762 = vmatprep.subr.bf16.mxu0 0
    %3763 = vmatpush1.bf16.msra.mxu0 0
    %3764 = vmatprep.subr.bf16.mxu0 0
    %3765 = vmatpush1.bf16.msra.mxu0 0
    %3766 = vmatprep.subr.bf16.mxu0 0
    %3767 = vmatpush1.bf16.msra.mxu0 0
    %3768 = vmatprep.subr.bf16.mxu0 0
    %3769 = vmatpush1.bf16.msra.mxu0 0
    %3770 = vmatprep.subr.bf16.mxu0 0
    %3771 = vmatpush1.bf16.msra.mxu0 0
    %3772 = vmatprep.subr.bf16.mxu0 0
    %3773 = vmatpush1.bf16.msra.mxu0 0
    %3774 = vmatprep.subr.bf16.mxu0 0
    %3775 = vmatpush1.bf16.msra.mxu0 0
    %3776 = vmatprep.subr.bf16.mxu0 0
    %3777 = vmatpush1.bf16.msra.mxu0 0
    %3778 = vmatprep.subr.bf16.mxu0 0
    %3779 = vmatpush1.bf16.msra.mxu0 0
    %3780 = vmatprep.subr.bf16.mxu0 0
    %3781 = vmatpush1.bf16.msra.mxu0 0
    %3782 = vmatprep.subr.bf16.mxu0 0
    %3783 = vmatpush1.bf16.msra.mxu0 0
    %3784 = vmatprep.mubr.bf16.mxu0 0
    %3785 = vmatmul.mubr.bf16.gmra.mrb[0].mxu0 %v3725
    %v3786 = vpop.f32.mrb[0].mxu0
    %v3787 = vadd.f32 0.0, %v3786
    %v3788 = vpop.f32.mrb[0].mxu0
    %v3789 = vpop.f32.mrb[0].mxu0
    %v3790 = vadd.f32 0.0, %v3789
    %v3791 = vpop.f32.mrb[0].mxu0
    %3792 = vmatprep.mubr.bf16.mxu0 0
    %3793 = vmatmul.mubr.bf16.gmra.mrb[0].mxu0 %v3728
    %v3794 = vpop.f32.mrb[0].mxu0
    %v3795 = vadd.f32 0.0, %v3794
    %v3796 = vpop.f32.mrb[0].mxu0
    %v3797 = vpop.f32.mrb[0].mxu0
    %v3798 = vadd.f32 0.0, %v3797
    %v3799 = vpop.f32.mrb[0].mxu0
    %3800 = vmatprep.mubr.bf16.mxu0 0
    %3801 = vmatmul.mubr.bf16.gmra.mrb[0].mxu0 %v3731
    %v3802 = vpop.f32.mrb[0].mxu0
    %v3803 = vadd.f32 0.0, %v3802
    %v3804 = vpop.f32.mrb[0].mxu0
    %v3805 = vpop.f32.mrb[0].mxu0
    %v3806 = vadd.f32 0.0, %v3805
    %v3807 = vpop.f32.mrb[0].mxu0
    %3808 = vmatprep.mubr.bf16.mxu0 0
    %3809 = vmatmul.mubr.bf16.gmra.mrb[0].mxu0 %v3734
    %v3810 = vpop.f32.mrb[0].mxu0
    %v3811 = vadd.f32 0.0, %v3810
    %v3812 = vpop.f32.mrb[0].mxu0
    %v3813 = vpop.f32.mrb[0].mxu0
    %v3814 = vadd.f32 0.0, %v3813
    %v3815 = vpop.f32.mrb[0].mxu0
    %3816 = vmatprep.mubr.bf16.mxu0 0
    %3817 = vmatmul.mubr.bf16.gmra.mrb[0].mxu0 %v3737
    %v3818 = vpop.f32.mrb[0].mxu0
    %v3819 = vadd.f32 0.0, %v3818
    %v3820 = vpop.f32.mrb[0].mxu0
    %v3821 = vpop.f32.mrb[0].mxu0
    %v3822 = vadd.f32 0.0, %v3821
    %v3823 = vpop.f32.mrb[0].mxu0
    %3824 = vmatprep.mubr.bf16.mxu0 0
    %3825 = vmatmul.mubr.bf16.gmra.mrb[0].mxu0 %v3740
    %v3826 = vpop.f32.mrb[0].mxu0
    %v3827 = vadd.f32 0.0, %v3826
    %v3828 = vpop.f32.mrb[0].mxu0
    %v3829 = vpop.f32.mrb[0].mxu0
    %v3830 = vadd.f32 0.0, %v3829
    %v3831 = vpop.f32.mrb[0].mxu0
    %3832 = vmatprep.mubr.bf16.mxu0 0
    %3833 = vmatmul.mubr.bf16.gmra.mrb[0].mxu0 %v3743
    %v3834 = vpop.f32.mrb[0].mxu0
    %v3835 = vadd.f32 0.0, %v3834
    %v3836 = vpop.f32.mrb[0].mxu0
    %v3837 = vpop.f32.mrb[0].mxu0
    %v3838 = vadd.f32 0.0, %v3837
    %v3839 = vpop.f32.mrb[0].mxu0
    %3840 = vmatprep.mubr.bf16.mxu0 0
    %3841 = vmatmul.mubr.bf16.gmra.mrb[0].mxu0 %v3746
    %v3842 = vpop.f32.mrb[0].mxu0
    %v3843 = vadd.f32 0.0, %v3842
    %v3844 = vpop.f32.mrb[0].mxu0
    %v3845 = vpop.f32.mrb[0].mxu0
    %v3846 = vadd.f32 0.0, %v3845
    %v3847 = vpop.f32.mrb[0].mxu0
    %3848 = vdwg.mxu0
    %v3865 = vunpack.c.l.b16 %v3440
    %v3866 = vunpack.c.l.b16 %v3441
    %v3867 = vunpack.c.l.b16 %v3442
    %v3868 = vunpack.c.l.b16 %v3443
    %v3869 = vunpack.c.l.b16 %v3444
    %v3870 = vunpack.c.l.b16 %v3445
    %v3871 = vunpack.c.l.b16 %v3446
    %v3872 = vunpack.c.l.b16 %v3447
    %v3873 = vunpack.c.l.b16 %v3448
    %v3874 = vunpack.c.l.b16 %v3449
    %v3875 = vunpack.c.l.b16 %v3450
    %v3876 = vunpack.c.l.b16 %v3451
    %v3877 = vunpack.c.l.b16 %v3452
    %v3878 = vunpack.c.l.b16 %v3453
    %v3879 = vunpack.c.l.b16 %v3454
    %v3880 = vunpack.c.l.b16 %v3455
    %v3881 = vpack.c.b16 %v3866, %v3865
    %v3882 = vpack.c.b16 %v3868, %v3867
    %v3883 = vpack.c.b16 %v3870, %v3869
    %v3884 = vpack.c.b16 %v3872, %v3871
    %v3885 = vpack.c.b16 %v3874, %v3873
    %v3886 = vpack.c.b16 %v3876, %v3875
    %v3887 = vpack.c.b16 %v3878, %v3877
    %v3888 = vpack.c.b16 %v3880, %v3879
    %v3890 = vsel %vm3723, %v3881, 0
    %v3893 = vsel %vm3723, %v3882, 0
    %v3896 = vsel %vm3723, %v3883, 0
    %v3899 = vsel %vm3723, %v3884, 0
    %v3902 = vsel %vm3723, %v3885, 0
    %v3905 = vsel %vm3723, %v3886, 0
    %v3908 = vsel %vm3723, %v3887, 0
    %v3911 = vsel %vm3723, %v3888, 0
    %v3914 = vsel %vm3748, %v3456, 0
    %3916 = vmatprep.subr.bf16.mxu0 0
    %3917 = vmatpush1.bf16.msra.mxu0 %v3914
    %3918 = vmatprep.subr.bf16.mxu0 0
    %3919 = vmatpush1.bf16.msra.mxu0 0
    %3920 = vmatprep.subr.bf16.mxu0 0
    %3921 = vmatpush1.bf16.msra.mxu0 0
    %3922 = vmatprep.subr.bf16.mxu0 0
    %3923 = vmatpush1.bf16.msra.mxu0 0
    %3924 = vmatprep.subr.bf16.mxu0 0
    %3925 = vmatpush1.bf16.msra.mxu0 0
    %3926 = vmatprep.subr.bf16.mxu0 0
    %3927 = vmatpush1.bf16.msra.mxu0 0
    %3928 = vmatprep.subr.bf16.mxu0 0
    %3929 = vmatpush1.bf16.msra.mxu0 0
    %3930 = vmatprep.subr.bf16.mxu0 0
    %3931 = vmatpush1.bf16.msra.mxu0 0
    %3932 = vmatprep.subr.bf16.mxu0 0
    %3933 = vmatpush1.bf16.msra.mxu0 0
    %3934 = vmatprep.subr.bf16.mxu0 0
    %3935 = vmatpush1.bf16.msra.mxu0 0
    %3936 = vmatprep.subr.bf16.mxu0 0
    %3937 = vmatpush1.bf16.msra.mxu0 0
    %3938 = vmatprep.subr.bf16.mxu0 0
    %3939 = vmatpush1.bf16.msra.mxu0 0
    %3940 = vmatprep.subr.bf16.mxu0 0
    %3941 = vmatpush1.bf16.msra.mxu0 0
    %3942 = vmatprep.subr.bf16.mxu0 0
    %3943 = vmatpush1.bf16.msra.mxu0 0
    %3944 = vmatprep.subr.bf16.mxu0 0
    %3945 = vmatpush1.bf16.msra.mxu0 0
    %3946 = vmatprep.subr.bf16.mxu0 0
    %3947 = vmatpush1.bf16.msra.mxu0 0
    %3948 = vmatprep.mubr.bf16.mxu0 0
    %3949 = vmatmul.mubr.bf16.gmra.mrb[0].mxu0 %v3890
    %v3950 = vpop.f32.mrb[0].mxu0
    %v3951 = vadd.f32 %v3787, %v3950
    %v3952 = vpop.f32.mrb[0].mxu0
    %v3953 = vpop.f32.mrb[0].mxu0
    %v3954 = vadd.f32 %v3790, %v3953
    %v3955 = vpop.f32.mrb[0].mxu0
    %3956 = vmatprep.mubr.bf16.mxu0 0
    %3957 = vmatmul.mubr.bf16.gmra.mrb[0].mxu0 %v3893
    %v3958 = vpop.f32.mrb[0].mxu0
    %v3959 = vadd.f32 %v3795, %v3958
    %v3960 = vpop.f32.mrb[0].mxu0
    %v3961 = vpop.f32.mrb[0].mxu0
    %v3962 = vadd.f32 %v3798, %v3961
    %v3963 = vpop.f32.mrb[0].mxu0
    %3964 = vmatprep.mubr.bf16.mxu0 0
    %3965 = vmatmul.mubr.bf16.gmra.mrb[0].mxu0 %v3896
    %v3966 = vpop.f32.mrb[0].mxu0
    %v3967 = vadd.f32 %v3803, %v3966
    %v3968 = vpop.f32.mrb[0].mxu0
    %v3969 = vpop.f32.mrb[0].mxu0
    %v3970 = vadd.f32 %v3806, %v3969
    %v3971 = vpop.f32.mrb[0].mxu0
    %3972 = vmatprep.mubr.bf16.mxu0 0
    %3973 = vmatmul.mubr.bf16.gmra.mrb[0].mxu0 %v3899
    %v3974 = vpop.f32.mrb[0].mxu0
    %v3975 = vadd.f32 %v3811, %v3974
    %v3976 = vpop.f32.mrb[0].mxu0
    %v3977 = vpop.f32.mrb[0].mxu0
    %v3978 = vadd.f32 %v3814, %v3977
    %v3979 = vpop.f32.mrb[0].mxu0
    %3980 = vmatprep.mubr.bf16.mxu0 0
    %3981 = vmatmul.mubr.bf16.gmra.mrb[0].mxu0 %v3902
    %v3982 = vpop.f32.mrb[0].mxu0
    %v3983 = vadd.f32 %v3819, %v3982
    %v3984 = vpop.f32.mrb[0].mxu0
    %v3985 = vpop.f32.mrb[0].mxu0
    %v3986 = vadd.f32 %v3822, %v3985
    %v3987 = vpop.f32.mrb[0].mxu0
    %3988 = vmatprep.mubr.bf16.mxu0 0
    %3989 = vmatmul.mubr.bf16.gmra.mrb[0].mxu0 %v3905
    %v3990 = vpop.f32.mrb[0].mxu0
    %v3991 = vadd.f32 %v3827, %v3990
    %v3992 = vpop.f32.mrb[0].mxu0
    %v3993 = vpop.f32.mrb[0].mxu0
    %v3994 = vadd.f32 %v3830, %v3993
    %v3995 = vpop.f32.mrb[0].mxu0
    %3996 = vmatprep.mubr.bf16.mxu0 0
    %3997 = vmatmul.mubr.bf16.gmra.mrb[0].mxu0 %v3908
    %v3998 = vpop.f32.mrb[0].mxu0
    %v3999 = vadd.f32 %v3835, %v3998
    %v4000 = vpop.f32.mrb[0].mxu0
    %v4001 = vpop.f32.mrb[0].mxu0
    %v4002 = vadd.f32 %v3838, %v4001
    %v4003 = vpop.f32.mrb[0].mxu0
    %4004 = vmatprep.mubr.bf16.mxu0 0
    %4005 = vmatmul.mubr.bf16.gmra.mrb[0].mxu0 %v3911
    %v4006 = vpop.f32.mrb[0].mxu0
    %v4007 = vadd.f32 %v3843, %v4006
    %v4008 = vpop.f32.mrb[0].mxu0
    %v4009 = vpop.f32.mrb[0].mxu0
    %v4010 = vadd.f32 %v3846, %v4009
    %v4011 = vpop.f32.mrb[0].mxu0
    %4012 = vdwg.mxu0
    %v4013 = vld [vmem:[#allocation2] sm:$0xe]
    %v4014 = vld [vmem:[#allocation2 + $0x8] sm:$0xe]
    %v4015 = vld [vmem:[#allocation2 + $0x10] sm:$0xe]
    %v4016 = vld [vmem:[#allocation2 + $0x18] sm:$0xe]
    %v4017 = vld [vmem:[#allocation2 + $0x20] sm:$0xe]
    %v4018 = vld [vmem:[#allocation2 + $0x28] sm:$0xe]
    %v4019 = vld [vmem:[#allocation2 + $0x30] sm:$0xe]
    %v4020 = vld [vmem:[#allocation2 + $0x38] sm:$0xe]
    %v4021 = vld [vmem:[#allocation2 + $0x50] sm:$0xe]
    %v4022 = vld [vmem:[#allocation2 + $0x58] sm:$0xe]
    %v4023 = vld [vmem:[#allocation2 + $0x60] sm:$0xe]
    %v4024 = vld [vmem:[#allocation2 + $0x68] sm:$0xe]
    %v4025 = vld [vmem:[#allocation2 + $0x70] sm:$0xe]
    %v4026 = vld [vmem:[#allocation2 + $0x78] sm:$0xe]
    %v4027 = vld [vmem:[#allocation2 + $0x80] sm:$0xe]
    %v4028 = vld [vmem:[#allocation2 + $0x88] sm:$0xe]
    %v4061 = vrot.slane %v4013, 5
    %v4062 = vrot.slane %v4061, 4
    %v4063 = vrot.slane %v3457, 5
    %v4064 = vsel %vm721, %v4062, %v4063
    %v4065 = vrot.slane %v4014, 5
    %v4066 = vrot.slane %v4065, 4
    %v4067 = vrot.slane %v3458, 5
    %v4068 = vsel %vm721, %v4066, %v4067
    %v4069 = vrot.slane %v4015, 5
    %v4070 = vrot.slane %v4069, 4
    %v4071 = vrot.slane %v3459, 5
    %v4072 = vsel %vm721, %v4070, %v4071
    %v4073 = vrot.slane %v4016, 5
    %v4074 = vrot.slane %v4073, 4
    %v4075 = vrot.slane %v3460, 5
    %v4076 = vsel %vm721, %v4074, %v4075
    %v4077 = vrot.slane %v4017, 5
    %v4078 = vrot.slane %v4077, 4
    %v4079 = vrot.slane %v3461, 5
    %v4080 = vsel %vm721, %v4078, %v4079
    %v4081 = vrot.slane %v4018, 5
    %v4082 = vrot.slane %v4081, 4
    %v4083 = vrot.slane %v3462, 5
    %v4084 = vsel %vm721, %v4082, %v4083
    %v4085 = vrot.slane %v4019, 5
    %v4086 = vrot.slane %v4085, 4
    %v4087 = vrot.slane %v3463, 5
    %v4088 = vsel %vm721, %v4086, %v4087
    %v4089 = vrot.slane %v4020, 5
    %v4090 = vrot.slane %v4089, 4
    %v4091 = vrot.slane %v3464, 5
    %v4092 = vsel %vm721, %v4090, %v4091
    %v4093 = vrot.slane %v4021, 5
    %v4094 = vrot.slane %v4093, 4
    %v4095 = vrot.slane %v3465, 5
    %v4096 = vsel %vm721, %v4094, %v4095
    %v4097 = vrot.slane %v4022, 5
    %v4098 = vrot.slane %v4097, 4
    %v4099 = vrot.slane %v3466, 5
    %v4100 = vsel %vm721, %v4098, %v4099
    %v4101 = vrot.slane %v4023, 5
    %v4102 = vrot.slane %v4101, 4
    %v4103 = vrot.slane %v3467, 5
    %v4104 = vsel %vm721, %v4102, %v4103
    %v4105 = vrot.slane %v4024, 5
    %v4106 = vrot.slane %v4105, 4
    %v4107 = vrot.slane %v3468, 5
    %v4108 = vsel %vm721, %v4106, %v4107
    %v4109 = vrot.slane %v4025, 5
    %v4110 = vrot.slane %v4109, 4
    %v4111 = vrot.slane %v3469, 5
    %v4112 = vsel %vm721, %v4110, %v4111
    %v4113 = vrot.slane %v4026, 5
    %v4114 = vrot.slane %v4113, 4
    %v4115 = vrot.slane %v3470, 5
    %v4116 = vsel %vm721, %v4114, %v4115
    %v4117 = vrot.slane %v4027, 5
    %v4118 = vrot.slane %v4117, 4
    %v4119 = vrot.slane %v3471, 5
    %v4120 = vsel %vm721, %v4118, %v4119
    %v4121 = vrot.slane %v4028, 5
    %v4122 = vrot.slane %v4121, 4
    %v4123 = vrot.slane %v3472, 5
    %v4124 = vsel %vm721, %v4122, %v4123
    %s4125 = scalar_lea.vmem [#allocation8], 8
    %v4126 = vld [vmem:[%s4125] sm:$0xf]
    %v4127 = vunpack.c.l.b16 %v4064
    %v4128 = vunpack.c.l.b16 %v4068
    %v4129 = vunpack.c.l.b16 %v4072
    %v4130 = vunpack.c.l.b16 %v4076
    %v4131 = vunpack.c.l.b16 %v4080
    %v4132 = vunpack.c.l.b16 %v4084
    %v4133 = vunpack.c.l.b16 %v4088
    %v4134 = vunpack.c.l.b16 %v4092
    %v4135 = vunpack.c.l.b16 %v4096
    %v4136 = vunpack.c.l.b16 %v4100
    %v4137 = vunpack.c.l.b16 %v4104
    %v4138 = vunpack.c.l.b16 %v4108
    %v4139 = vunpack.c.l.b16 %v4112
    %v4140 = vunpack.c.l.b16 %v4116
    %v4141 = vunpack.c.l.b16 %v4120
    %v4142 = vunpack.c.l.b16 %v4124
    %v4143 = vpack.c.b16 %v4128, %v4127
    %v4144 = vpack.c.b16 %v4130, %v4129
    %v4145 = vpack.c.b16 %v4132, %v4131
    %v4146 = vpack.c.b16 %v4134, %v4133
    %v4147 = vpack.c.b16 %v4136, %v4135
    %v4148 = vpack.c.b16 %v4138, %v4137
    %v4149 = vpack.c.b16 %v4140, %v4139
    %v4150 = vpack.c.b16 %v4142, %v4141
    %v4152 = vsel %vm3723, %v4143, 0
    %v4155 = vsel %vm3723, %v4144, 0
    %v4158 = vsel %vm3723, %v4145, 0
    %v4161 = vsel %vm3723, %v4146, 0
    %v4164 = vsel %vm3723, %v4147, 0
    %v4167 = vsel %vm3723, %v4148, 0
    %v4170 = vsel %vm3723, %v4149, 0
    %v4173 = vsel %vm3723, %v4150, 0
    %v4176 = vsel %vm3748, %v4126, 0
    %4178 = vmatprep.subr.bf16.mxu0 0
    %4179 = vmatpush1.bf16.msra.mxu0 %v4176
    %4180 = vmatprep.subr.bf16.mxu0 0
    %4181 = vmatpush1.bf16.msra.mxu0 0
    %4182 = vmatprep.subr.bf16.mxu0 0
    %4183 = vmatpush1.bf16.msra.mxu0 0
    %4184 = vmatprep.subr.bf16.mxu0 0
    %4185 = vmatpush1.bf16.msra.mxu0 0
    %4186 = vmatprep.subr.bf16.mxu0 0
    %4187 = vmatpush1.bf16.msra.mxu0 0
    %4188 = vmatprep.subr.bf16.mxu0 0
    %4189 = vmatpush1.bf16.msra.mxu0 0
    %4190 = vmatprep.subr.bf16.mxu0 0
    %4191 = vmatpush1.bf16.msra.mxu0 0
    %4192 = vmatprep.subr.bf16.mxu0 0
    %4193 = vmatpush1.bf16.msra.mxu0 0
    %4194 = vmatprep.subr.bf16.mxu0 0
    %4195 = vmatpush1.bf16.msra.mxu0 0
    %4196 = vmatprep.subr.bf16.mxu0 0
    %4197 = vmatpush1.bf16.msra.mxu0 0
    %4198 = vmatprep.subr.bf16.mxu0 0
    %4199 = vmatpush1.bf16.msra.mxu0 0
    %4200 = vmatprep.subr.bf16.mxu0 0
    %4201 = vmatpush1.bf16.msra.mxu0 0
    %4202 = vmatprep.subr.bf16.mxu0 0
    %4203 = vmatpush1.bf16.msra.mxu0 0
    %4204 = vmatprep.subr.bf16.mxu0 0
    %4205 = vmatpush1.bf16.msra.mxu0 0
    %4206 = vmatprep.subr.bf16.mxu0 0
    %4207 = vmatpush1.bf16.msra.mxu0 0
    %4208 = vmatprep.subr.bf16.mxu0 0
    %4209 = vmatpush1.bf16.msra.mxu0 0
    %4210 = vmatprep.mubr.bf16.mxu0 0
    %4211 = vmatmul.mubr.bf16.gmra.mrb[0].mxu0 %v4152
    %v4212 = vpop.f32.mrb[0].mxu0
    %v4213 = vadd.f32 0.0, %v4212
    %v4214 = vpop.f32.mrb[0].mxu0
    %v4215 = vpop.f32.mrb[0].mxu0
    %v4216 = vadd.f32 0.0, %v4215
    %v4217 = vpop.f32.mrb[0].mxu0
    %4218 = vmatprep.mubr.bf16.mxu0 0
    %4219 = vmatmul.mubr.bf16.gmra.mrb[0].mxu0 %v4155
    %v4220 = vpop.f32.mrb[0].mxu0
    %v4221 = vadd.f32 0.0, %v4220
    %v4222 = vpop.f32.mrb[0].mxu0
    %v4223 = vpop.f32.mrb[0].mxu0
    %v4224 = vadd.f32 0.0, %v4223
    %v4225 = vpop.f32.mrb[0].mxu0
    %4226 = vmatprep.mubr.bf16.mxu0 0
    %4227 = vmatmul.mubr.bf16.gmra.mrb[0].mxu0 %v4158
    %v4228 = vpop.f32.mrb[0].mxu0
    %v4229 = vadd.f32 0.0, %v4228
    %v4230 = vpop.f32.mrb[0].mxu0
    %v4231 = vpop.f32.mrb[0].mxu0
    %v4232 = vadd.f32 0.0, %v4231
    %v4233 = vpop.f32.mrb[0].mxu0
    %4234 = vmatprep.mubr.bf16.mxu0 0
    %4235 = vmatmul.mubr.bf16.gmra.mrb[0].mxu0 %v4161
    %v4236 = vpop.f32.mrb[0].mxu0
    %v4237 = vadd.f32 0.0, %v4236
    %v4238 = vpop.f32.mrb[0].mxu0
    %v4239 = vpop.f32.mrb[0].mxu0
    %v4240 = vadd.f32 0.0, %v4239
    %v4241 = vpop.f32.mrb[0].mxu0
    %4242 = vmatprep.mubr.bf16.mxu0 0
    %4243 = vmatmul.mubr.bf16.gmra.mrb[0].mxu0 %v4164
    %v4244 = vpop.f32.mrb[0].mxu0
    %v4245 = vadd.f32 0.0, %v4244
    %v4246 = vpop.f32.mrb[0].mxu0
    %v4247 = vpop.f32.mrb[0].mxu0
    %v4248 = vadd.f32 0.0, %v4247
    %v4249 = vpop.f32.mrb[0].mxu0
    %4250 = vmatprep.mubr.bf16.mxu0 0
    %4251 = vmatmul.mubr.bf16.gmra.mrb[0].mxu0 %v4167
    %v4252 = vpop.f32.mrb[0].mxu0
    %v4253 = vadd.f32 0.0, %v4252
    %v4254 = vpop.f32.mrb[0].mxu0
    %v4255 = vpop.f32.mrb[0].mxu0
    %v4256 = vadd.f32 0.0, %v4255
    %v4257 = vpop.f32.mrb[0].mxu0
    %4258 = vmatprep.mubr.bf16.mxu0 0
    %4259 = vmatmul.mubr.bf16.gmra.mrb[0].mxu0 %v4170
    %v4260 = vpop.f32.mrb[0].mxu0
    %v4261 = vadd.f32 0.0, %v4260
    %v4262 = vpop.f32.mrb[0].mxu0
    %v4263 = vpop.f32.mrb[0].mxu0
    %v4264 = vadd.f32 0.0, %v4263
    %v4265 = vpop.f32.mrb[0].mxu0
    %4266 = vmatprep.mubr.bf16.mxu0 0
    %4267 = vmatmul.mubr.bf16.gmra.mrb[0].mxu0 %v4173
    %v4268 = vpop.f32.mrb[0].mxu0
    %v4269 = vadd.f32 0.0, %v4268
    %v4270 = vpop.f32.mrb[0].mxu0
    %v4271 = vpop.f32.mrb[0].mxu0
    %v4272 = vadd.f32 0.0, %v4271
    %v4273 = vpop.f32.mrb[0].mxu0
    %4274 = vdwg.mxu0
    %v4275 = vadd.f32 %v3951, %v4213
    %v4276 = vadd.f32 %v3954, %v4216
    %v4277 = vadd.f32 %v3959, %v4221
    %v4278 = vadd.f32 %v3962, %v4224
    %v4279 = vadd.f32 %v3967, %v4229
    %v4280 = vadd.f32 %v3970, %v4232
    %v4281 = vadd.f32 %v3975, %v4237
    %v4282 = vadd.f32 %v3978, %v4240
    %v4283 = vadd.f32 %v3983, %v4245
    %v4284 = vadd.f32 %v3986, %v4248
    %v4285 = vadd.f32 %v3991, %v4253
    %v4286 = vadd.f32 %v3994, %v4256
    %v4287 = vadd.f32 %v3999, %v4261
    %v4288 = vadd.f32 %v4002, %v4264
    %v4289 = vadd.f32 %v4007, %v4269
    %v4290 = vadd.f32 %v4010, %v4272
    %v4291 = vld [vmem:[%s3016] sm:$0xf]
    %v4292 = vld [vmem:[%s3016 + $0x8] sm:$0xf]
    %v4293 = vld [vmem:[%s3016 + $0x10] sm:$0xf]
    %v4294 = vld [vmem:[%s3016 + $0x18] sm:$0xf]
    %v4295 = vld [vmem:[%s3016 + $0x20] sm:$0xf]
    %v4296 = vld [vmem:[%s3016 + $0x28] sm:$0xf]
    %v4297 = vld [vmem:[%s3016 + $0x30] sm:$0xf]
    %v4298 = vld [vmem:[%s3016 + $0x38] sm:$0xf]
    %v4299 = vld [vmem:[%s3016 + $0x50] sm:$0xf]
    %v4300 = vld [vmem:[%s3016 + $0x58] sm:$0xf]
    %v4301 = vld [vmem:[%s3016 + $0x60] sm:$0xf]
    %v4302 = vld [vmem:[%s3016 + $0x68] sm:$0xf]
    %v4303 = vld [vmem:[%s3016 + $0x70] sm:$0xf]
    %v4304 = vld [vmem:[%s3016 + $0x78] sm:$0xf]
    %v4305 = vld [vmem:[%s3016 + $0x80] sm:$0xf]
    %v4306 = vld [vmem:[%s3016 + $0x88] sm:$0xf]
    %s4307 = scalar_lea.vmem [#allocation8], 12
    %v4308 = vld [vmem:[%s4307] sm:$0xf]
    %v4325 = vunpack.c.l.b16 %v4291
    %v4326 = vunpack.c.l.b16 %v4292
    %v4327 = vunpack.c.l.b16 %v4293
    %v4328 = vunpack.c.l.b16 %v4294
    %v4329 = vunpack.c.l.b16 %v4295
    %v4330 = vunpack.c.l.b16 %v4296
    %v4331 = vunpack.c.l.b16 %v4297
    %v4332 = vunpack.c.l.b16 %v4298
    %v4333 = vunpack.c.l.b16 %v4299
    %v4334 = vunpack.c.l.b16 %v4300
    %v4335 = vunpack.c.l.b16 %v4301
    %v4336 = vunpack.c.l.b16 %v4302
    %v4337 = vunpack.c.l.b16 %v4303
    %v4338 = vunpack.c.l.b16 %v4304
    %v4339 = vunpack.c.l.b16 %v4305
    %v4340 = vunpack.c.l.b16 %v4306
    %v4341 = vpack.c.b16 %v4326, %v4325
    %v4342 = vpack.c.b16 %v4328, %v4327
    %v4343 = vpack.c.b16 %v4330, %v4329
    %v4344 = vpack.c.b16 %v4332, %v4331
    %v4345 = vpack.c.b16 %v4334, %v4333
    %v4346 = vpack.c.b16 %v4336, %v4335
    %v4347 = vpack.c.b16 %v4338, %v4337
    %v4348 = vpack.c.b16 %v4340, %v4339
    %v4350 = vsel %vm3723, %v4341, 0
    %v4353 = vsel %vm3723, %v4342, 0
    %v4356 = vsel %vm3723, %v4343, 0
    %v4359 = vsel %vm3723, %v4344, 0
    %v4362 = vsel %vm3723, %v4345, 0
    %v4365 = vsel %vm3723, %v4346, 0
    %v4368 = vsel %vm3723, %v4347, 0
    %v4371 = vsel %vm3723, %v4348, 0
    %v4374 = vsel %vm3748, %v4308, 0
    %4376 = vmatprep.subr.bf16.mxu0 0
    %4377 = vmatpush1.bf16.msra.mxu0 %v4374
    %4378 = vmatprep.subr.bf16.mxu0 0
    %4379 = vmatpush1.bf16.msra.mxu0 0
    %4380 = vmatprep.subr.bf16.mxu0 0
    %4381 = vmatpush1.bf16.msra.mxu0 0
    %4382 = vmatprep.subr.bf16.mxu0 0
    %4383 = vmatpush1.bf16.msra.mxu0 0
    %4384 = vmatprep.subr.bf16.mxu0 0
    %4385 = vmatpush1.bf16.msra.mxu0 0
    %4386 = vmatprep.subr.bf16.mxu0 0
    %4387 = vmatpush1.bf16.msra.mxu0 0
    %4388 = vmatprep.subr.bf16.mxu0 0
    %4389 = vmatpush1.bf16.msra.mxu0 0
    %4390 = vmatprep.subr.bf16.mxu0 0
    %4391 = vmatpush1.bf16.msra.mxu0 0
    %4392 = vmatprep.subr.bf16.mxu0 0
    %4393 = vmatpush1.bf16.msra.mxu0 0
    %4394 = vmatprep.subr.bf16.mxu0 0
    %4395 = vmatpush1.bf16.msra.mxu0 0
    %4396 = vmatprep.subr.bf16.mxu0 0
    %4397 = vmatpush1.bf16.msra.mxu0 0
    %4398 = vmatprep.subr.bf16.mxu0 0
    %4399 = vmatpush1.bf16.msra.mxu0 0
    %4400 = vmatprep.subr.bf16.mxu0 0
    %4401 = vmatpush1.bf16.msra.mxu0 0
    %4402 = vmatprep.subr.bf16.mxu0 0
    %4403 = vmatpush1.bf16.msra.mxu0 0
    %4404 = vmatprep.subr.bf16.mxu0 0
    %4405 = vmatpush1.bf16.msra.mxu0 0
    %4406 = vmatprep.subr.bf16.mxu0 0
    %4407 = vmatpush1.bf16.msra.mxu0 0
    %4408 = vmatprep.mubr.bf16.mxu0 0
    %4409 = vmatmul.mubr.bf16.gmra.mrb[0].mxu0 %v4350
    %v4410 = vpop.f32.mrb[0].mxu0
    %v4411 = vadd.f32 0.0, %v4410
    %v4412 = vpop.f32.mrb[0].mxu0
    %v4413 = vpop.f32.mrb[0].mxu0
    %v4414 = vadd.f32 0.0, %v4413
    %v4415 = vpop.f32.mrb[0].mxu0
    %4416 = vmatprep.mubr.bf16.mxu0 0
    %4417 = vmatmul.mubr.bf16.gmra.mrb[0].mxu0 %v4353
    %v4418 = vpop.f32.mrb[0].mxu0
    %v4419 = vadd.f32 0.0, %v4418
    %v4420 = vpop.f32.mrb[0].mxu0
    %v4421 = vpop.f32.mrb[0].mxu0
    %v4422 = vadd.f32 0.0, %v4421
    %v4423 = vpop.f32.mrb[0].mxu0
    %4424 = vmatprep.mubr.bf16.mxu0 0
    %4425 = vmatmul.mubr.bf16.gmra.mrb[0].mxu0 %v4356
    %v4426 = vpop.f32.mrb[0].mxu0
    %v4427 = vadd.f32 0.0, %v4426
    %v4428 = vpop.f32.mrb[0].mxu0
    %v4429 = vpop.f32.mrb[0].mxu0
    %v4430 = vadd.f32 0.0, %v4429
    %v4431 = vpop.f32.mrb[0].mxu0
    %4432 = vmatprep.mubr.bf16.mxu0 0
    %4433 = vmatmul.mubr.bf16.gmra.mrb[0].mxu0 %v4359
    %v4434 = vpop.f32.mrb[0].mxu0
    %v4435 = vadd.f32 0.0, %v4434
    %v4436 = vpop.f32.mrb[0].mxu0
    %v4437 = vpop.f32.mrb[0].mxu0
    %v4438 = vadd.f32 0.0, %v4437
    %v4439 = vpop.f32.mrb[0].mxu0
    %4440 = vmatprep.mubr.bf16.mxu0 0
    %4441 = vmatmul.mubr.bf16.gmra.mrb[0].mxu0 %v4362
    %v4442 = vpop.f32.mrb[0].mxu0
    %v4443 = vadd.f32 0.0, %v4442
    %v4444 = vpop.f32.mrb[0].mxu0
    %v4445 = vpop.f32.mrb[0].mxu0
    %v4446 = vadd.f32 0.0, %v4445
    %v4447 = vpop.f32.mrb[0].mxu0
    %4448 = vmatprep.mubr.bf16.mxu0 0
    %4449 = vmatmul.mubr.bf16.gmra.mrb[0].mxu0 %v4365
    %v4450 = vpop.f32.mrb[0].mxu0
    %v4451 = vadd.f32 0.0, %v4450
    %v4452 = vpop.f32.mrb[0].mxu0
    %v4453 = vpop.f32.mrb[0].mxu0
    %v4454 = vadd.f32 0.0, %v4453
    %v4455 = vpop.f32.mrb[0].mxu0
    %4456 = vmatprep.mubr.bf16.mxu0 0
    %4457 = vmatmul.mubr.bf16.gmra.mrb[0].mxu0 %v4368
    %v4458 = vpop.f32.mrb[0].mxu0
    %v4459 = vadd.f32 0.0, %v4458
    %v4460 = vpop.f32.mrb[0].mxu0
    %v4461 = vpop.f32.mrb[0].mxu0
    %v4462 = vadd.f32 0.0, %v4461
    %v4463 = vpop.f32.mrb[0].mxu0
    %4464 = vmatprep.mubr.bf16.mxu0 0
    %4465 = vmatmul.mubr.bf16.gmra.mrb[0].mxu0 %v4371
    %v4466 = vpop.f32.mrb[0].mxu0
    %v4467 = vadd.f32 0.0, %v4466
    %v4468 = vpop.f32.mrb[0].mxu0
    %v4469 = vpop.f32.mrb[0].mxu0
    %v4470 = vadd.f32 0.0, %v4469
    %v4471 = vpop.f32.mrb[0].mxu0
    %4472 = vdwg.mxu0
    %v4473 = vadd.f32 %v4275, %v4411
    %v4474 = vadd.f32 %v4276, %v4414
    %v4475 = vadd.f32 %v4277, %v4419
    %v4476 = vadd.f32 %v4278, %v4422
    %v4477 = vadd.f32 %v4279, %v4427
    %v4478 = vadd.f32 %v4280, %v4430
    %v4479 = vadd.f32 %v4281, %v4435
    %v4480 = vadd.f32 %v4282, %v4438
    %v4481 = vadd.f32 %v4283, %v4443
    %v4482 = vadd.f32 %v4284, %v4446
    %v4483 = vadd.f32 %v4285, %v4451
    %v4484 = vadd.f32 %v4286, %v4454
    %v4485 = vadd.f32 %v4287, %v4459
    %v4486 = vadd.f32 %v4288, %v4462
    %v4487 = vadd.f32 %v4289, %v4467
    %v4488 = vadd.f32 %v4290, %v4470
    %v4489 = vld [vmem:[%s3016] sm:$0xf]
    %v4490 = vld [vmem:[%s3016 + $0x4] sm:$0x1]
    %v4491 = vld [vmem:[%s3016 + $0x8] sm:$0xf]
    %v4492 = vld [vmem:[%s3016 + $0xc] sm:$0x1]
    %v4493 = vld [vmem:[%s3016 + $0x10] sm:$0xf]
    %v4494 = vld [vmem:[%s3016 + $0x14] sm:$0x1]
    %v4495 = vld [vmem:[%s3016 + $0x18] sm:$0xf]
    %v4496 = vld [vmem:[%s3016 + $0x1c] sm:$0x1]
    %v4497 = vld [vmem:[%s3016 + $0x20] sm:$0xf]
    %v4498 = vld [vmem:[%s3016 + $0x24] sm:$0x1]
    %v4499 = vld [vmem:[%s3016 + $0x28] sm:$0xf]
    %v4500 = vld [vmem:[%s3016 + $0x2c] sm:$0x1]
    %v4501 = vld [vmem:[%s3016 + $0x30] sm:$0xf]
    %v4502 = vld [vmem:[%s3016 + $0x34] sm:$0x1]
    %v4503 = vld [vmem:[%s3016 + $0x38] sm:$0xf]
    %v4504 = vld [vmem:[%s3016 + $0x3c] sm:$0x1]
    %v4505 = vld [vmem:[%s3016 + $0x50] sm:$0xf]
    %v4506 = vld [vmem:[%s3016 + $0x54] sm:$0x1]
    %v4507 = vld [vmem:[%s3016 + $0x58] sm:$0xf]
    %v4508 = vld [vmem:[%s3016 + $0x5c] sm:$0x1]
    %v4509 = vld [vmem:[%s3016 + $0x60] sm:$0xf]
    %v4510 = vld [vmem:[%s3016 + $0x64] sm:$0x1]
    %v4511 = vld [vmem:[%s3016 + $0x68] sm:$0xf]
    %v4512 = vld [vmem:[%s3016 + $0x6c] sm:$0x1]
    %v4513 = vld [vmem:[%s3016 + $0x70] sm:$0xf]
    %v4514 = vld [vmem:[%s3016 + $0x74] sm:$0x1]
    %v4515 = vld [vmem:[%s3016 + $0x78] sm:$0xf]
    %v4516 = vld [vmem:[%s3016 + $0x7c] sm:$0x1]
    %v4517 = vld [vmem:[%s3016 + $0x80] sm:$0xf]
    %v4518 = vld [vmem:[%s3016 + $0x84] sm:$0x1]
    %v4519 = vld [vmem:[%s3016 + $0x88] sm:$0xf]
    %v4520 = vld [vmem:[%s3016 + $0x8c] sm:$0x1]
    %v4522 = vshrl.u32 %v4489, 16
    %v4524 = vrot.slane %v4522, 4
    %v4525 = vshll.u32 %v4489, 16
    %v4527 = vrot.slane %v4525, 5
    %v4528 = vor.u32 %v4524, %v4527
    %v4529 = vrot.slane %v4528, 4
    %v4531 = vshll.u32 %v4490, 16
    %v4533 = vrot.slane %v4531, 5
    %v4534 = vsel %vm124, %v4529, %v4533
    %v4536 = vshrl.u32 %v4491, 16
    %v4538 = vrot.slane %v4536, 4
    %v4539 = vshll.u32 %v4491, 16
    %v4541 = vrot.slane %v4539, 5
    %v4542 = vor.u32 %v4538, %v4541
    %v4543 = vrot.slane %v4542, 4
    %v4545 = vshll.u32 %v4492, 16
    %v4547 = vrot.slane %v4545, 5
    %v4548 = vsel %vm124, %v4543, %v4547
    %v4550 = vshrl.u32 %v4493, 16
    %v4552 = vrot.slane %v4550, 4
    %v4553 = vshll.u32 %v4493, 16
    %v4555 = vrot.slane %v4553, 5
    %v4556 = vor.u32 %v4552, %v4555
    %v4557 = vrot.slane %v4556, 4
    %v4559 = vshll.u32 %v4494, 16
    %v4561 = vrot.slane %v4559, 5
    %v4562 = vsel %vm124, %v4557, %v4561
    %v4564 = vshrl.u32 %v4495, 16
    %v4566 = vrot.slane %v4564, 4
    %v4567 = vshll.u32 %v4495, 16
    %v4569 = vrot.slane %v4567, 5
    %v4570 = vor.u32 %v4566, %v4569
    %v4571 = vrot.slane %v4570, 4
    %v4573 = vshll.u32 %v4496, 16
    %v4575 = vrot.slane %v4573, 5
    %v4576 = vsel %vm124, %v4571, %v4575
    %v4578 = vshrl.u32 %v4497, 16
    %v4580 = vrot.slane %v4578, 4
    %v4581 = vshll.u32 %v4497, 16
    %v4583 = vrot.slane %v4581, 5
    %v4584 = vor.u32 %v4580, %v4583
    %v4585 = vrot.slane %v4584, 4
    %v4587 = vshll.u32 %v4498, 16
    %v4589 = vrot.slane %v4587, 5
    %v4590 = vsel %vm124, %v4585, %v4589
    %v4592 = vshrl.u32 %v4499, 16
    %v4594 = vrot.slane %v4592, 4
    %v4595 = vshll.u32 %v4499, 16
    %v4597 = vrot.slane %v4595, 5
    %v4598 = vor.u32 %v4594, %v4597
    %v4599 = vrot.slane %v4598, 4
    %v4601 = vshll.u32 %v4500, 16
    %v4603 = vrot.slane %v4601, 5
    %v4604 = vsel %vm124, %v4599, %v4603
    %v4606 = vshrl.u32 %v4501, 16
    %v4608 = vrot.slane %v4606, 4
    %v4609 = vshll.u32 %v4501, 16
    %v4611 = vrot.slane %v4609, 5
    %v4612 = vor.u32 %v4608, %v4611
    %v4613 = vrot.slane %v4612, 4
    %v4615 = vshll.u32 %v4502, 16
    %v4617 = vrot.slane %v4615, 5
    %v4618 = vsel %vm124, %v4613, %v4617
    %v4620 = vshrl.u32 %v4503, 16
    %v4622 = vrot.slane %v4620, 4
    %v4623 = vshll.u32 %v4503, 16
    %v4625 = vrot.slane %v4623, 5
    %v4626 = vor.u32 %v4622, %v4625
    %v4627 = vrot.slane %v4626, 4
    %v4629 = vshll.u32 %v4504, 16
    %v4631 = vrot.slane %v4629, 5
    %v4632 = vsel %vm124, %v4627, %v4631
    %v4634 = vshrl.u32 %v4505, 16
    %v4636 = vrot.slane %v4634, 4
    %v4637 = vshll.u32 %v4505, 16
    %v4639 = vrot.slane %v4637, 5
    %v4640 = vor.u32 %v4636, %v4639
    %v4641 = vrot.slane %v4640, 4
    %v4643 = vshll.u32 %v4506, 16
    %v4645 = vrot.slane %v4643, 5
    %v4646 = vsel %vm124, %v4641, %v4645
    %v4648 = vshrl.u32 %v4507, 16
    %v4650 = vrot.slane %v4648, 4
    %v4651 = vshll.u32 %v4507, 16
    %v4653 = vrot.slane %v4651, 5
    %v4654 = vor.u32 %v4650, %v4653
    %v4655 = vrot.slane %v4654, 4
    %v4657 = vshll.u32 %v4508, 16
    %v4659 = vrot.slane %v4657, 5
    %v4660 = vsel %vm124, %v4655, %v4659
    %v4662 = vshrl.u32 %v4509, 16
    %v4664 = vrot.slane %v4662, 4
    %v4665 = vshll.u32 %v4509, 16
    %v4667 = vrot.slane %v4665, 5
    %v4668 = vor.u32 %v4664, %v4667
    %v4669 = vrot.slane %v4668, 4
    %v4671 = vshll.u32 %v4510, 16
    %v4673 = vrot.slane %v4671, 5
    %v4674 = vsel %vm124, %v4669, %v4673
    %v4676 = vshrl.u32 %v4511, 16
    %v4678 = vrot.slane %v4676, 4
    %v4679 = vshll.u32 %v4511, 16
    %v4681 = vrot.slane %v4679, 5
    %v4682 = vor.u32 %v4678, %v4681
    %v4683 = vrot.slane %v4682, 4
    %v4685 = vshll.u32 %v4512, 16
    %v4687 = vrot.slane %v4685, 5
    %v4688 = vsel %vm124, %v4683, %v4687
    %v4690 = vshrl.u32 %v4513, 16
    %v4692 = vrot.slane %v4690, 4
    %v4693 = vshll.u32 %v4513, 16
    %v4695 = vrot.slane %v4693, 5
    %v4696 = vor.u32 %v4692, %v4695
    %v4697 = vrot.slane %v4696, 4
    %v4699 = vshll.u32 %v4514, 16
    %v4701 = vrot.slane %v4699, 5
    %v4702 = vsel %vm124, %v4697, %v4701
    %v4704 = vshrl.u32 %v4515, 16
    %v4706 = vrot.slane %v4704, 4
    %v4707 = vshll.u32 %v4515, 16
    %v4709 = vrot.slane %v4707, 5
    %v4710 = vor.u32 %v4706, %v4709
    %v4711 = vrot.slane %v4710, 4
    %v4713 = vshll.u32 %v4516, 16
    %v4715 = vrot.slane %v4713, 5
    %v4716 = vsel %vm124, %v4711, %v4715
    %v4718 = vshrl.u32 %v4517, 16
    %v4720 = vrot.slane %v4718, 4
    %v4721 = vshll.u32 %v4517, 16
    %v4723 = vrot.slane %v4721, 5
    %v4724 = vor.u32 %v4720, %v4723
    %v4725 = vrot.slane %v4724, 4
    %v4727 = vshll.u32 %v4518, 16
    %v4729 = vrot.slane %v4727, 5
    %v4730 = vsel %vm124, %v4725, %v4729
    %v4732 = vshrl.u32 %v4519, 16
    %v4734 = vrot.slane %v4732, 4
    %v4735 = vshll.u32 %v4519, 16
    %v4737 = vrot.slane %v4735, 5
    %v4738 = vor.u32 %v4734, %v4737
    %v4739 = vrot.slane %v4738, 4
    %v4741 = vshll.u32 %v4520, 16
    %v4743 = vrot.slane %v4741, 5
    %v4744 = vsel %vm124, %v4739, %v4743
    %s4745 = scalar_lea.vmem [#allocation8], 16
    %v4746 = vld [vmem:[%s4745] sm:$0xf]
    %v4747 = vunpack.c.l.b16 %v4534
    %v4748 = vunpack.c.l.b16 %v4548
    %v4749 = vunpack.c.l.b16 %v4562
    %v4750 = vunpack.c.l.b16 %v4576
    %v4751 = vunpack.c.l.b16 %v4590
    %v4752 = vunpack.c.l.b16 %v4604
    %v4753 = vunpack.c.l.b16 %v4618
    %v4754 = vunpack.c.l.b16 %v4632
    %v4755 = vunpack.c.l.b16 %v4646
    %v4756 = vunpack.c.l.b16 %v4660
    %v4757 = vunpack.c.l.b16 %v4674
    %v4758 = vunpack.c.l.b16 %v4688
    %v4759 = vunpack.c.l.b16 %v4702
    %v4760 = vunpack.c.l.b16 %v4716
    %v4761 = vunpack.c.l.b16 %v4730
    %v4762 = vunpack.c.l.b16 %v4744
    %v4763 = vpack.c.b16 %v4748, %v4747
    %v4764 = vpack.c.b16 %v4750, %v4749
    %v4765 = vpack.c.b16 %v4752, %v4751
    %v4766 = vpack.c.b16 %v4754, %v4753
    %v4767 = vpack.c.b16 %v4756, %v4755
    %v4768 = vpack.c.b16 %v4758, %v4757
    %v4769 = vpack.c.b16 %v4760, %v4759
    %v4770 = vpack.c.b16 %v4762, %v4761
    %v4772 = vsel %vm3723, %v4763, 0
    %v4775 = vsel %vm3723, %v4764, 0
    %v4778 = vsel %vm3723, %v4765, 0
    %v4781 = vsel %vm3723, %v4766, 0
    %v4784 = vsel %vm3723, %v4767, 0
    %v4787 = vsel %vm3723, %v4768, 0
    %v4790 = vsel %vm3723, %v4769, 0
    %v4793 = vsel %vm3723, %v4770, 0
    %v4796 = vsel %vm3748, %v4746, 0
    %4798 = vmatprep.subr.bf16.mxu0 0
    %4799 = vmatpush1.bf16.msra.mxu0 %v4796
    %4800 = vmatprep.subr.bf16.mxu0 0
    %4801 = vmatpush1.bf16.msra.mxu0 0
    %4802 = vmatprep.subr.bf16.mxu0 0
    %4803 = vmatpush1.bf16.msra.mxu0 0
    %4804 = vmatprep.subr.bf16.mxu0 0
    %4805 = vmatpush1.bf16.msra.mxu0 0
    %4806 = vmatprep.subr.bf16.mxu0 0
    %4807 = vmatpush1.bf16.msra.mxu0 0
    %4808 = vmatprep.subr.bf16.mxu0 0
    %4809 = vmatpush1.bf16.msra.mxu0 0
    %4810 = vmatprep.subr.bf16.mxu0 0
    %4811 = vmatpush1.bf16.msra.mxu0 0
    %4812 = vmatprep.subr.bf16.mxu0 0
    %4813 = vmatpush1.bf16.msra.mxu0 0
    %4814 = vmatprep.subr.bf16.mxu0 0
    %4815 = vmatpush1.bf16.msra.mxu0 0
    %4816 = vmatprep.subr.bf16.mxu0 0
    %4817 = vmatpush1.bf16.msra.mxu0 0
    %4818 = vmatprep.subr.bf16.mxu0 0
    %4819 = vmatpush1.bf16.msra.mxu0 0
    %4820 = vmatprep.subr.bf16.mxu0 0
    %4821 = vmatpush1.bf16.msra.mxu0 0
    %4822 = vmatprep.subr.bf16.mxu0 0
    %4823 = vmatpush1.bf16.msra.mxu0 0
    %4824 = vmatprep.subr.bf16.mxu0 0
    %4825 = vmatpush1.bf16.msra.mxu0 0
    %4826 = vmatprep.subr.bf16.mxu0 0
    %4827 = vmatpush1.bf16.msra.mxu0 0
    %4828 = vmatprep.subr.bf16.mxu0 0
    %4829 = vmatpush1.bf16.msra.mxu0 0
    %4830 = vmatprep.mubr.bf16.mxu0 0
    %4831 = vmatmul.mubr.bf16.gmra.mrb[0].mxu0 %v4772
    %v4832 = vpop.f32.mrb[0].mxu0
    %v4833 = vadd.f32 0.0, %v4832
    %v4834 = vpop.f32.mrb[0].mxu0
    %v4835 = vpop.f32.mrb[0].mxu0
    %v4836 = vadd.f32 0.0, %v4835
    %v4837 = vpop.f32.mrb[0].mxu0
    %4838 = vmatprep.mubr.bf16.mxu0 0
    %4839 = vmatmul.mubr.bf16.gmra.mrb[0].mxu0 %v4775
    %v4840 = vpop.f32.mrb[0].mxu0
    %v4841 = vadd.f32 0.0, %v4840
    %v4842 = vpop.f32.mrb[0].mxu0
    %v4843 = vpop.f32.mrb[0].mxu0
    %v4844 = vadd.f32 0.0, %v4843
    %v4845 = vpop.f32.mrb[0].mxu0
    %4846 = vmatprep.mubr.bf16.mxu0 0
    %4847 = vmatmul.mubr.bf16.gmra.mrb[0].mxu0 %v4778
    %v4848 = vpop.f32.mrb[0].mxu0
    %v4849 = vadd.f32 0.0, %v4848
    %v4850 = vpop.f32.mrb[0].mxu0
    %v4851 = vpop.f32.mrb[0].mxu0
    %v4852 = vadd.f32 0.0, %v4851
    %v4853 = vpop.f32.mrb[0].mxu0
    %4854 = vmatprep.mubr.bf16.mxu0 0
    %4855 = vmatmul.mubr.bf16.gmra.mrb[0].mxu0 %v4781
    %v4856 = vpop.f32.mrb[0].mxu0
    %v4857 = vadd.f32 0.0, %v4856
    %v4858 = vpop.f32.mrb[0].mxu0
    %v4859 = vpop.f32.mrb[0].mxu0
    %v4860 = vadd.f32 0.0, %v4859
    %v4861 = vpop.f32.mrb[0].mxu0
    %4862 = vmatprep.mubr.bf16.mxu0 0
    %4863 = vmatmul.mubr.bf16.gmra.mrb[0].mxu0 %v4784
    %v4864 = vpop.f32.mrb[0].mxu0
    %v4865 = vadd.f32 0.0, %v4864
    %v4866 = vpop.f32.mrb[0].mxu0
    %v4867 = vpop.f32.mrb[0].mxu0
    %v4868 = vadd.f32 0.0, %v4867
    %v4869 = vpop.f32.mrb[0].mxu0
    %4870 = vmatprep.mubr.bf16.mxu0 0
    %4871 = vmatmul.mubr.bf16.gmra.mrb[0].mxu0 %v4787
    %v4872 = vpop.f32.mrb[0].mxu0
    %v4873 = vadd.f32 0.0, %v4872
    %v4874 = vpop.f32.mrb[0].mxu0
    %v4875 = vpop.f32.mrb[0].mxu0
    %v4876 = vadd.f32 0.0, %v4875
    %v4877 = vpop.f32.mrb[0].mxu0
    %4878 = vmatprep.mubr.bf16.mxu0 0
    %4879 = vmatmul.mubr.bf16.gmra.mrb[0].mxu0 %v4790
    %v4880 = vpop.f32.mrb[0].mxu0
    %v4881 = vadd.f32 0.0, %v4880
    %v4882 = vpop.f32.mrb[0].mxu0
    %v4883 = vpop.f32.mrb[0].mxu0
    %v4884 = vadd.f32 0.0, %v4883
    %v4885 = vpop.f32.mrb[0].mxu0
    %4886 = vmatprep.mubr.bf16.mxu0 0
    %4887 = vmatmul.mubr.bf16.gmra.mrb[0].mxu0 %v4793
    %v4888 = vpop.f32.mrb[0].mxu0
    %v4889 = vadd.f32 0.0, %v4888
    %v4890 = vpop.f32.mrb[0].mxu0
    %v4891 = vpop.f32.mrb[0].mxu0
    %v4892 = vadd.f32 0.0, %v4891
    %v4893 = vpop.f32.mrb[0].mxu0
    %4894 = vdwg.mxu0
    %v4895 = vadd.f32 %v4473, %v4833
    %v4896 = vadd.f32 %v4474, %v4836
    %v4897 = vadd.f32 %v4475, %v4841
    %v4898 = vadd.f32 %v4476, %v4844
    %v4899 = vadd.f32 %v4477, %v4849
    %v4900 = vadd.f32 %v4478, %v4852
    %v4901 = vadd.f32 %v4479, %v4857
    %v4902 = vadd.f32 %v4480, %v4860
    %v4903 = vadd.f32 %v4481, %v4865
    %v4904 = vadd.f32 %v4482, %v4868
    %v4905 = vadd.f32 %v4483, %v4873
    %v4906 = vadd.f32 %v4484, %v4876
    %v4907 = vadd.f32 %v4485, %v4881
    %v4908 = vadd.f32 %v4486, %v4884
    %v4909 = vadd.f32 %v4487, %v4889
    %v4910 = vadd.f32 %v4488, %v4892
    %v4911 = vld [vmem:[%s3016] sm:$0xe]
    %v4912 = vld [vmem:[%s3016 + $0x8] sm:$0xe]
    %v4913 = vld [vmem:[%s3016 + $0x10] sm:$0xe]
    %v4914 = vld [vmem:[%s3016 + $0x18] sm:$0xe]
    %v4915 = vld [vmem:[%s3016 + $0x20] sm:$0xe]
    %v4916 = vld [vmem:[%s3016 + $0x28] sm:$0xe]
    %v4917 = vld [vmem:[%s3016 + $0x30] sm:$0xe]
    %v4918 = vld [vmem:[%s3016 + $0x38] sm:$0xe]
    %v4919 = vld [vmem:[%s3016 + $0x50] sm:$0xe]
    %v4920 = vld [vmem:[%s3016 + $0x58] sm:$0xe]
    %v4921 = vld [vmem:[%s3016 + $0x60] sm:$0xe]
    %v4922 = vld [vmem:[%s3016 + $0x68] sm:$0xe]
    %v4923 = vld [vmem:[%s3016 + $0x70] sm:$0xe]
    %v4924 = vld [vmem:[%s3016 + $0x78] sm:$0xe]
    %v4925 = vld [vmem:[%s3016 + $0x80] sm:$0xe]
    %v4926 = vld [vmem:[%s3016 + $0x88] sm:$0xe]
    %v4959 = vrot.slane %v4911, 5
    %v4960 = vrot.slane %v4959, 4
    %v4961 = vrot.slane %v4490, 5
    %v4962 = vsel %vm721, %v4960, %v4961
    %v4963 = vrot.slane %v4912, 5
    %v4964 = vrot.slane %v4963, 4
    %v4965 = vrot.slane %v4492, 5
    %v4966 = vsel %vm721, %v4964, %v4965
    %v4967 = vrot.slane %v4913, 5
    %v4968 = vrot.slane %v4967, 4
    %v4969 = vrot.slane %v4494, 5
    %v4970 = vsel %vm721, %v4968, %v4969
    %v4971 = vrot.slane %v4914, 5
    %v4972 = vrot.slane %v4971, 4
    %v4973 = vrot.slane %v4496, 5
    %v4974 = vsel %vm721, %v4972, %v4973
    %v4975 = vrot.slane %v4915, 5
    %v4976 = vrot.slane %v4975, 4
    %v4977 = vrot.slane %v4498, 5
    %v4978 = vsel %vm721, %v4976, %v4977
    %v4979 = vrot.slane %v4916, 5
    %v4980 = vrot.slane %v4979, 4
    %v4981 = vrot.slane %v4500, 5
    %v4982 = vsel %vm721, %v4980, %v4981
    %v4983 = vrot.slane %v4917, 5
    %v4984 = vrot.slane %v4983, 4
    %v4985 = vrot.slane %v4502, 5
    %v4986 = vsel %vm721, %v4984, %v4985
    %v4987 = vrot.slane %v4918, 5
    %v4988 = vrot.slane %v4987, 4
    %v4989 = vrot.slane %v4504, 5
    %v4990 = vsel %vm721, %v4988, %v4989
    %v4991 = vrot.slane %v4919, 5
    %v4992 = vrot.slane %v4991, 4
    %v4993 = vrot.slane %v4506, 5
    %v4994 = vsel %vm721, %v4992, %v4993
    %v4995 = vrot.slane %v4920, 5
    %v4996 = vrot.slane %v4995, 4
    %v4997 = vrot.slane %v4508, 5
    %v4998 = vsel %vm721, %v4996, %v4997
    %v4999 = vrot.slane %v4921, 5
    %v5000 = vrot.slane %v4999, 4
    %v5001 = vrot.slane %v4510, 5
    %v5002 = vsel %vm721, %v5000, %v5001
    %v5003 = vrot.slane %v4922, 5
    %v5004 = vrot.slane %v5003, 4
    %v5005 = vrot.slane %v4512, 5
    %v5006 = vsel %vm721, %v5004, %v5005
    %v5007 = vrot.slane %v4923, 5
    %v5008 = vrot.slane %v5007, 4
    %v5009 = vrot.slane %v4514, 5
    %v5010 = vsel %vm721, %v5008, %v5009
    %v5011 = vrot.slane %v4924, 5
    %v5012 = vrot.slane %v5011, 4
    %v5013 = vrot.slane %v4516, 5
    %v5014 = vsel %vm721, %v5012, %v5013
    %v5015 = vrot.slane %v4925, 5
    %v5016 = vrot.slane %v5015, 4
    %v5017 = vrot.slane %v4518, 5
    %v5018 = vsel %vm721, %v5016, %v5017
    %v5019 = vrot.slane %v4926, 5
    %v5020 = vrot.slane %v5019, 4
    %v5021 = vrot.slane %v4520, 5
    %v5022 = vsel %vm721, %v5020, %v5021
    %s5023 = scalar_lea.vmem [#allocation8], 20
    %v5024 = vld [vmem:[%s5023] sm:$0xf]
    %v5025 = vunpack.c.l.b16 %v4962
    %v5026 = vunpack.c.l.b16 %v4966
    %v5027 = vunpack.c.l.b16 %v4970
    %v5028 = vunpack.c.l.b16 %v4974
    %v5029 = vunpack.c.l.b16 %v4978
    %v5030 = vunpack.c.l.b16 %v4982
    %v5031 = vunpack.c.l.b16 %v4986
    %v5032 = vunpack.c.l.b16 %v4990
    %v5033 = vunpack.c.l.b16 %v4994
    %v5034 = vunpack.c.l.b16 %v4998
    %v5035 = vunpack.c.l.b16 %v5002
    %v5036 = vunpack.c.l.b16 %v5006
    %v5037 = vunpack.c.l.b16 %v5010
    %v5038 = vunpack.c.l.b16 %v5014
    %v5039 = vunpack.c.l.b16 %v5018
    %v5040 = vunpack.c.l.b16 %v5022
    %v5041 = vpack.c.b16 %v5026, %v5025
    %v5042 = vpack.c.b16 %v5028, %v5027
    %v5043 = vpack.c.b16 %v5030, %v5029
    %v5044 = vpack.c.b16 %v5032, %v5031
    %v5045 = vpack.c.b16 %v5034, %v5033
    %v5046 = vpack.c.b16 %v5036, %v5035
    %v5047 = vpack.c.b16 %v5038, %v5037
    %v5048 = vpack.c.b16 %v5040, %v5039
    %v5050 = vsel %vm3723, %v5041, 0
    %v5053 = vsel %vm3723, %v5042, 0
    %v5056 = vsel %vm3723, %v5043, 0
    %v5059 = vsel %vm3723, %v5044, 0
    %v5062 = vsel %vm3723, %v5045, 0
    %v5065 = vsel %vm3723, %v5046, 0
    %v5068 = vsel %vm3723, %v5047, 0
    %v5071 = vsel %vm3723, %v5048, 0
    %v5074 = vsel %vm3748, %v5024, 0
    %5076 = vmatprep.subr.bf16.mxu0 0
    %5077 = vmatpush1.bf16.msra.mxu0 %v5074
    %5078 = vmatprep.subr.bf16.mxu0 0
    %5079 = vmatpush1.bf16.msra.mxu0 0
    %5080 = vmatprep.subr.bf16.mxu0 0
    %5081 = vmatpush1.bf16.msra.mxu0 0
    %5082 = vmatprep.subr.bf16.mxu0 0
    %5083 = vmatpush1.bf16.msra.mxu0 0
    %5084 = vmatprep.subr.bf16.mxu0 0
    %5085 = vmatpush1.bf16.msra.mxu0 0
    %5086 = vmatprep.subr.bf16.mxu0 0
    %5087 = vmatpush1.bf16.msra.mxu0 0
    %5088 = vmatprep.subr.bf16.mxu0 0
    %5089 = vmatpush1.bf16.msra.mxu0 0
    %5090 = vmatprep.subr.bf16.mxu0 0
    %5091 = vmatpush1.bf16.msra.mxu0 0
    %5092 = vmatprep.subr.bf16.mxu0 0
    %5093 = vmatpush1.bf16.msra.mxu0 0
    %5094 = vmatprep.subr.bf16.mxu0 0
    %5095 = vmatpush1.bf16.msra.mxu0 0
    %5096 = vmatprep.subr.bf16.mxu0 0
    %5097 = vmatpush1.bf16.msra.mxu0 0
    %5098 = vmatprep.subr.bf16.mxu0 0
    %5099 = vmatpush1.bf16.msra.mxu0 0
    %5100 = vmatprep.subr.bf16.mxu0 0
    %5101 = vmatpush1.bf16.msra.mxu0 0
    %5102 = vmatprep.subr.bf16.mxu0 0
    %5103 = vmatpush1.bf16.msra.mxu0 0
    %5104 = vmatprep.subr.bf16.mxu0 0
    %5105 = vmatpush1.bf16.msra.mxu0 0
    %5106 = vmatprep.subr.bf16.mxu0 0
    %5107 = vmatpush1.bf16.msra.mxu0 0
    %5108 = vmatprep.mubr.bf16.mxu0 0
    %5109 = vmatmul.mubr.bf16.gmra.mrb[0].mxu0 %v5050
    %v5110 = vpop.f32.mrb[0].mxu0
    %v5111 = vadd.f32 0.0, %v5110
    %v5112 = vpop.f32.mrb[0].mxu0
    %v5113 = vpop.f32.mrb[0].mxu0
    %v5114 = vadd.f32 0.0, %v5113
    %v5115 = vpop.f32.mrb[0].mxu0
    %5116 = vmatprep.mubr.bf16.mxu0 0
    %5117 = vmatmul.mubr.bf16.gmra.mrb[0].mxu0 %v5053
    %v5118 = vpop.f32.mrb[0].mxu0
    %v5119 = vadd.f32 0.0, %v5118
    %v5120 = vpop.f32.mrb[0].mxu0
    %v5121 = vpop.f32.mrb[0].mxu0
    %v5122 = vadd.f32 0.0, %v5121
    %v5123 = vpop.f32.mrb[0].mxu0
    %5124 = vmatprep.mubr.bf16.mxu0 0
    %5125 = vmatmul.mubr.bf16.gmra.mrb[0].mxu0 %v5056
    %v5126 = vpop.f32.mrb[0].mxu0
    %v5127 = vadd.f32 0.0, %v5126
    %v5128 = vpop.f32.mrb[0].mxu0
    %v5129 = vpop.f32.mrb[0].mxu0
    %v5130 = vadd.f32 0.0, %v5129
    %v5131 = vpop.f32.mrb[0].mxu0
    %5132 = vmatprep.mubr.bf16.mxu0 0
    %5133 = vmatmul.mubr.bf16.gmra.mrb[0].mxu0 %v5059
    %v5134 = vpop.f32.mrb[0].mxu0
    %v5135 = vadd.f32 0.0, %v5134
    %v5136 = vpop.f32.mrb[0].mxu0
    %v5137 = vpop.f32.mrb[0].mxu0
    %v5138 = vadd.f32 0.0, %v5137
    %v5139 = vpop.f32.mrb[0].mxu0
    %5140 = vmatprep.mubr.bf16.mxu0 0
    %5141 = vmatmul.mubr.bf16.gmra.mrb[0].mxu0 %v5062
    %v5142 = vpop.f32.mrb[0].mxu0
    %v5143 = vadd.f32 0.0, %v5142
    %v5144 = vpop.f32.mrb[0].mxu0
    %v5145 = vpop.f32.mrb[0].mxu0
    %v5146 = vadd.f32 0.0, %v5145
    %v5147 = vpop.f32.mrb[0].mxu0
    %5148 = vmatprep.mubr.bf16.mxu0 0
    %5149 = vmatmul.mubr.bf16.gmra.mrb[0].mxu0 %v5065
    %v5150 = vpop.f32.mrb[0].mxu0
    %v5151 = vadd.f32 0.0, %v5150
    %v5152 = vpop.f32.mrb[0].mxu0
    %v5153 = vpop.f32.mrb[0].mxu0
    %v5154 = vadd.f32 0.0, %v5153
    %v5155 = vpop.f32.mrb[0].mxu0
    %5156 = vmatprep.mubr.bf16.mxu0 0
    %5157 = vmatmul.mubr.bf16.gmra.mrb[0].mxu0 %v5068
    %v5158 = vpop.f32.mrb[0].mxu0
    %v5159 = vadd.f32 0.0, %v5158
    %v5160 = vpop.f32.mrb[0].mxu0
    %v5161 = vpop.f32.mrb[0].mxu0
    %v5162 = vadd.f32 0.0, %v5161
    %v5163 = vpop.f32.mrb[0].mxu0
    %5164 = vmatprep.mubr.bf16.mxu0 0
    %5165 = vmatmul.mubr.bf16.gmra.mrb[0].mxu0 %v5071
    %v5166 = vpop.f32.mrb[0].mxu0
    %v5167 = vadd.f32 0.0, %v5166
    %v5168 = vpop.f32.mrb[0].mxu0
    %v5169 = vpop.f32.mrb[0].mxu0
    %v5170 = vadd.f32 0.0, %v5169
    %v5171 = vpop.f32.mrb[0].mxu0
    %5172 = vdwg.mxu0
    %v5173 = vadd.f32 %v4895, %v5111
    %v5174 = vadd.f32 %v4896, %v5114
    %v5175 = vadd.f32 %v4897, %v5119
    %v5176 = vadd.f32 %v4898, %v5122
    %v5177 = vadd.f32 %v4899, %v5127
    %v5178 = vadd.f32 %v4900, %v5130
    %v5179 = vadd.f32 %v4901, %v5135
    %v5180 = vadd.f32 %v4902, %v5138
    %v5181 = vadd.f32 %v4903, %v5143
    %v5182 = vadd.f32 %v4904, %v5146
    %v5183 = vadd.f32 %v4905, %v5151
    %v5184 = vadd.f32 %v4906, %v5154
    %v5185 = vadd.f32 %v4907, %v5159
    %v5186 = vadd.f32 %v4908, %v5162
    %v5187 = vadd.f32 %v4909, %v5167
    %v5188 = vadd.f32 %v4910, %v5170
    %s5189 = scalar_lea.vmem [#allocation2], 16
    %v5190 = vld [vmem:[%s5189] sm:$0xf]
    %v5191 = vld [vmem:[%s5189 + $0x8] sm:$0xf]
    %v5192 = vld [vmem:[%s5189 + $0x10] sm:$0xf]
    %v5193 = vld [vmem:[%s5189 + $0x18] sm:$0xf]
    %v5194 = vld [vmem:[%s5189 + $0x20] sm:$0xf]
    %v5195 = vld [vmem:[%s5189 + $0x28] sm:$0xf]
    %v5196 = vld [vmem:[%s5189 + $0x30] sm:$0xf]
    %v5197 = vld [vmem:[%s5189 + $0x38] sm:$0xf]
    %v5198 = vld [vmem:[%s5189 + $0x50] sm:$0xf]
    %v5199 = vld [vmem:[%s5189 + $0x58] sm:$0xf]
    %v5200 = vld [vmem:[%s5189 + $0x60] sm:$0xf]
    %v5201 = vld [vmem:[%s5189 + $0x68] sm:$0xf]
    %v5202 = vld [vmem:[%s5189 + $0x70] sm:$0xf]
    %v5203 = vld [vmem:[%s5189 + $0x78] sm:$0xf]
    %v5204 = vld [vmem:[%s5189 + $0x80] sm:$0xf]
    %v5205 = vld [vmem:[%s5189 + $0x88] sm:$0xf]
    %s5206 = scalar_lea.vmem [#allocation8], 24
    %v5207 = vld [vmem:[%s5206] sm:$0xf]
    %v5224 = vunpack.c.l.b16 %v5190
    %v5225 = vunpack.c.l.b16 %v5191
    %v5226 = vunpack.c.l.b16 %v5192
    %v5227 = vunpack.c.l.b16 %v5193
    %v5228 = vunpack.c.l.b16 %v5194
    %v5229 = vunpack.c.l.b16 %v5195
    %v5230 = vunpack.c.l.b16 %v5196
    %v5231 = vunpack.c.l.b16 %v5197
    %v5232 = vunpack.c.l.b16 %v5198
    %v5233 = vunpack.c.l.b16 %v5199
    %v5234 = vunpack.c.l.b16 %v5200
    %v5235 = vunpack.c.l.b16 %v5201
    %v5236 = vunpack.c.l.b16 %v5202
    %v5237 = vunpack.c.l.b16 %v5203
    %v5238 = vunpack.c.l.b16 %v5204
    %v5239 = vunpack.c.l.b16 %v5205
    %v5240 = vpack.c.b16 %v5225, %v5224
    %v5241 = vpack.c.b16 %v5227, %v5226
    %v5242 = vpack.c.b16 %v5229, %v5228
    %v5243 = vpack.c.b16 %v5231, %v5230
    %v5244 = vpack.c.b16 %v5233, %v5232
    %v5245 = vpack.c.b16 %v5235, %v5234
    %v5246 = vpack.c.b16 %v5237, %v5236
    %v5247 = vpack.c.b16 %v5239, %v5238
    %v5249 = vsel %vm3723, %v5240, 0
    %v5252 = vsel %vm3723, %v5241, 0
    %v5255 = vsel %vm3723, %v5242, 0
    %v5258 = vsel %vm3723, %v5243, 0
    %v5261 = vsel %vm3723, %v5244, 0
    %v5264 = vsel %vm3723, %v5245, 0
    %v5267 = vsel %vm3723, %v5246, 0
    %v5270 = vsel %vm3723, %v5247, 0
    %v5273 = vsel %vm3748, %v5207, 0
    %5275 = vmatprep.subr.bf16.mxu0 0
    %5276 = vmatpush1.bf16.msra.mxu0 %v5273
    %5277 = vmatprep.subr.bf16.mxu0 0
    %5278 = vmatpush1.bf16.msra.mxu0 0
    %5279 = vmatprep.subr.bf16.mxu0 0
    %5280 = vmatpush1.bf16.msra.mxu0 0
    %5281 = vmatprep.subr.bf16.mxu0 0
    %5282 = vmatpush1.bf16.msra.mxu0 0
    %5283 = vmatprep.subr.bf16.mxu0 0
    %5284 = vmatpush1.bf16.msra.mxu0 0
    %5285 = vmatprep.subr.bf16.mxu0 0
    %5286 = vmatpush1.bf16.msra.mxu0 0
    %5287 = vmatprep.subr.bf16.mxu0 0
    %5288 = vmatpush1.bf16.msra.mxu0 0
    %5289 = vmatprep.subr.bf16.mxu0 0
    %5290 = vmatpush1.bf16.msra.mxu0 0
    %5291 = vmatprep.subr.bf16.mxu0 0
    %5292 = vmatpush1.bf16.msra.mxu0 0
    %5293 = vmatprep.subr.bf16.mxu0 0
    %5294 = vmatpush1.bf16.msra.mxu0 0
    %5295 = vmatprep.subr.bf16.mxu0 0
    %5296 = vmatpush1.bf16.msra.mxu0 0
    %5297 = vmatprep.subr.bf16.mxu0 0
    %5298 = vmatpush1.bf16.msra.mxu0 0
    %5299 = vmatprep.subr.bf16.mxu0 0
    %5300 = vmatpush1.bf16.msra.mxu0 0
    %5301 = vmatprep.subr.bf16.mxu0 0
    %5302 = vmatpush1.bf16.msra.mxu0 0
    %5303 = vmatprep.subr.bf16.mxu0 0
    %5304 = vmatpush1.bf16.msra.mxu0 0
    %5305 = vmatprep.subr.bf16.mxu0 0
    %5306 = vmatpush1.bf16.msra.mxu0 0
    %5307 = vmatprep.mubr.bf16.mxu0 0
    %5308 = vmatmul.mubr.bf16.gmra.mrb[0].mxu0 %v5249
    %v5309 = vpop.f32.mrb[0].mxu0
    %v5310 = vadd.f32 0.0, %v5309
    %v5311 = vpop.f32.mrb[0].mxu0
    %v5312 = vpop.f32.mrb[0].mxu0
    %v5313 = vadd.f32 0.0, %v5312
    %v5314 = vpop.f32.mrb[0].mxu0
    %5315 = vmatprep.mubr.bf16.mxu0 0
    %5316 = vmatmul.mubr.bf16.gmra.mrb[0].mxu0 %v5252
    %v5317 = vpop.f32.mrb[0].mxu0
    %v5318 = vadd.f32 0.0, %v5317
    %v5319 = vpop.f32.mrb[0].mxu0
    %v5320 = vpop.f32.mrb[0].mxu0
    %v5321 = vadd.f32 0.0, %v5320
    %v5322 = vpop.f32.mrb[0].mxu0
    %5323 = vmatprep.mubr.bf16.mxu0 0
    %5324 = vmatmul.mubr.bf16.gmra.mrb[0].mxu0 %v5255
    %v5325 = vpop.f32.mrb[0].mxu0
    %v5326 = vadd.f32 0.0, %v5325
    %v5327 = vpop.f32.mrb[0].mxu0
    %v5328 = vpop.f32.mrb[0].mxu0
    %v5329 = vadd.f32 0.0, %v5328
    %v5330 = vpop.f32.mrb[0].mxu0
    %5331 = vmatprep.mubr.bf16.mxu0 0
    %5332 = vmatmul.mubr.bf16.gmra.mrb[0].mxu0 %v5258
    %v5333 = vpop.f32.mrb[0].mxu0
    %v5334 = vadd.f32 0.0, %v5333
    %v5335 = vpop.f32.mrb[0].mxu0
    %v5336 = vpop.f32.mrb[0].mxu0
    %v5337 = vadd.f32 0.0, %v5336
    %v5338 = vpop.f32.mrb[0].mxu0
    %5339 = vmatprep.mubr.bf16.mxu0 0
    %5340 = vmatmul.mubr.bf16.gmra.mrb[0].mxu0 %v5261
    %v5341 = vpop.f32.mrb[0].mxu0
    %v5342 = vadd.f32 0.0, %v5341
    %v5343 = vpop.f32.mrb[0].mxu0
    %v5344 = vpop.f32.mrb[0].mxu0
    %v5345 = vadd.f32 0.0, %v5344
    %v5346 = vpop.f32.mrb[0].mxu0
    %5347 = vmatprep.mubr.bf16.mxu0 0
    %5348 = vmatmul.mubr.bf16.gmra.mrb[0].mxu0 %v5264
    %v5349 = vpop.f32.mrb[0].mxu0
    %v5350 = vadd.f32 0.0, %v5349
    %v5351 = vpop.f32.mrb[0].mxu0
    %v5352 = vpop.f32.mrb[0].mxu0
    %v5353 = vadd.f32 0.0, %v5352
    %v5354 = vpop.f32.mrb[0].mxu0
    %5355 = vmatprep.mubr.bf16.mxu0 0
    %5356 = vmatmul.mubr.bf16.gmra.mrb[0].mxu0 %v5267
    %v5357 = vpop.f32.mrb[0].mxu0
    %v5358 = vadd.f32 0.0, %v5357
    %v5359 = vpop.f32.mrb[0].mxu0
    %v5360 = vpop.f32.mrb[0].mxu0
    %v5361 = vadd.f32 0.0, %v5360
    %v5362 = vpop.f32.mrb[0].mxu0
    %5363 = vmatprep.mubr.bf16.mxu0 0
    %5364 = vmatmul.mubr.bf16.gmra.mrb[0].mxu0 %v5270
    %v5365 = vpop.f32.mrb[0].mxu0
    %v5366 = vadd.f32 0.0, %v5365
    %v5367 = vpop.f32.mrb[0].mxu0
    %v5368 = vpop.f32.mrb[0].mxu0
    %v5369 = vadd.f32 0.0, %v5368
    %v5370 = vpop.f32.mrb[0].mxu0
    %5371 = vdwg.mxu0
    %v5372 = vadd.f32 %v5173, %v5310
    %v5373 = vadd.f32 %v5174, %v5313
    %v5374 = vadd.f32 %v5175, %v5318
    %v5375 = vadd.f32 %v5176, %v5321
    %v5376 = vadd.f32 %v5177, %v5326
    %v5377 = vadd.f32 %v5178, %v5329
    %v5378 = vadd.f32 %v5179, %v5334
    %v5379 = vadd.f32 %v5180, %v5337
    %v5380 = vadd.f32 %v5181, %v5342
    %v5381 = vadd.f32 %v5182, %v5345
    %v5382 = vadd.f32 %v5183, %v5350
    %v5383 = vadd.f32 %v5184, %v5353
    %v5384 = vadd.f32 %v5185, %v5358
    %v5385 = vadd.f32 %v5186, %v5361
    %v5386 = vadd.f32 %v5187, %v5366
    %v5387 = vadd.f32 %v5188, %v5369
    %v5388 = vld [vmem:[%s5189] sm:$0xf]
    %v5389 = vld [vmem:[%s5189 + $0x4] sm:$0x1]
    %v5390 = vld [vmem:[%s5189 + $0x8] sm:$0xf]
    %v5391 = vld [vmem:[%s5189 + $0xc] sm:$0x1]
    %v5392 = vld [vmem:[%s5189 + $0x10] sm:$0xf]
    %v5393 = vld [vmem:[%s5189 + $0x14] sm:$0x1]
    %v5394 = vld [vmem:[%s5189 + $0x18] sm:$0xf]
    %v5395 = vld [vmem:[%s5189 + $0x1c] sm:$0x1]
    %v5396 = vld [vmem:[%s5189 + $0x20] sm:$0xf]
    %v5397 = vld [vmem:[%s5189 + $0x24] sm:$0x1]
    %v5398 = vld [vmem:[%s5189 + $0x28] sm:$0xf]
    %v5399 = vld [vmem:[%s5189 + $0x2c] sm:$0x1]
    %v5400 = vld [vmem:[%s5189 + $0x30] sm:$0xf]
    %v5401 = vld [vmem:[%s5189 + $0x34] sm:$0x1]
    %v5402 = vld [vmem:[%s5189 + $0x38] sm:$0xf]
    %v5403 = vld [vmem:[%s5189 + $0x3c] sm:$0x1]
    %v5404 = vld [vmem:[%s5189 + $0x50] sm:$0xf]
    %v5405 = vld [vmem:[%s5189 + $0x54] sm:$0x1]
    %v5406 = vld [vmem:[%s5189 + $0x58] sm:$0xf]
    %v5407 = vld [vmem:[%s5189 + $0x5c] sm:$0x1]
    %v5408 = vld [vmem:[%s5189 + $0x60] sm:$0xf]
    %v5409 = vld [vmem:[%s5189 + $0x64] sm:$0x1]
    %v5410 = vld [vmem:[%s5189 + $0x68] sm:$0xf]
    %v5411 = vld [vmem:[%s5189 + $0x6c] sm:$0x1]
    %v5412 = vld [vmem:[%s5189 + $0x70] sm:$0xf]
    %v5413 = vld [vmem:[%s5189 + $0x74] sm:$0x1]
    %v5414 = vld [vmem:[%s5189 + $0x78] sm:$0xf]
    %v5415 = vld [vmem:[%s5189 + $0x7c] sm:$0x1]
    %v5416 = vld [vmem:[%s5189 + $0x80] sm:$0xf]
    %v5417 = vld [vmem:[%s5189 + $0x84] sm:$0x1]
    %v5418 = vld [vmem:[%s5189 + $0x88] sm:$0xf]
    %v5419 = vld [vmem:[%s5189 + $0x8c] sm:$0x1]
    %v5421 = vshrl.u32 %v5388, 16
    %v5423 = vrot.slane %v5421, 4
    %v5424 = vshll.u32 %v5388, 16
    %v5426 = vrot.slane %v5424, 5
    %v5427 = vor.u32 %v5423, %v5426
    %v5428 = vrot.slane %v5427, 4
    %v5430 = vshll.u32 %v5389, 16
    %v5432 = vrot.slane %v5430, 5
    %v5433 = vsel %vm124, %v5428, %v5432
    %v5435 = vshrl.u32 %v5390, 16
    %v5437 = vrot.slane %v5435, 4
    %v5438 = vshll.u32 %v5390, 16
    %v5440 = vrot.slane %v5438, 5
    %v5441 = vor.u32 %v5437, %v5440
    %v5442 = vrot.slane %v5441, 4
    %v5444 = vshll.u32 %v5391, 16
    %v5446 = vrot.slane %v5444, 5
    %v5447 = vsel %vm124, %v5442, %v5446
    %v5449 = vshrl.u32 %v5392, 16
    %v5451 = vrot.slane %v5449, 4
    %v5452 = vshll.u32 %v5392, 16
    %v5454 = vrot.slane %v5452, 5
    %v5455 = vor.u32 %v5451, %v5454
    %v5456 = vrot.slane %v5455, 4
    %v5458 = vshll.u32 %v5393, 16
    %v5460 = vrot.slane %v5458, 5
    %v5461 = vsel %vm124, %v5456, %v5460
    %v5463 = vshrl.u32 %v5394, 16
    %v5465 = vrot.slane %v5463, 4
    %v5466 = vshll.u32 %v5394, 16
    %v5468 = vrot.slane %v5466, 5
    %v5469 = vor.u32 %v5465, %v5468
    %v5470 = vrot.slane %v5469, 4
    %v5472 = vshll.u32 %v5395, 16
    %v5474 = vrot.slane %v5472, 5
    %v5475 = vsel %vm124, %v5470, %v5474
    %v5477 = vshrl.u32 %v5396, 16
    %v5479 = vrot.slane %v5477, 4
    %v5480 = vshll.u32 %v5396, 16
    %v5482 = vrot.slane %v5480, 5
    %v5483 = vor.u32 %v5479, %v5482
    %v5484 = vrot.slane %v5483, 4
    %v5486 = vshll.u32 %v5397, 16
    %v5488 = vrot.slane %v5486, 5
    %v5489 = vsel %vm124, %v5484, %v5488
    %v5491 = vshrl.u32 %v5398, 16
    %v5493 = vrot.slane %v5491, 4
    %v5494 = vshll.u32 %v5398, 16
    %v5496 = vrot.slane %v5494, 5
    %v5497 = vor.u32 %v5493, %v5496
    %v5498 = vrot.slane %v5497, 4
    %v5500 = vshll.u32 %v5399, 16
    %v5502 = vrot.slane %v5500, 5
    %v5503 = vsel %vm124, %v5498, %v5502
    %v5505 = vshrl.u32 %v5400, 16
    %v5507 = vrot.slane %v5505, 4
    %v5508 = vshll.u32 %v5400, 16
    %v5510 = vrot.slane %v5508, 5
    %v5511 = vor.u32 %v5507, %v5510
    %v5512 = vrot.slane %v5511, 4
    %v5514 = vshll.u32 %v5401, 16
    %v5516 = vrot.slane %v5514, 5
    %v5517 = vsel %vm124, %v5512, %v5516
    %v5519 = vshrl.u32 %v5402, 16
    %v5521 = vrot.slane %v5519, 4
    %v5522 = vshll.u32 %v5402, 16
    %v5524 = vrot.slane %v5522, 5
    %v5525 = vor.u32 %v5521, %v5524
    %v5526 = vrot.slane %v5525, 4
    %v5528 = vshll.u32 %v5403, 16
    %v5530 = vrot.slane %v5528, 5
    %v5531 = vsel %vm124, %v5526, %v5530
    %v5533 = vshrl.u32 %v5404, 16
    %v5535 = vrot.slane %v5533, 4
    %v5536 = vshll.u32 %v5404, 16
    %v5538 = vrot.slane %v5536, 5
    %v5539 = vor.u32 %v5535, %v5538
    %v5540 = vrot.slane %v5539, 4
    %v5542 = vshll.u32 %v5405, 16
    %v5544 = vrot.slane %v5542, 5
    %v5545 = vsel %vm124, %v5540, %v5544
    %v5547 = vshrl.u32 %v5406, 16
    %v5549 = vrot.slane %v5547, 4
    %v5550 = vshll.u32 %v5406, 16
    %v5552 = vrot.slane %v5550, 5
    %v5553 = vor.u32 %v5549, %v5552
    %v5554 = vrot.slane %v5553, 4
    %v5556 = vshll.u32 %v5407, 16
    %v5558 = vrot.slane %v5556, 5
    %v5559 = vsel %vm124, %v5554, %v5558
    %v5561 = vshrl.u32 %v5408, 16
    %v5563 = vrot.slane %v5561, 4
    %v5564 = vshll.u32 %v5408, 16
    %v5566 = vrot.slane %v5564, 5
    %v5567 = vor.u32 %v5563, %v5566
    %v5568 = vrot.slane %v5567, 4
    %v5570 = vshll.u32 %v5409, 16
    %v5572 = vrot.slane %v5570, 5
    %v5573 = vsel %vm124, %v5568, %v5572
    %v5575 = vshrl.u32 %v5410, 16
    %v5577 = vrot.slane %v5575, 4
    %v5578 = vshll.u32 %v5410, 16
    %v5580 = vrot.slane %v5578, 5
    %v5581 = vor.u32 %v5577, %v5580
    %v5582 = vrot.slane %v5581, 4
    %v5584 = vshll.u32 %v5411, 16
    %v5586 = vrot.slane %v5584, 5
    %v5587 = vsel %vm124, %v5582, %v5586
    %v5589 = vshrl.u32 %v5412, 16
    %v5591 = vrot.slane %v5589, 4
    %v5592 = vshll.u32 %v5412, 16
    %v5594 = vrot.slane %v5592, 5
    %v5595 = vor.u32 %v5591, %v5594
    %v5596 = vrot.slane %v5595, 4
    %v5598 = vshll.u32 %v5413, 16
    %v5600 = vrot.slane %v5598, 5
    %v5601 = vsel %vm124, %v5596, %v5600
    %v5603 = vshrl.u32 %v5414, 16
    %v5605 = vrot.slane %v5603, 4
    %v5606 = vshll.u32 %v5414, 16
    %v5608 = vrot.slane %v5606, 5
    %v5609 = vor.u32 %v5605, %v5608
    %v5610 = vrot.slane %v5609, 4
    %v5612 = vshll.u32 %v5415, 16
    %v5614 = vrot.slane %v5612, 5
    %v5615 = vsel %vm124, %v5610, %v5614
    %v5617 = vshrl.u32 %v5416, 16
    %v5619 = vrot.slane %v5617, 4
    %v5620 = vshll.u32 %v5416, 16
    %v5622 = vrot.slane %v5620, 5
    %v5623 = vor.u32 %v5619, %v5622
    %v5624 = vrot.slane %v5623, 4
    %v5626 = vshll.u32 %v5417, 16
    %v5628 = vrot.slane %v5626, 5
    %v5629 = vsel %vm124, %v5624, %v5628
    %v5631 = vshrl.u32 %v5418, 16
    %v5633 = vrot.slane %v5631, 4
    %v5634 = vshll.u32 %v5418, 16
    %v5636 = vrot.slane %v5634, 5
    %v5637 = vor.u32 %v5633, %v5636
    %v5638 = vrot.slane %v5637, 4
    %v5640 = vshll.u32 %v5419, 16
    %v5642 = vrot.slane %v5640, 5
    %v5643 = vsel %vm124, %v5638, %v5642
    %s5644 = scalar_lea.vmem [#allocation8], 28
    %v5645 = vld [vmem:[%s5644] sm:$0xf]
    %v5646 = vunpack.c.l.b16 %v5433
    %v5647 = vunpack.c.l.b16 %v5447
    %v5648 = vunpack.c.l.b16 %v5461
    %v5649 = vunpack.c.l.b16 %v5475
    %v5650 = vunpack.c.l.b16 %v5489
    %v5651 = vunpack.c.l.b16 %v5503
    %v5652 = vunpack.c.l.b16 %v5517
    %v5653 = vunpack.c.l.b16 %v5531
    %v5654 = vunpack.c.l.b16 %v5545
    %v5655 = vunpack.c.l.b16 %v5559
    %v5656 = vunpack.c.l.b16 %v5573
    %v5657 = vunpack.c.l.b16 %v5587
    %v5658 = vunpack.c.l.b16 %v5601
    %v5659 = vunpack.c.l.b16 %v5615
    %v5660 = vunpack.c.l.b16 %v5629
    %v5661 = vunpack.c.l.b16 %v5643
    %v5662 = vpack.c.b16 %v5647, %v5646
    %v5663 = vpack.c.b16 %v5649, %v5648
    %v5664 = vpack.c.b16 %v5651, %v5650
    %v5665 = vpack.c.b16 %v5653, %v5652
    %v5666 = vpack.c.b16 %v5655, %v5654
    %v5667 = vpack.c.b16 %v5657, %v5656
    %v5668 = vpack.c.b16 %v5659, %v5658
    %v5669 = vpack.c.b16 %v5661, %v5660
    %v5671 = vsel %vm3723, %v5662, 0
    %v5674 = vsel %vm3723, %v5663, 0
    %v5677 = vsel %vm3723, %v5664, 0
    %v5680 = vsel %vm3723, %v5665, 0
    %v5683 = vsel %vm3723, %v5666, 0
    %v5686 = vsel %vm3723, %v5667, 0
    %v5689 = vsel %vm3723, %v5668, 0
    %v5692 = vsel %vm3723, %v5669, 0
    %v5695 = vsel %vm3748, %v5645, 0
    %5697 = vmatprep.subr.bf16.mxu0 0
    %5698 = vmatpush1.bf16.msra.mxu0 %v5695
    %5699 = vmatprep.subr.bf16.mxu0 0
    %5700 = vmatpush1.bf16.msra.mxu0 0
    %5701 = vmatprep.subr.bf16.mxu0 0
    %5702 = vmatpush1.bf16.msra.mxu0 0
    %5703 = vmatprep.subr.bf16.mxu0 0
    %5704 = vmatpush1.bf16.msra.mxu0 0
    %5705 = vmatprep.subr.bf16.mxu0 0
    %5706 = vmatpush1.bf16.msra.mxu0 0
    %5707 = vmatprep.subr.bf16.mxu0 0
    %5708 = vmatpush1.bf16.msra.mxu0 0
    %5709 = vmatprep.subr.bf16.mxu0 0
    %5710 = vmatpush1.bf16.msra.mxu0 0
    %5711 = vmatprep.subr.bf16.mxu0 0
    %5712 = vmatpush1.bf16.msra.mxu0 0
    %5713 = vmatprep.subr.bf16.mxu0 0
    %5714 = vmatpush1.bf16.msra.mxu0 0
    %5715 = vmatprep.subr.bf16.mxu0 0
    %5716 = vmatpush1.bf16.msra.mxu0 0
    %5717 = vmatprep.subr.bf16.mxu0 0
    %5718 = vmatpush1.bf16.msra.mxu0 0
    %5719 = vmatprep.subr.bf16.mxu0 0
    %5720 = vmatpush1.bf16.msra.mxu0 0
    %5721 = vmatprep.subr.bf16.mxu0 0
    %5722 = vmatpush1.bf16.msra.mxu0 0
    %5723 = vmatprep.subr.bf16.mxu0 0
    %5724 = vmatpush1.bf16.msra.mxu0 0
    %5725 = vmatprep.subr.bf16.mxu0 0
    %5726 = vmatpush1.bf16.msra.mxu0 0
    %5727 = vmatprep.subr.bf16.mxu0 0
    %5728 = vmatpush1.bf16.msra.mxu0 0
    %5729 = vmatprep.mubr.bf16.mxu0 0
    %5730 = vmatmul.mubr.bf16.gmra.mrb[0].mxu0 %v5671
    %v5731 = vpop.f32.mrb[0].mxu0
    %v5732 = vadd.f32 0.0, %v5731
    %v5733 = vpop.f32.mrb[0].mxu0
    %v5734 = vpop.f32.mrb[0].mxu0
    %v5735 = vadd.f32 0.0, %v5734
    %v5736 = vpop.f32.mrb[0].mxu0
    %5737 = vmatprep.mubr.bf16.mxu0 0
    %5738 = vmatmul.mubr.bf16.gmra.mrb[0].mxu0 %v5674
    %v5739 = vpop.f32.mrb[0].mxu0
    %v5740 = vadd.f32 0.0, %v5739
    %v5741 = vpop.f32.mrb[0].mxu0
    %v5742 = vpop.f32.mrb[0].mxu0
    %v5743 = vadd.f32 0.0, %v5742
    %v5744 = vpop.f32.mrb[0].mxu0
    %5745 = vmatprep.mubr.bf16.mxu0 0
    %5746 = vmatmul.mubr.bf16.gmra.mrb[0].mxu0 %v5677
    %v5747 = vpop.f32.mrb[0].mxu0
    %v5748 = vadd.f32 0.0, %v5747
    %v5749 = vpop.f32.mrb[0].mxu0
    %v5750 = vpop.f32.mrb[0].mxu0
    %v5751 = vadd.f32 0.0, %v5750
    %v5752 = vpop.f32.mrb[0].mxu0
    %5753 = vmatprep.mubr.bf16.mxu0 0
    %5754 = vmatmul.mubr.bf16.gmra.mrb[0].mxu0 %v5680
    %v5755 = vpop.f32.mrb[0].mxu0
    %v5756 = vadd.f32 0.0, %v5755
    %v5757 = vpop.f32.mrb[0].mxu0
    %v5758 = vpop.f32.mrb[0].mxu0
    %v5759 = vadd.f32 0.0, %v5758
    %v5760 = vpop.f32.mrb[0].mxu0
    %5761 = vmatprep.mubr.bf16.mxu0 0
    %5762 = vmatmul.mubr.bf16.gmra.mrb[0].mxu0 %v5683
    %v5763 = vpop.f32.mrb[0].mxu0
    %v5764 = vadd.f32 0.0, %v5763
    %v5765 = vpop.f32.mrb[0].mxu0
    %v5766 = vpop.f32.mrb[0].mxu0
    %v5767 = vadd.f32 0.0, %v5766
    %v5768 = vpop.f32.mrb[0].mxu0
    %5769 = vmatprep.mubr.bf16.mxu0 0
    %5770 = vmatmul.mubr.bf16.gmra.mrb[0].mxu0 %v5686
    %v5771 = vpop.f32.mrb[0].mxu0
    %v5772 = vadd.f32 0.0, %v5771
    %v5773 = vpop.f32.mrb[0].mxu0
    %v5774 = vpop.f32.mrb[0].mxu0
    %v5775 = vadd.f32 0.0, %v5774
    %v5776 = vpop.f32.mrb[0].mxu0
    %5777 = vmatprep.mubr.bf16.mxu0 0
    %5778 = vmatmul.mubr.bf16.gmra.mrb[0].mxu0 %v5689
    %v5779 = vpop.f32.mrb[0].mxu0
    %v5780 = vadd.f32 0.0, %v5779
    %v5781 = vpop.f32.mrb[0].mxu0
    %v5782 = vpop.f32.mrb[0].mxu0
    %v5783 = vadd.f32 0.0, %v5782
    %v5784 = vpop.f32.mrb[0].mxu0
    %5785 = vmatprep.mubr.bf16.mxu0 0
    %5786 = vmatmul.mubr.bf16.gmra.mrb[0].mxu0 %v5692
    %v5787 = vpop.f32.mrb[0].mxu0
    %v5788 = vadd.f32 0.0, %v5787
    %v5789 = vpop.f32.mrb[0].mxu0
    %v5790 = vpop.f32.mrb[0].mxu0
    %v5791 = vadd.f32 0.0, %v5790
    %v5792 = vpop.f32.mrb[0].mxu0
    %5793 = vdwg.mxu0
    %v5794 = vadd.f32 %v5372, %v5732
    %v5795 = vadd.f32 %v5373, %v5735
    %v5796 = vadd.f32 %v5374, %v5740
    %v5797 = vadd.f32 %v5375, %v5743
    %v5798 = vadd.f32 %v5376, %v5748
    %v5799 = vadd.f32 %v5377, %v5751
    %v5800 = vadd.f32 %v5378, %v5756
    %v5801 = vadd.f32 %v5379, %v5759
    %v5802 = vadd.f32 %v5380, %v5764
    %v5803 = vadd.f32 %v5381, %v5767
    %v5804 = vadd.f32 %v5382, %v5772
    %v5805 = vadd.f32 %v5383, %v5775
    %v5806 = vadd.f32 %v5384, %v5780
    %v5807 = vadd.f32 %v5385, %v5783
    %v5808 = vadd.f32 %v5386, %v5788
    %v5809 = vadd.f32 %v5387, %v5791
    %v5810 = vld [vmem:[%s5189] sm:$0xe]
    %v5811 = vld [vmem:[%s5189 + $0x8] sm:$0xe]
    %v5812 = vld [vmem:[%s5189 + $0x10] sm:$0xe]
    %v5813 = vld [vmem:[%s5189 + $0x18] sm:$0xe]
    %v5814 = vld [vmem:[%s5189 + $0x20] sm:$0xe]
    %v5815 = vld [vmem:[%s5189 + $0x28] sm:$0xe]
    %v5816 = vld [vmem:[%s5189 + $0x30] sm:$0xe]
    %v5817 = vld [vmem:[%s5189 + $0x38] sm:$0xe]
    %v5818 = vld [vmem:[%s5189 + $0x50] sm:$0xe]
    %v5819 = vld [vmem:[%s5189 + $0x58] sm:$0xe]
    %v5820 = vld [vmem:[%s5189 + $0x60] sm:$0xe]
    %v5821 = vld [vmem:[%s5189 + $0x68] sm:$0xe]
    %v5822 = vld [vmem:[%s5189 + $0x70] sm:$0xe]
    %v5823 = vld [vmem:[%s5189 + $0x78] sm:$0xe]
    %v5824 = vld [vmem:[%s5189 + $0x80] sm:$0xe]
    %v5825 = vld [vmem:[%s5189 + $0x88] sm:$0xe]
    %v5858 = vrot.slane %v5810, 5
    %v5859 = vrot.slane %v5858, 4
    %v5860 = vrot.slane %v5389, 5
    %v5861 = vsel %vm721, %v5859, %v5860
    %v5862 = vrot.slane %v5811, 5
    %v5863 = vrot.slane %v5862, 4
    %v5864 = vrot.slane %v5391, 5
    %v5865 = vsel %vm721, %v5863, %v5864
    %v5866 = vrot.slane %v5812, 5
    %v5867 = vrot.slane %v5866, 4
    %v5868 = vrot.slane %v5393, 5
    %v5869 = vsel %vm721, %v5867, %v5868
    %v5870 = vrot.slane %v5813, 5
    %v5871 = vrot.slane %v5870, 4
    %v5872 = vrot.slane %v5395, 5
    %v5873 = vsel %vm721, %v5871, %v5872
    %v5874 = vrot.slane %v5814, 5
    %v5875 = vrot.slane %v5874, 4
    %v5876 = vrot.slane %v5397, 5
    %v5877 = vsel %vm721, %v5875, %v5876
    %v5878 = vrot.slane %v5815, 5
    %v5879 = vrot.slane %v5878, 4
    %v5880 = vrot.slane %v5399, 5
    %v5881 = vsel %vm721, %v5879, %v5880
    %v5882 = vrot.slane %v5816, 5
    %v5883 = vrot.slane %v5882, 4
    %v5884 = vrot.slane %v5401, 5
    %v5885 = vsel %vm721, %v5883, %v5884
    %v5886 = vrot.slane %v5817, 5
    %v5887 = vrot.slane %v5886, 4
    %v5888 = vrot.slane %v5403, 5
    %v5889 = vsel %vm721, %v5887, %v5888
    %v5890 = vrot.slane %v5818, 5
    %v5891 = vrot.slane %v5890, 4
    %v5892 = vrot.slane %v5405, 5
    %v5893 = vsel %vm721, %v5891, %v5892
    %v5894 = vrot.slane %v5819, 5
    %v5895 = vrot.slane %v5894, 4
    %v5896 = vrot.slane %v5407, 5
    %v5897 = vsel %vm721, %v5895, %v5896
    %v5898 = vrot.slane %v5820, 5
    %v5899 = vrot.slane %v5898, 4
    %v5900 = vrot.slane %v5409, 5
    %v5901 = vsel %vm721, %v5899, %v5900
    %v5902 = vrot.slane %v5821, 5
    %v5903 = vrot.slane %v5902, 4
    %v5904 = vrot.slane %v5411, 5
    %v5905 = vsel %vm721, %v5903, %v5904
    %v5906 = vrot.slane %v5822, 5
    %v5907 = vrot.slane %v5906, 4
    %v5908 = vrot.slane %v5413, 5
    %v5909 = vsel %vm721, %v5907, %v5908
    %v5910 = vrot.slane %v5823, 5
    %v5911 = vrot.slane %v5910, 4
    %v5912 = vrot.slane %v5415, 5
    %v5913 = vsel %vm721, %v5911, %v5912
    %v5914 = vrot.slane %v5824, 5
    %v5915 = vrot.slane %v5914, 4
    %v5916 = vrot.slane %v5417, 5
    %v5917 = vsel %vm721, %v5915, %v5916
    %v5918 = vrot.slane %v5825, 5
    %v5919 = vrot.slane %v5918, 4
    %v5920 = vrot.slane %v5419, 5
    %v5921 = vsel %vm721, %v5919, %v5920
    %s5922 = scalar_lea.vmem [#allocation8], 32
    %v5923 = vld [vmem:[%s5922] sm:$0xf]
    %v5924 = vunpack.c.l.b16 %v5861
    %v5925 = vunpack.c.l.b16 %v5865
    %v5926 = vunpack.c.l.b16 %v5869
    %v5927 = vunpack.c.l.b16 %v5873
    %v5928 = vunpack.c.l.b16 %v5877
    %v5929 = vunpack.c.l.b16 %v5881
    %v5930 = vunpack.c.l.b16 %v5885
    %v5931 = vunpack.c.l.b16 %v5889
    %v5932 = vunpack.c.l.b16 %v5893
    %v5933 = vunpack.c.l.b16 %v5897
    %v5934 = vunpack.c.l.b16 %v5901
    %v5935 = vunpack.c.l.b16 %v5905
    %v5936 = vunpack.c.l.b16 %v5909
    %v5937 = vunpack.c.l.b16 %v5913
    %v5938 = vunpack.c.l.b16 %v5917
    %v5939 = vunpack.c.l.b16 %v5921
    %v5940 = vpack.c.b16 %v5925, %v5924
    %v5941 = vpack.c.b16 %v5927, %v5926
    %v5942 = vpack.c.b16 %v5929, %v5928
    %v5943 = vpack.c.b16 %v5931, %v5930
    %v5944 = vpack.c.b16 %v5933, %v5932
    %v5945 = vpack.c.b16 %v5935, %v5934
    %v5946 = vpack.c.b16 %v5937, %v5936
    %v5947 = vpack.c.b16 %v5939, %v5938
    %v5949 = vsel %vm3723, %v5940, 0
    %v5952 = vsel %vm3723, %v5941, 0
    %v5955 = vsel %vm3723, %v5942, 0
    %v5958 = vsel %vm3723, %v5943, 0
    %v5961 = vsel %vm3723, %v5944, 0
    %v5964 = vsel %vm3723, %v5945, 0
    %v5967 = vsel %vm3723, %v5946, 0
    %v5970 = vsel %vm3723, %v5947, 0
    %v5973 = vsel %vm3748, %v5923, 0
    %5975 = vmatprep.subr.bf16.mxu0 0
    %5976 = vmatpush1.bf16.msra.mxu0 %v5973
    %5977 = vmatprep.subr.bf16.mxu0 0
    %5978 = vmatpush1.bf16.msra.mxu0 0
    %5979 = vmatprep.subr.bf16.mxu0 0
    %5980 = vmatpush1.bf16.msra.mxu0 0
    %5981 = vmatprep.subr.bf16.mxu0 0
    %5982 = vmatpush1.bf16.msra.mxu0 0
    %5983 = vmatprep.subr.bf16.mxu0 0
    %5984 = vmatpush1.bf16.msra.mxu0 0
    %5985 = vmatprep.subr.bf16.mxu0 0
    %5986 = vmatpush1.bf16.msra.mxu0 0
    %5987 = vmatprep.subr.bf16.mxu0 0
    %5988 = vmatpush1.bf16.msra.mxu0 0
    %5989 = vmatprep.subr.bf16.mxu0 0
    %5990 = vmatpush1.bf16.msra.mxu0 0
    %5991 = vmatprep.subr.bf16.mxu0 0
    %5992 = vmatpush1.bf16.msra.mxu0 0
    %5993 = vmatprep.subr.bf16.mxu0 0
    %5994 = vmatpush1.bf16.msra.mxu0 0
    %5995 = vmatprep.subr.bf16.mxu0 0
    %5996 = vmatpush1.bf16.msra.mxu0 0
    %5997 = vmatprep.subr.bf16.mxu0 0
    %5998 = vmatpush1.bf16.msra.mxu0 0
    %5999 = vmatprep.subr.bf16.mxu0 0
    %6000 = vmatpush1.bf16.msra.mxu0 0
    %6001 = vmatprep.subr.bf16.mxu0 0
    %6002 = vmatpush1.bf16.msra.mxu0 0
    %6003 = vmatprep.subr.bf16.mxu0 0
    %6004 = vmatpush1.bf16.msra.mxu0 0
    %6005 = vmatprep.subr.bf16.mxu0 0
    %6006 = vmatpush1.bf16.msra.mxu0 0
    %6007 = vmatprep.mubr.bf16.mxu0 0
    %6008 = vmatmul.mubr.bf16.gmra.mrb[0].mxu0 %v5949
    %v6009 = vpop.f32.mrb[0].mxu0
    %v6010 = vadd.f32 0.0, %v6009
    %v6011 = vpop.f32.mrb[0].mxu0
    %v6012 = vpop.f32.mrb[0].mxu0
    %v6013 = vadd.f32 0.0, %v6012
    %v6014 = vpop.f32.mrb[0].mxu0
    %6015 = vmatprep.mubr.bf16.mxu0 0
    %6016 = vmatmul.mubr.bf16.gmra.mrb[0].mxu0 %v5952
    %v6017 = vpop.f32.mrb[0].mxu0
    %v6018 = vadd.f32 0.0, %v6017
    %v6019 = vpop.f32.mrb[0].mxu0
    %v6020 = vpop.f32.mrb[0].mxu0
    %v6021 = vadd.f32 0.0, %v6020
    %v6022 = vpop.f32.mrb[0].mxu0
    %6023 = vmatprep.mubr.bf16.mxu0 0
    %6024 = vmatmul.mubr.bf16.gmra.mrb[0].mxu0 %v5955
    %v6025 = vpop.f32.mrb[0].mxu0
    %v6026 = vadd.f32 0.0, %v6025
    %v6027 = vpop.f32.mrb[0].mxu0
    %v6028 = vpop.f32.mrb[0].mxu0
    %v6029 = vadd.f32 0.0, %v6028
    %v6030 = vpop.f32.mrb[0].mxu0
    %6031 = vmatprep.mubr.bf16.mxu0 0
    %6032 = vmatmul.mubr.bf16.gmra.mrb[0].mxu0 %v5958
    %v6033 = vpop.f32.mrb[0].mxu0
    %v6034 = vadd.f32 0.0, %v6033
    %v6035 = vpop.f32.mrb[0].mxu0
    %v6036 = vpop.f32.mrb[0].mxu0
    %v6037 = vadd.f32 0.0, %v6036
    %v6038 = vpop.f32.mrb[0].mxu0
    %6039 = vmatprep.mubr.bf16.mxu0 0
    %6040 = vmatmul.mubr.bf16.gmra.mrb[0].mxu0 %v5961
    %v6041 = vpop.f32.mrb[0].mxu0
    %v6042 = vadd.f32 0.0, %v6041
    %v6043 = vpop.f32.mrb[0].mxu0
    %v6044 = vpop.f32.mrb[0].mxu0
    %v6045 = vadd.f32 0.0, %v6044
    %v6046 = vpop.f32.mrb[0].mxu0
    %6047 = vmatprep.mubr.bf16.mxu0 0
    %6048 = vmatmul.mubr.bf16.gmra.mrb[0].mxu0 %v5964
    %v6049 = vpop.f32.mrb[0].mxu0
    %v6050 = vadd.f32 0.0, %v6049
    %v6051 = vpop.f32.mrb[0].mxu0
    %v6052 = vpop.f32.mrb[0].mxu0
    %v6053 = vadd.f32 0.0, %v6052
    %v6054 = vpop.f32.mrb[0].mxu0
    %6055 = vmatprep.mubr.bf16.mxu0 0
    %6056 = vmatmul.mubr.bf16.gmra.mrb[0].mxu0 %v5967
    %v6057 = vpop.f32.mrb[0].mxu0
    %v6058 = vadd.f32 0.0, %v6057
    %v6059 = vpop.f32.mrb[0].mxu0
    %v6060 = vpop.f32.mrb[0].mxu0
    %v6061 = vadd.f32 0.0, %v6060
    %v6062 = vpop.f32.mrb[0].mxu0
    %6063 = vmatprep.mubr.bf16.mxu0 0
    %6064 = vmatmul.mubr.bf16.gmra.mrb[0].mxu0 %v5970
    %v6065 = vpop.f32.mrb[0].mxu0
    %v6066 = vadd.f32 0.0, %v6065
    %v6067 = vpop.f32.mrb[0].mxu0
    %v6068 = vpop.f32.mrb[0].mxu0
    %v6069 = vadd.f32 0.0, %v6068
    %v6070 = vpop.f32.mrb[0].mxu0
    %6071 = vdwg.mxu0
    %v6072 = vadd.f32 %v5794, %v6010
    %v6073 = vadd.f32 %v5795, %v6013
    %v6074 = vadd.f32 %v5796, %v6018
    %v6075 = vadd.f32 %v5797, %v6021
    %v6076 = vadd.f32 %v5798, %v6026
    %v6077 = vadd.f32 %v5799, %v6029
    %v6078 = vadd.f32 %v5800, %v6034
    %v6079 = vadd.f32 %v5801, %v6037
    %v6080 = vadd.f32 %v5802, %v6042
    %v6081 = vadd.f32 %v5803, %v6045
    %v6082 = vadd.f32 %v5804, %v6050
    %v6083 = vadd.f32 %v5805, %v6053
    %v6084 = vadd.f32 %v5806, %v6058
    %v6085 = vadd.f32 %v5807, %v6061
    %v6086 = vadd.f32 %v5808, %v6066
    %v6087 = vadd.f32 %v5809, %v6069
    %v6088 = vld [vmem:[#allocation11 + $0x1] sm:$0x1]
    %v6089 = vlaneseq
    %v6090 = vshrl.u32 %v6089, 7
    %v6091 = vsub.s32 0, %v6090
    %v6092 = vrot.slane %v6088, %v6091
    %v6093 = vadd.f32 %v6072, %v6092
    %v6094 = vadd.f32 %v6073, %v6092
    %v6095 = vadd.f32 %v6074, %v6092
    %v6096 = vadd.f32 %v6075, %v6092
    %v6097 = vadd.f32 %v6076, %v6092
    %v6098 = vadd.f32 %v6077, %v6092
    %v6099 = vadd.f32 %v6078, %v6092
    %v6100 = vadd.f32 %v6079, %v6092
    %v6101 = vadd.f32 %v6080, %v6092
    %v6102 = vadd.f32 %v6081, %v6092
    %v6103 = vadd.f32 %v6082, %v6092
    %v6104 = vadd.f32 %v6083, %v6092
    %v6105 = vadd.f32 %v6084, %v6092
    %v6106 = vadd.f32 %v6085, %v6092
    %v6107 = vadd.f32 %v6086, %v6092
    %v6108 = vadd.f32 %v6087, %v6092
    %vm6109 = vcmp.ge.f32.partialorder %v6093, 0.0
    %vm6110 = vcmp.ge.f32.partialorder %v6094, 0.0
    %vm6111 = vcmp.ge.f32.partialorder %v6095, 0.0
    %vm6112 = vcmp.ge.f32.partialorder %v6096, 0.0
    %vm6113 = vcmp.ge.f32.partialorder %v6097, 0.0
    %vm6114 = vcmp.ge.f32.partialorder %v6098, 0.0
    %vm6115 = vcmp.ge.f32.partialorder %v6099, 0.0
    %vm6116 = vcmp.ge.f32.partialorder %v6100, 0.0
    %vm6117 = vcmp.ge.f32.partialorder %v6101, 0.0
    %vm6118 = vcmp.ge.f32.partialorder %v6102, 0.0
    %vm6119 = vcmp.ge.f32.partialorder %v6103, 0.0
    %vm6120 = vcmp.ge.f32.partialorder %v6104, 0.0
    %vm6121 = vcmp.ge.f32.partialorder %v6105, 0.0
    %vm6122 = vcmp.ge.f32.partialorder %v6106, 0.0
    %vm6123 = vcmp.ge.f32.partialorder %v6107, 0.0
    %vm6124 = vcmp.ge.f32.partialorder %v6108, 0.0
    %v6125 = vmul.f32 %v6093, 0.2
    %v6126 = vmul.f32 %v6094, 0.2
    %v6127 = vmul.f32 %v6095, 0.2
    %v6128 = vmul.f32 %v6096, 0.2
    %v6129 = vmul.f32 %v6097, 0.2
    %v6130 = vmul.f32 %v6098, 0.2
    %v6131 = vmul.f32 %v6099, 0.2
    %v6132 = vmul.f32 %v6100, 0.2
    %v6133 = vmul.f32 %v6101, 0.2
    %v6134 = vmul.f32 %v6102, 0.2
    %v6135 = vmul.f32 %v6103, 0.2
    %v6136 = vmul.f32 %v6104, 0.2
    %v6137 = vmul.f32 %v6105, 0.2
    %v6138 = vmul.f32 %v6106, 0.2
    %v6139 = vmul.f32 %v6107, 0.2
    %v6140 = vmul.f32 %v6108, 0.2
    %v6141 = vsel %vm6109, %v6093, %v6125
    %v6142 = vsel %vm6110, %v6094, %v6126
    %v6143 = vsel %vm6111, %v6095, %v6127
    %v6144 = vsel %vm6112, %v6096, %v6128
    %v6145 = vsel %vm6113, %v6097, %v6129
    %v6146 = vsel %vm6114, %v6098, %v6130
    %v6147 = vsel %vm6115, %v6099, %v6131
    %v6148 = vsel %vm6116, %v6100, %v6132
    %v6149 = vsel %vm6117, %v6101, %v6133
    %v6150 = vsel %vm6118, %v6102, %v6134
    %v6151 = vsel %vm6119, %v6103, %v6135
    %v6152 = vsel %vm6120, %v6104, %v6136
    %v6153 = vsel %vm6121, %v6105, %v6137
    %v6154 = vsel %vm6122, %v6106, %v6138
    %v6155 = vsel %vm6123, %v6107, %v6139
    %v6156 = vsel %vm6124, %v6108, %v6140
    %v6157 = vadd.f32 %v6141, %v2989
    %v6158 = vadd.f32 %v6142, %v2990
    %v6159 = vadd.f32 %v6143, %v2991
    %v6160 = vadd.f32 %v6144, %v2992
    %v6161 = vadd.f32 %v6145, %v2993
    %v6162 = vadd.f32 %v6146, %v2994
    %v6163 = vadd.f32 %v6147, %v2995
    %v6164 = vadd.f32 %v6148, %v2996
    %v6165 = vadd.f32 %v6149, %v2997
    %v6166 = vadd.f32 %v6150, %v2998
    %v6167 = vadd.f32 %v6151, %v2999
    %v6168 = vadd.f32 %v6152, %v3000
    %v6169 = vadd.f32 %v6153, %v3001
    %v6170 = vadd.f32 %v6154, %v3002
    %v6171 = vadd.f32 %v6155, %v3003
    %v6172 = vadd.f32 %v6156, %v3004
    %6173 = vxpose.xlu0.b32.start [1/16] %v6157, 128
    %6174 = vxpose.xlu0.b32.cont [2/16] %v6158, 128
    %6175 = vxpose.xlu0.b32.cont [3/16] %v6159, 128
    %6176 = vxpose.xlu0.b32.cont [4/16] %v6160, 128
    %6177 = vxpose.xlu0.b32.cont [5/16] %v6161, 128
    %6178 = vxpose.xlu0.b32.cont [6/16] %v6162, 128
    %6179 = vxpose.xlu0.b32.cont [7/16] %v6163, 128
    %6180 = vxpose.xlu0.b32.cont [8/16] %v6164, 128
    %6181 = vxpose.xlu0.b32.cont [9/16] 0.0, 128
    %6182 = vxpose.xlu0.b32.cont [10/16] 0.0, 128
    %6183 = vxpose.xlu0.b32.cont [11/16] 0.0, 128
    %6184 = vxpose.xlu0.b32.cont [12/16] 0.0, 128
    %6185 = vxpose.xlu0.b32.cont [13/16] 0.0, 128
    %6186 = vxpose.xlu0.b32.cont [14/16] 0.0, 128
    %6187 = vxpose.xlu0.b32.cont [15/16] 0.0, 128
    %6188 = vxpose.xlu0.b32.end [16/16] 0.0, 128
    %v6189 = vpop.trf.xlu0
    %v6190 = vpop.trf.xlu0
    %v6191 = vpop.trf.xlu0
    %v6192 = vpop.trf.xlu0
    %v6193 = vpop.trf.xlu0
    %v6194 = vpop.trf.xlu0
    %v6195 = vpop.trf.xlu0
    %v6196 = vpop.trf.xlu0
    %v6197 = vpop.trf.xlu0
    %v6198 = vpop.trf.xlu0
    %v6199 = vpop.trf.xlu0
    %v6200 = vpop.trf.xlu0
    %v6201 = vpop.trf.xlu0
    %v6202 = vpop.trf.xlu0
    %v6203 = vpop.trf.xlu0
    %v6204 = vpop.trf.xlu0
    %vm6205 = vcmask 523264
    %6206 = vst.msk [vmem:[#allocation12] sm:$0xff] %vm6205, %v6189
    %6207 = vxpose.xlu0.b32.start [1/16] %v6165, 128
    %6208 = vxpose.xlu0.b32.cont [2/16] %v6166, 128
    %6209 = vxpose.xlu0.b32.cont [3/16] %v6167, 128
    %6210 = vxpose.xlu0.b32.cont [4/16] %v6168, 128
    %6211 = vxpose.xlu0.b32.cont [5/16] %v6169, 128
    %6212 = vxpose.xlu0.b32.cont [6/16] %v6170, 128
    %6213 = vxpose.xlu0.b32.cont [7/16] %v6171, 128
    %6214 = vxpose.xlu0.b32.cont [8/16] %v6172, 128
    %6215 = vxpose.xlu0.b32.cont [9/16] 0.0, 128
    %6216 = vxpose.xlu0.b32.cont [10/16] 0.0, 128
    %6217 = vxpose.xlu0.b32.cont [11/16] 0.0, 128
    %6218 = vxpose.xlu0.b32.cont [12/16] 0.0, 128
    %6219 = vxpose.xlu0.b32.cont [13/16] 0.0, 128
    %6220 = vxpose.xlu0.b32.cont [14/16] 0.0, 128
    %6221 = vxpose.xlu0.b32.cont [15/16] 0.0, 128
    %6222 = vxpose.xlu0.b32.end [16/16] 0.0, 128
    %v6223 = vpop.trf.xlu0
    %v6224 = vpop.trf.xlu0
    %v6225 = vpop.trf.xlu0
    %v6226 = vpop.trf.xlu0
    %v6227 = vpop.trf.xlu0
    %v6228 = vpop.trf.xlu0
    %v6229 = vpop.trf.xlu0
    %v6230 = vpop.trf.xlu0
    %v6231 = vpop.trf.xlu0
    %v6232 = vpop.trf.xlu0
    %v6233 = vpop.trf.xlu0
    %v6234 = vpop.trf.xlu0
    %v6235 = vpop.trf.xlu0
    %v6236 = vpop.trf.xlu0
    %v6237 = vpop.trf.xlu0
    %v6238 = vpop.trf.xlu0
    %s6239 = scalar_lea.vmem [#allocation12], 8
    %6240 = vst.msk [vmem:[%s6239] sm:$0xff] %vm6205, %v6223
    // Predicated region
    $region42: #{tpu_custom_call.1} parent=1 // pred_check
      _
    $region43: #{tpu_custom_call.1} parent=1 // pred_check_branch
      %6242 = sbr.rel (0) target = $region45
    $region44: #{tpu_custom_call.1} parent=1 // pred_region
      %s6244 = ssub.s32 256, 256
      %6245 = vsyncadd [#allocation5], %s6244
      %s6246 = sshll.u32 [#allocation12], 4
      %s6247 = int_to_ptr.vmem [resolvable:$true] %s6246
      %6252 = dma.vmem_to_hbm [thread:$0]  %s6247, 256, %s5, [#allocation5], 128, 128, 8
    $region45: #{tpu_custom_call.1} parent=1 // pred_fallthru
      _
    // Predicated region
    $region46: #{tpu_custom_call.1} parent=1 // pred_check
      _
    $region47: #{tpu_custom_call.1} parent=1 // pred_check_branch
      %6254 = sbr.rel (0) target = $region49
    $region48: #{tpu_custom_call.1} parent=1 // pred_region
      %6255 = dma.done [#allocation5], 256
    $region49: #{tpu_custom_call.1} parent=1 // pred_fallthru
      _
    %6256 = vsyncpa [#allocation4], 1
    %6257 = vsyncpa [#allocation7], 1
    %6258 = vsyncpa [#allocation10], 1
    %6259 = vsyncpa [#allocation5], 1

</llo_original>
